<compile_context>
chip_gen: v7x
topology: tpu7x:2x2x1
jax: 0.10.0
libtpu: 0.0.40
codegen_flags: <defaults>
</compile_context>

<pallas_src>
import functools

import jax
import jax.numpy as jnp
from jax.experimental import pallas as pl
from jax.experimental.pallas import tpu as pltpu

NEG_SLOPE = 0.1          # nn.LeakyReLU(0.1)
_FOLD_CIN_MAX = 256      # fold the 9 taps into K when the contraction channels < this


def _leaky(x):
    return jnp.maximum(x, NEG_SLOPE * x)


# ----------------------------- Pallas kernels ------------------------------ #

def _conv1_bn_lrelu_kernel(*refs, s, ho, wo, preact, fold):
    """[BN1+LReLU] -> 3x3 conv(stride s) -> BN2+LReLU for one image x one cout tile.
    Writes a zero-ring pre-padded (ho+2, wo+2, tn) bf16 tile so conv2 needs no
    separate XLA padding pass. Whole-plane per-tap matmuls (M = ho*wo)."""
    if preact:
        x_ref, w_ref, s1_ref, sh1_ref, s2_ref, sh2_ref, o_ref = refs
    else:
        x_ref, w_ref, s2_ref, sh2_ref, o_ref = refs

    x = x_ref[...]                                   # (s*s, hq, wq, cin) f32
    if preact:
        x = x * s1_ref[...].reshape(1, 1, 1, -1) + sh1_ref[...].reshape(1, 1, 1, -1)
        x = _leaky(x)                                # padding ring maps to ~0
    xb = x.astype(jnp.bfloat16)                      # single full-tile cast
    cin = xb.shape[-1]

    w = w_ref[...]                                   # (9*cin, tn) or (9, cin, tn) bf16
    tn = w.shape[-1]

    def win(t):
        ky, kx = t // 3, t % 3
        p = (ky % s) * s + (kx % s)
        return xb[p, ky // s: ky // s + ho,
                  kx // s: kx // s + wo, :].reshape(ho * wo, cin)

    if fold:                                         # one dot, K = 9*cin (narrow layers)
        lhs = jnp.concatenate([win(t) for t in range(9)], axis=-1)
        acc = jnp.dot(lhs, w, preferred_element_type=jnp.float32)
    else:                                            # 9 dots, K = cin (wide layers)
        acc = jnp.zeros((ho * wo, tn), jnp.float32)
        for t in range(9):
            acc = acc + jnp.dot(win(t), w[t], preferred_element_type=jnp.float32)

    y = _leaky(acc * s2_ref[...] + sh2_ref[...])     # fused BN2 + LeakyReLU epilogue
    y = y.reshape(ho, wo, tn)

    zc = jnp.zeros((ho, 1, tn), jnp.float32)         # build the zero ring in-register
    y = jnp.concatenate([zc, y, zc], axis=1)
    zr = jnp.zeros((1, wo + 2, tn), jnp.float32)
    y = jnp.concatenate([zr, y, zr], axis=0)
    o_ref[...] = y.astype(o_ref.dtype)               # single aligned full-block store


def _conv2_residual_kernel(*refs, s, ho, wo, fold, conv_sc, sc_preact):
    """3x3 conv (stride 1) on the pre-padded bf16 h1 tile + shortcut + residual add.
    Shortcut = identity tile OR 1x1 conv on the stride-subsampled input read straight
    from the phased input tile (with fused BN1+LReLU when required)."""
    if not conv_sc:
        h_ref, w_ref, res_ref, o_ref = refs
    elif sc_preact:
        h_ref, w_ref, xs_ref, wsc_ref, s1_ref, sh1_ref, o_ref = refs
    else:
        h_ref, w_ref, xs_ref, wsc_ref, o_ref = refs

    h = h_ref[...]                                   # (ho+2, wo+2, cmid) bf16
    cmid = h.shape[-1]
    w = w_ref[...]                                   # (9*cmid, tn) or (9, cmid, tn) bf16
    tn = w.shape[-1]

    def win(t):
        ky, kx = t // 3, t % 3
        return h[ky: ky + ho, kx: kx + wo, :].reshape(ho * wo, cmid)

    if fold:
        lhs = jnp.concatenate([win(t) for t in range(9)], axis=-1)
        acc = jnp.dot(lhs, w, preferred_element_type=jnp.float32)
    else:
        acc = jnp.zeros((ho * wo, tn), jnp.float32)
        for t in range(9):
            acc = acc + jnp.dot(win(t), w[t], preferred_element_type=jnp.float32)

    if conv_sc:
        off = 1 // s                                 # 1 if s == 1 else 0
        xs = xs_ref[off: off + ho, off: off + wo, :]  # (ho, wo, cin) f32, raw input
        if sc_preact:
            xs = xs * s1_ref[...].reshape(1, 1, -1) + sh1_ref[...].reshape(1, 1, -1)
            xs = _leaky(xs)
        xs = xs.astype(jnp.bfloat16).reshape(ho * wo, xs.shape[-1])
        acc = acc + jnp.dot(xs, wsc_ref[...], preferred_element_type=jnp.float32)

    out = acc.reshape(ho, wo, tn)
    if not conv_sc:
        out = out + res_ref[...]                     # identity shortcut (raw x tile)
    o_ref[...] = out.astype(o_ref.dtype)


# --------------------------- pallas_call wrappers --------------------------- #

def _pick_cout_tile(cout):
    # 256-aligned output-channel tiles feed the v6e/v7x MXU; 128 covers v5e.
    for t in (256, 128):
        if cout % t == 0:
            return t
    return cout


@functools.lru_cache(maxsize=None)
def _vmem_limit_bytes():
    # Generation-aware: ~3/4 of physical VMEM (48 MiB on v7x, 96 MiB on v5e/v6e).
    cap = 64 * 1024 * 1024
    try:
        info = pltpu.get_tpu_info()
        cap = int(getattr(info, "vmem_capacity_bytes", cap) or cap)
    except Exception:
        pass
    return min(cap * 3 // 4, 100 * 1024 * 1024)


def _compiler_params():
    return pltpu.CompilerParams(
        dimension_semantics=("parallel", "parallel"),
        vmem_limit_bytes=_vmem_limit_bytes())


def conv1_bn_lrelu(xph, w1, bn1_scale, bn1_shift, bn2_scale, bn2_shift, *,
                   n, stride, ho, wo, preact):
    nphase, hq, wq, cin = xph.shape
    ss = stride * stride
    assert nphase == n * ss
    k9cin, cout = w1.shape
    assert k9cin == 9 * cin
    tn = _pick_cout_tile(cout)
    ct = cout // tn
    fold = cin < _FOLD_CIN_MAX
    w_arg = w1 if fold else w1.reshape(9, cin, cout)

    # Grid order: keep the bigger operand resident (weights vs whole-image activation).
    weight_bytes = w1.size * 2
    act_bytes = xph.size * 4
    cout_major = ct > 1 and (n - 1) * weight_bytes > (ct - 1) * act_bytes

    def im(f):  # index maps in terms of (batch b, cout-tile j) regardless of grid order
        return (lambda g0, g1: f(g1, g0)) if cout_major else (lambda g0, g1: f(g0, g1))

    in_specs = [pl.BlockSpec((ss, hq, wq, cin), im(lambda b, j: (b, 0, 0, 0)))]
    if fold:
        in_specs.append(pl.BlockSpec((9 * cin, tn), im(lambda b, j: (0, j))))
    else:
        in_specs.append(pl.BlockSpec((9, cin, tn), im(lambda b, j: (0, 0, j))))
    args = [xph, w_arg]
    if preact:
        in_specs += [pl.BlockSpec((1, cin), im(lambda b, j: (0, 0))),
                     pl.BlockSpec((1, cin), im(lambda b, j: (0, 0)))]
        args += [bn1_scale, bn1_shift]
    in_specs += [pl.BlockSpec((1, tn), im(lambda b, j: (0, j))),
                 pl.BlockSpec((1, tn), im(lambda b, j: (0, j)))]
    args += [bn2_scale, bn2_shift]

    grid = (ct, n) if cout_major else (n, ct)
    kern = functools.partial(_conv1_bn_lrelu_kernel, s=stride, ho=ho, wo=wo,
                             preact=preact, fold=fold)
    return pl.pallas_call(
        kern,
        out_shape=jax.ShapeDtypeStruct((n, ho + 2, wo + 2, cout), jnp.bfloat16),
        grid=grid,
        in_specs=in_specs,
        out_specs=pl.BlockSpec((None, ho + 2, wo + 2, tn),
                               im(lambda b, j: (b, 0, 0, j))),
        compiler_params=_compiler_params(),
    )(*args)


def conv2_residual(h1p, w2, *, n, ho, wo, res=None, xph=None, stride=1, wsc=None,
                   bn1_scale=None, bn1_shift=None, sc_preact=False):
    _, hop, wop, cmid = h1p.shape
    k9cmid, cout = w2.shape
    assert k9cmid == 9 * cmid
    tn = _pick_cout_tile(cout)
    ct = cout // tn
    conv_sc = xph is not None
    fold = cmid < _FOLD_CIN_MAX
    w_arg = w2 if fold else w2.reshape(9, cmid, cout)

    weight_bytes = w2.size * 2 + (wsc.size * 2 if conv_sc else 0)
    act_bytes = h1p.size * 2 + (xph.size * 4 if conv_sc else res.size * 4)
    cout_major = ct > 1 and (n - 1) * weight_bytes > (ct - 1) * act_bytes

    def im(f):
        return (lambda g0, g1: f(g1, g0)) if cout_major else (lambda g0, g1: f(g0, g1))

    in_specs = [pl.BlockSpec((None, hop, wop, cmid), im(lambda b, j: (b, 0, 0, 0)))]
    if fold:
        in_specs.append(pl.BlockSpec((9 * cmid, tn), im(lambda b, j: (0, j))))
    else:
        in_specs.append(pl.BlockSpec((9, cmid, tn), im(lambda b, j: (0, 0, j))))
    args = [h1p, w_arg]

    if conv_sc:
        ss = stride * stride
        p_idx = (1 % stride) * stride + (1 % stride)   # phase holding x[::s, ::s]
        nph, hq, wq, cin = xph.shape
        assert nph == n * ss
        in_specs += [
            pl.BlockSpec((None, hq, wq, cin),
                         im(lambda b, j: (b * ss + p_idx, 0, 0, 0))),
            pl.BlockSpec((cin, tn), im(lambda b, j: (0, j)))]
        args += [xph, wsc]
        if sc_preact:
            in_specs += [pl.BlockSpec((1, cin), im(lambda b, j: (0, 0))),
                         pl.BlockSpec((1, cin), im(lambda b, j: (0, 0)))]
            args += [bn1_scale, bn1_shift]
    else:
        in_specs.append(pl.BlockSpec((None, ho, wo, tn), im(lambda b, j: (b, 0, 0, j))))
        args.append(res)

    grid = (ct, n) if cout_major else (n, ct)
    kern = functools.partial(_conv2_residual_kernel, s=stride, ho=ho, wo=wo,
                             fold=fold, conv_sc=conv_sc, sc_preact=sc_preact)
    return pl.pallas_call(
        kern,
        out_shape=jax.ShapeDtypeStruct((n, ho, wo, cout), jnp.float32),
        grid=grid,
        in_specs=in_specs,
        out_specs=pl.BlockSpec((None, ho, wo, tn), im(lambda b, j: (b, 0, 0, j))),
        compiler_params=_compiler_params(),
    )(*args)


# --------------------------------- glue ------------------------------------ #

def _pad_ring(x, pv):
    """Pad a 1-pixel spatial ring with per-channel value `pv` (interior kept bit-exact)."""
    n, h, w, c = x.shape
    pv = jnp.broadcast_to(pv, (1, 1, 1, c)).astype(x.dtype)
    col = jnp.broadcast_to(pv, (n, h, 1, c))
    x = jnp.concatenate([col, x, col], axis=2)
    row = jnp.broadcast_to(pv, (n, 1, w + 2, c))
    return jnp.concatenate([row, x, row], axis=1)


def _to_phases(xp, s):
    """(N,Hp,Wp,C) -> (N*s*s, ceil(Hp/s), ceil(Wp/s), C). Phase p = a*s+b holds rows
    a::s, cols b::s, so every 3x3 tap window of a stride-s conv becomes a contiguous,
    unit-stride slice inside the kernel (no strided loads, no HBM im2col)."""
    n, hp, wp, c = xp.shape
    if s == 1:
        return xp
    hq = -(-hp // s)
    wq = -(-wp // s)
    xp = jnp.pad(xp, ((0, 0), (0, hq * s - hp), (0, wq * s - wp), (0, 0)))
    x6 = xp.reshape(n, hq, s, wq, s, c).transpose(0, 2, 4, 1, 3, 5)
    return x6.reshape(n * s * s, hq, wq, c)


def basic_block_forward(x, p, stride, equal_in_out, activate_before_residual):
    """One pre-activation BasicBlock. x: (N,H,W,Cin) NHWC float32."""
    n, h, w, cin = x.shape
    cout = p["w1"].shape[-1]
    # Guard the phasing trick against ragged spatial sizes (see correctness review).
    assert stride == 1 or (h % stride == 0 and w % stride == 0), (h, w, stride)
    ho = (h - 1) // stride + 1
    wo = (w - 1) // stride + 1
    preact = equal_in_out or activate_before_residual

    # Pad ring with the per-channel value that maps to ~0 after the in-kernel BN1
    # affine + LeakyReLU (equivalent to zero-padding AFTER the pre-activation, matching
    # the PyTorch ordering). Safe divide guards against folded BN scales near zero.
    if preact:
        scale = p["bn1_scale"]
        safe = jnp.sign(scale) * jnp.maximum(jnp.abs(scale), 1e-6)
        safe = jnp.where(safe == 0, 1e-6, safe)
        pv = -p["bn1_shift"] / safe
    else:
        pv = jnp.zeros((1, cin), jnp.float32)
    xp = _pad_ring(x, pv.reshape(1, 1, 1, cin))
    xph = _to_phases(xp, stride)

    # kernel A: [BN1 + LReLU] -> conv1(3x3, stride) -> BN2 + LReLU, writes pre-padded
    # bf16 h1 (zero ring) directly -- no separate XLA pad pass.
    h1p = conv1_bn_lrelu(xph, p["w1"], p["bn1_scale"], p["bn1_shift"],
                         p["bn2_scale"], p["bn2_shift"],
                         n=n, stride=stride, ho=ho, wo=wo, preact=preact)
    # TODO(synk): F.dropout for drop_rate > 0 not implemented (drop_rate == 0.0 here).

    # kernel B: conv2(3x3) + shortcut + residual add, fused.
    if equal_in_out:
        assert stride == 1, "identity shortcut requires stride 1 (as in the PyTorch code)"
        out = conv2_residual(h1p, p["w2"], n=n, ho=ho, wo=wo, res=x)
    else:
        out = conv2_residual(h1p, p["w2"], n=n, ho=ho, wo=wo,
                             xph=xph, stride=stride, wsc=p["wsc"],
                             bn1_scale=p["bn1_scale"], bn1_shift=p["bn1_shift"],
                             sc_preact=activate_before_residual)
    return out


def network_block_forward(x_nchw, layer_params, stride, activate_before_residual):
    # NHWC inside the kernels; NCHW at the public interface (PyTorch convention).
    x = jnp.transpose(x_nchw, (0, 2, 3, 1)).astype(jnp.float32)
    for i, p in enumerate(layer_params):
        s = stride if i == 0 else 1
        cin = p["bn1_scale"].shape[1]
        cout = p["bn2_scale"].shape[1]
        x = basic_block_forward(x, p, s, cin == cout, activate_before_residual)
    return jnp.transpose(x, (0, 3, 1, 2))


# ------------------------- deterministic parameters ------------------------ #

def init_basic_block_params(key, cin, cout):
    ks = jax.random.split(key, 12)

    def conv_w(k, co, ci, kh, kw):
        fan = ci * kh * kw
        return jax.random.normal(k, (co, ci, kh, kw), jnp.float32) * jnp.sqrt(2.0 / fan)

    def bn_fold(kg, kb, km, kv, c):
        gamma = 1.0 + 0.1 * jax.random.normal(kg, (c,), jnp.float32)
        beta = 0.1 * jax.random.normal(kb, (c,), jnp.float32)
        mean = 0.1 * jax.random.normal(km, (c,), jnp.float32)
        var = jax.random.uniform(kv, (c,), jnp.float32, minval=0.5, maxval=1.5)
        scale = gamma / jnp.sqrt(var + 1e-5)
        shift = beta - mean * scale
        return scale.reshape(1, c), shift.reshape(1, c)

    p = {}
    p["w1_oihw"] = conv_w(ks[0], cout, cin, 3, 3)
    p["w2_oihw"] = conv_w(ks[1], cout, cout, 3, 3)
    # kernel layout: rows = tap-major (ky*3+kx)*cin + i, cols = cout; stored bf16.
    p["w1"] = jnp.transpose(p["w1_oihw"], (2, 3, 1, 0)).reshape(9 * cin, cout).astype(jnp.bfloat16)
    p["w2"] = jnp.transpose(p["w2_oihw"], (2, 3, 1, 0)).reshape(9 * cout, cout).astype(jnp.bfloat16)
    p["bn1_scale"], p["bn1_shift"] = bn_fold(ks[2], ks[3], ks[4], ks[5], cin)
    p["bn2_scale"], p["bn2_shift"] = bn_fold(ks[6], ks[7], ks[8], ks[9], cout)
    if cin != cout:
        p["wsc_oihw"] = conv_w(ks[10], cout, cin, 1, 1)
        p["wsc"] = p["wsc_oihw"][:, :, 0, 0].T.astype(jnp.bfloat16)   # (cin, cout)
    return p


def init_network_block_params(key, nb_layers, in_planes, out_planes):
    layers = []
    for i in range(nb_layers):
        cin = in_planes if i == 0 else out_planes
        layers.append(init_basic_block_params(jax.random.fold_in(key, i), cin, out_planes))
    return layers


# ------------------------- pure-JAX references (check) ---------------------- #

def _ref_bn_lrelu(x, scale, shift):
    y = x * scale.reshape(1, 1, 1, -1) + shift.reshape(1, 1, 1, -1)
    return jnp.where(y >= 0, y, NEG_SLOPE * y)


def _ref_conv_f32(x, w_oihw, stride, pad):
    return jax.lax.conv_general_dilated(
        x, jnp.transpose(w_oihw, (2, 3, 1, 0)),
        window_strides=(stride, stride), padding=[(pad, pad), (pad, pad)],
        dimension_numbers=("NHWC", "HWIO", "NHWC"),
        precision=jax.lax.Precision.HIGHEST)


def _ref_conv_bf16(x, w_oihw, stride, pad):
    # matches kernel numerics: bf16 MXU operands, f32 accumulation
    return jax.lax.conv_general_dilated(
        x.astype(jnp.bfloat16),
        jnp.transpose(w_oihw, (2, 3, 1, 0)).astype(jnp.bfloat16),
        window_strides=(stride, stride), padding=[(pad, pad), (pad, pad)],
        dimension_numbers=("NHWC", "HWIO", "NHWC"),
        preferred_element_type=jnp.float32)


def reference_basic_block(x, p, stride, equal, abr, conv_fn, quant_h=False):
    if (not equal) and abr:
        x = _ref_bn_lrelu(x, p["bn1_scale"], p["bn1_shift"])
        out = x
    else:
        out = _ref_bn_lrelu(x, p["bn1_scale"], p["bn1_shift"])
    out = conv_fn(out if equal else x, p["w1_oihw"], stride, 1)
    out = _ref_bn_lrelu(out, p["bn2_scale"], p["bn2_shift"])
    if quant_h:   # kernel stores the conv1->conv2 intermediate in bf16
        out = out.astype(jnp.bfloat16).astype(jnp.float32)
    out = conv_fn(out, p["w2_oihw"], 1, 1)
    shortcut = x if equal else conv_fn(x, p["wsc_oihw"], stride, 0)
    return shortcut + out


def reference_network_block(x_nchw, layer_params, stride, abr, conv_fn, quant_h=False):
    x = jnp.transpose(x_nchw, (0, 2, 3, 1)).astype(jnp.float32)
    for i, p in enumerate(layer_params):
        s = stride if i == 0 else 1
        equal = p["bn1_scale"].shape[1] == p["bn2_scale"].shape[1]
        x = reference_basic_block(x, p, s, equal, abr, conv_fn, quant_h)
    return jnp.transpose(x, (0, 3, 1, 2))


# ----------------------------------- main ----------------------------------- #

if __name__ == "__main__":
    # NetworkBlock(nb_layers=2, in_planes=4, out_planes=8, block=BasicBlock,
    #              stride=2, drop_rate=0.0, activate_before_residual=True)
    nb_layers, in_planes, out_planes, stride, abr = 2, 4, 8, 2, True

    key = jax.random.PRNGKey(0)
    params = init_network_block_params(key, nb_layers, in_planes, out_planes)

    x = jax.random.normal(jax.random.fold_in(key, 1234),
                          (2, in_planes, 16, 16), jnp.float32)   # NCHW like PyTorch

    fwd = jax.jit(functools.partial(network_block_forward, stride=stride,
                                    activate_before_residual=abr))
    out = jax.block_until_ready(fwd(x, params))

    assert out.shape == (2, out_planes, 8, 8), out.shape

    # Check vs a matched-precision reference (bf16 MXU operands + bf16 intermediate,
    # f32 accumulation). Small slack for differing f32 accumulation orders near bf16
    # rounding boundaries.
    ref_bf16 = reference_network_block(x, params, stride, abr, _ref_conv_bf16, quant_h=True)
    err_bf16 = float(jnp.max(jnp.abs(out - ref_bf16)))
    if not bool(jnp.allclose(out, ref_bf16, atol=2e-2, rtol=2e-2)):
        raise AssertionError(f"mismatch vs matched-precision reference, max err {err_bf16}")

    # Loose sanity check vs the full-f32 module semantics (bf16 quantization noise only).
    ref_f32 = reference_network_block(x, params, stride, abr, _ref_conv_f32)
    err_f32 = float(jnp.max(jnp.abs(out - ref_f32)))
    if not bool(jnp.allclose(out, ref_f32, atol=0.25, rtol=0.25)):
        raise AssertionError(f"mismatch vs f32 reference, max err {err_f32}")

    print("KERNEL_OK")
</pallas_src>

<mosaic_0001>
module attributes {stable_mosaic.version = 11 : i64} {
  func.func @_conv1_bn_lrelu_kernel(%arg0: i32, %arg1: i32, %arg2: memref<4x9x9x4xf32, #tpu.memory_space<vmem>>, %arg3: memref<36x8xbf16, #tpu.memory_space<vmem>>, %arg4: memref<1x4xf32, #tpu.memory_space<vmem>>, %arg5: memref<1x4xf32, #tpu.memory_space<vmem>>, %arg6: memref<1x8xf32, #tpu.memory_space<vmem>>, %arg7: memref<1x8xf32, #tpu.memory_space<vmem>>, %arg8: memref<1x10x10x8xbf16, #tpu.memory_space<vmem>>) attributes {dimension_semantics = [#tpu.dimension_semantics<parallel>, #tpu.dimension_semantics<parallel>], iteration_bounds = array<i64: 2, 1>, scalar_prefetch = 0 : i64, scratch_operands = 0 : i64, tpu.core_type = #tpu.core_type<tc>, window_params = [{transform_indices = @transform_0, window_bounds = array<i64: 4, 9, 9, 4>}, {transform_indices = @transform_1, window_bounds = array<i64: 36, 8>}, {pipeline_mode = #tpu.pipeline_mode<synchronous>, transform_indices = @transform_2, window_bounds = array<i64: 1, 4>}, {pipeline_mode = #tpu.pipeline_mode<synchronous>, transform_indices = @transform_3, window_bounds = array<i64: 1, 4>}, {transform_indices = @transform_4, window_bounds = array<i64: 1, 8>}, {transform_indices = @transform_5, window_bounds = array<i64: 1, 8>}, {transform_indices = @transform_6, window_bounds = array<i64: 1, 10, 10, 8>}]} {
    %c0 = arith.constant 0 : index
    %c0_0 = arith.constant 0 : index
    %c0_1 = arith.constant 0 : index
    %c0_2 = arith.constant 0 : index
    %0 = vector.load %arg2[%c0, %c0_0, %c0_1, %c0_2] : memref<4x9x9x4xf32, #tpu.memory_space<vmem>>, vector<4x9x9x4xf32>
    %c0_3 = arith.constant 0 : index
    %c0_4 = arith.constant 0 : index
    %1 = vector.load %arg4[%c0_3, %c0_4] : memref<1x4xf32, #tpu.memory_space<vmem>>, vector<1x4xf32>
    %2 = vector.shape_cast %1 : vector<1x4xf32> to vector<1x1x1x4xf32>
    %3 = vector.broadcast %2 : vector<1x1x1x4xf32> to vector<4x9x9x4xf32>
    %4 = arith.mulf %0, %3 : vector<4x9x9x4xf32>
    %c0_5 = arith.constant 0 : index
    %c0_6 = arith.constant 0 : index
    %5 = vector.load %arg5[%c0_5, %c0_6] : memref<1x4xf32, #tpu.memory_space<vmem>>, vector<1x4xf32>
    %6 = vector.shape_cast %5 : vector<1x4xf32> to vector<1x1x1x4xf32>
    %7 = vector.broadcast %6 : vector<1x1x1x4xf32> to vector<4x9x9x4xf32>
    %8 = arith.addf %4, %7 : vector<4x9x9x4xf32>
    %cst = arith.constant 1.000000e-01 : f32
    %9 = vector.broadcast %cst : f32 to vector<4x9x9x4xf32>
    %10 = arith.mulf %9, %8 : vector<4x9x9x4xf32>
    %11 = arith.maximumf %8, %10 : vector<4x9x9x4xf32>
    %12 = arith.truncf %11 : vector<4x9x9x4xf32> to vector<4x9x9x4xbf16>
    %c0_7 = arith.constant 0 : index
    %c0_8 = arith.constant 0 : index
    %13 = vector.load %arg3[%c0_7, %c0_8] : memref<36x8xbf16, #tpu.memory_space<vmem>>, vector<36x8xbf16>
    %14 = vector.extract_strided_slice %12 {offsets = [0, 0, 0, 0], sizes = [1, 8, 8, 4], strides = [1, 1, 1, 1]} : vector<4x9x9x4xbf16> to vector<1x8x8x4xbf16>
    %15 = vector.shape_cast %14 : vector<1x8x8x4xbf16> to vector<8x8x4xbf16>
    %16 = vector.shape_cast %15 : vector<8x8x4xbf16> to vector<64x4xbf16>
    %17 = vector.extract_strided_slice %12 {offsets = [1, 0, 0, 0], sizes = [1, 8, 8, 4], strides = [1, 1, 1, 1]} : vector<4x9x9x4xbf16> to vector<1x8x8x4xbf16>
    %18 = vector.shape_cast %17 : vector<1x8x8x4xbf16> to vector<8x8x4xbf16>
    %19 = vector.shape_cast %18 : vector<8x8x4xbf16> to vector<64x4xbf16>
    %20 = vector.extract_strided_slice %12 {offsets = [0, 0, 1, 0], sizes = [1, 8, 8, 4], strides = [1, 1, 1, 1]} : vector<4x9x9x4xbf16> to vector<1x8x8x4xbf16>
    %21 = vector.shape_cast %20 : vector<1x8x8x4xbf16> to vector<8x8x4xbf16>
    %22 = vector.shape_cast %21 : vector<8x8x4xbf16> to vector<64x4xbf16>
    %23 = vector.extract_strided_slice %12 {offsets = [2, 0, 0, 0], sizes = [1, 8, 8, 4], strides = [1, 1, 1, 1]} : vector<4x9x9x4xbf16> to vector<1x8x8x4xbf16>
    %24 = vector.shape_cast %23 : vector<1x8x8x4xbf16> to vector<8x8x4xbf16>
    %25 = vector.shape_cast %24 : vector<8x8x4xbf16> to vector<64x4xbf16>
    %26 = vector.extract_strided_slice %12 {offsets = [3, 0, 0, 0], sizes = [1, 8, 8, 4], strides = [1, 1, 1, 1]} : vector<4x9x9x4xbf16> to vector<1x8x8x4xbf16>
    %27 = vector.shape_cast %26 : vector<1x8x8x4xbf16> to vector<8x8x4xbf16>
    %28 = vector.shape_cast %27 : vector<8x8x4xbf16> to vector<64x4xbf16>
    %29 = vector.extract_strided_slice %12 {offsets = [2, 0, 1, 0], sizes = [1, 8, 8, 4], strides = [1, 1, 1, 1]} : vector<4x9x9x4xbf16> to vector<1x8x8x4xbf16>
    %30 = vector.shape_cast %29 : vector<1x8x8x4xbf16> to vector<8x8x4xbf16>
    %31 = vector.shape_cast %30 : vector<8x8x4xbf16> to vector<64x4xbf16>
    %32 = vector.extract_strided_slice %12 {offsets = [0, 1, 0, 0], sizes = [1, 8, 8, 4], strides = [1, 1, 1, 1]} : vector<4x9x9x4xbf16> to vector<1x8x8x4xbf16>
    %33 = vector.shape_cast %32 : vector<1x8x8x4xbf16> to vector<8x8x4xbf16>
    %34 = vector.shape_cast %33 : vector<8x8x4xbf16> to vector<64x4xbf16>
    %35 = vector.extract_strided_slice %12 {offsets = [1, 1, 0, 0], sizes = [1, 8, 8, 4], strides = [1, 1, 1, 1]} : vector<4x9x9x4xbf16> to vector<1x8x8x4xbf16>
    %36 = vector.shape_cast %35 : vector<1x8x8x4xbf16> to vector<8x8x4xbf16>
    %37 = vector.shape_cast %36 : vector<8x8x4xbf16> to vector<64x4xbf16>
    %38 = vector.extract_strided_slice %12 {offsets = [0, 1, 1, 0], sizes = [1, 8, 8, 4], strides = [1, 1, 1, 1]} : vector<4x9x9x4xbf16> to vector<1x8x8x4xbf16>
    %39 = vector.shape_cast %38 : vector<1x8x8x4xbf16> to vector<8x8x4xbf16>
    %40 = vector.shape_cast %39 : vector<8x8x4xbf16> to vector<64x4xbf16>
    %41 = tpu.concatenate %16, %19, %22, %25, %28, %31, %34, %37, %40 in 1 : vector<64x4xbf16>, vector<64x4xbf16>, vector<64x4xbf16>, vector<64x4xbf16>, vector<64x4xbf16>, vector<64x4xbf16>, vector<64x4xbf16>, vector<64x4xbf16>, vector<64x4xbf16> -> vector<64x36xbf16>
    %cst_9 = arith.constant dense<0.000000e+00> : vector<64x8xf32>
    %42 = tpu.matmul %41, %13, %cst_9 {dimension_numbers = #tpu.dot_dimension_numbers<[1], [0], [0], [1], [0, 0, 1, 1], [], []>} : vector<64x36xbf16>, vector<36x8xbf16>, vector<64x8xf32> -> vector<64x8xf32>
    %c0_10 = arith.constant 0 : index
    %c0_11 = arith.constant 0 : index
    %43 = vector.load %arg6[%c0_10, %c0_11] : memref<1x8xf32, #tpu.memory_space<vmem>>, vector<1x8xf32>
    %44 = vector.broadcast %43 : vector<1x8xf32> to vector<64x8xf32>
    %45 = arith.mulf %42, %44 : vector<64x8xf32>
    %c0_12 = arith.constant 0 : index
    %c0_13 = arith.constant 0 : index
    %46 = vector.load %arg7[%c0_12, %c0_13] : memref<1x8xf32, #tpu.memory_space<vmem>>, vector<1x8xf32>
    %47 = vector.broadcast %46 : vector<1x8xf32> to vector<64x8xf32>
    %48 = arith.addf %45, %47 : vector<64x8xf32>
    %cst_14 = arith.constant 1.000000e-01 : f32
    %49 = vector.broadcast %cst_14 : f32 to vector<64x8xf32>
    %50 = arith.mulf %49, %48 : vector<64x8xf32>
    %51 = arith.maximumf %48, %50 : vector<64x8xf32>
    %52 = vector.shape_cast %51 : vector<64x8xf32> to vector<8x8x8xf32>
    %cst_15 = arith.constant 0.000000e+00 : f32
    %53 = vector.broadcast %cst_15 : f32 to vector<8x1x8xf32>
    %54 = tpu.concatenate %53, %52, %53 in 1 : vector<8x1x8xf32>, vector<8x8x8xf32>, vector<8x1x8xf32> -> vector<8x10x8xf32>
    %cst_16 = arith.constant 0.000000e+00 : f32
    %55 = vector.broadcast %cst_16 : f32 to vector<1x10x8xf32>
    %56 = tpu.concatenate %55, %54, %55 in 0 : vector<1x10x8xf32>, vector<8x10x8xf32>, vector<1x10x8xf32> -> vector<10x10x8xf32>
    %57 = arith.truncf %56 : vector<10x10x8xf32> to vector<10x10x8xbf16>
    %c0_17 = arith.constant 0 : index
    %c0_18 = arith.constant 0 : index
    %c0_19 = arith.constant 0 : index
    %c0_20 = arith.constant 0 : index
    %58 = vector.load %arg8[%c0_17, %c0_18, %c0_19, %c0_20] : memref<1x10x10x8xbf16, #tpu.memory_space<vmem>>, vector<1x10x10x8xbf16>
    %59 = vector.shape_cast %58 : vector<1x10x10x8xbf16> to vector<10x10x8xbf16>
    %60 = vector.shape_cast %57 : vector<10x10x8xbf16> to vector<1x10x10x8xbf16>
    tpu.vector_store %arg8[%c0_17, %c0_18, %c0_19, %c0_20], %60 {strides = array<i32>} : memref<1x10x10x8xbf16, #tpu.memory_space<vmem>>, vector<1x10x10x8xbf16>,
    return
  }
  func.func @transform_0(%arg0: i32, %arg1: i32) -> (i32, i32, i32, i32) {
    %c0_i32 = arith.constant 0 : i32
    %c0_i32_0 = arith.constant 0 : i32
    %c0_i32_1 = arith.constant 0 : i32
    %c0_i32_2 = arith.constant 0 : i32
    return %arg0, %c0_i32, %c0_i32_0, %c0_i32_1 : i32, i32, i32, i32
  }
  func.func @transform_1(%arg0: i32, %arg1: i32) -> (i32, i32) {
    %c0_i32 = arith.constant 0 : i32
    %c0_i32_0 = arith.constant 0 : i32
    return %c0_i32, %arg1 : i32, i32
  }
  func.func @transform_2(%arg0: i32, %arg1: i32) -> (i32, i32) {
    %c0_i32 = arith.constant 0 : i32
    %c0_i32_0 = arith.constant 0 : i32
    %c0_i32_1 = arith.constant 0 : i32
    return %c0_i32, %c0_i32_0 : i32, i32
  }
  func.func @transform_3(%arg0: i32, %arg1: i32) -> (i32, i32) {
    %c0_i32 = arith.constant 0 : i32
    %c0_i32_0 = arith.constant 0 : i32
    %c0_i32_1 = arith.constant 0 : i32
    return %c0_i32, %c0_i32_0 : i32, i32
  }
  func.func @transform_4(%arg0: i32, %arg1: i32) -> (i32, i32) {
    %c0_i32 = arith.constant 0 : i32
    %c0_i32_0 = arith.constant 0 : i32
    return %c0_i32, %arg1 : i32, i32
  }
  func.func @transform_5(%arg0: i32, %arg1: i32) -> (i32, i32) {
    %c0_i32 = arith.constant 0 : i32
    %c0_i32_0 = arith.constant 0 : i32
    return %c0_i32, %arg1 : i32, i32
  }
  func.func @transform_6(%arg0: i32, %arg1: i32) -> (i32, i32, i32, i32) {
    %c0_i32 = arith.constant 0 : i32
    %c0_i32_0 = arith.constant 0 : i32
    %c0_i32_1 = arith.constant 0 : i32
    return %arg0, %c0_i32, %c0_i32_0, %arg1 : i32, i32, i32, i32
  }
}

module attributes {stable_mosaic.version = 11 : i64} {
  func.func @_conv2_residual_kernel(%arg0: i32, %arg1: i32, %arg2: memref<1x10x10x8xbf16, #tpu.memory_space<vmem>>, %arg3: memref<72x8xbf16, #tpu.memory_space<vmem>>, %arg4: memref<1x9x9x4xf32, #tpu.memory_space<vmem>>, %arg5: memref<4x8xbf16, #tpu.memory_space<vmem>>, %arg6: memref<1x4xf32, #tpu.memory_space<vmem>>, %arg7: memref<1x4xf32, #tpu.memory_space<vmem>>, %arg8: memref<1x8x8x8xf32, #tpu.memory_space<vmem>>) attributes {dimension_semantics = [#tpu.dimension_semantics<parallel>, #tpu.dimension_semantics<parallel>], iteration_bounds = array<i64: 2, 1>, scalar_prefetch = 0 : i64, scratch_operands = 0 : i64, tpu.core_type = #tpu.core_type<tc>, window_params = [{transform_indices = @transform_0, window_bounds = array<i64: 1, 10, 10, 8>}, {transform_indices = @transform_1, window_bounds = array<i64: 72, 8>}, {transform_indices = @transform_2, window_bounds = array<i64: 1, 9, 9, 4>}, {transform_indices = @transform_3, window_bounds = array<i64: 4, 8>}, {pipeline_mode = #tpu.pipeline_mode<synchronous>, transform_indices = @transform_4, window_bounds = array<i64: 1, 4>}, {pipeline_mode = #tpu.pipeline_mode<synchronous>, transform_indices = @transform_5, window_bounds = array<i64: 1, 4>}, {transform_indices = @transform_6, window_bounds = array<i64: 1, 8, 8, 8>}]} {
    %c0 = arith.constant 0 : index
    %c0_0 = arith.constant 0 : index
    %c0_1 = arith.constant 0 : index
    %c0_2 = arith.constant 0 : index
    %0 = vector.load %arg2[%c0, %c0_0, %c0_1, %c0_2] : memref<1x10x10x8xbf16, #tpu.memory_space<vmem>>, vector<1x10x10x8xbf16>
    %1 = vector.shape_cast %0 : vector<1x10x10x8xbf16> to vector<10x10x8xbf16>
    %c0_3 = arith.constant 0 : index
    %c0_4 = arith.constant 0 : index
    %2 = vector.load %arg3[%c0_3, %c0_4] : memref<72x8xbf16, #tpu.memory_space<vmem>>, vector<72x8xbf16>
    %3 = vector.extract_strided_slice %1 {offsets = [0, 0, 0], sizes = [8, 8, 8], strides = [1, 1, 1]} : vector<10x10x8xbf16> to vector<8x8x8xbf16>
    %4 = vector.shape_cast %3 : vector<8x8x8xbf16> to vector<64x8xbf16>
    %5 = vector.extract_strided_slice %1 {offsets = [0, 1, 0], sizes = [8, 8, 8], strides = [1, 1, 1]} : vector<10x10x8xbf16> to vector<8x8x8xbf16>
    %6 = vector.shape_cast %5 : vector<8x8x8xbf16> to vector<64x8xbf16>
    %7 = vector.extract_strided_slice %1 {offsets = [0, 2, 0], sizes = [8, 8, 8], strides = [1, 1, 1]} : vector<10x10x8xbf16> to vector<8x8x8xbf16>
    %8 = vector.shape_cast %7 : vector<8x8x8xbf16> to vector<64x8xbf16>
    %9 = vector.extract_strided_slice %1 {offsets = [1, 0, 0], sizes = [8, 8, 8], strides = [1, 1, 1]} : vector<10x10x8xbf16> to vector<8x8x8xbf16>
    %10 = vector.shape_cast %9 : vector<8x8x8xbf16> to vector<64x8xbf16>
    %11 = vector.extract_strided_slice %1 {offsets = [1, 1, 0], sizes = [8, 8, 8], strides = [1, 1, 1]} : vector<10x10x8xbf16> to vector<8x8x8xbf16>
    %12 = vector.shape_cast %11 : vector<8x8x8xbf16> to vector<64x8xbf16>
    %13 = vector.extract_strided_slice %1 {offsets = [1, 2, 0], sizes = [8, 8, 8], strides = [1, 1, 1]} : vector<10x10x8xbf16> to vector<8x8x8xbf16>
    %14 = vector.shape_cast %13 : vector<8x8x8xbf16> to vector<64x8xbf16>
    %15 = vector.extract_strided_slice %1 {offsets = [2, 0, 0], sizes = [8, 8, 8], strides = [1, 1, 1]} : vector<10x10x8xbf16> to vector<8x8x8xbf16>
    %16 = vector.shape_cast %15 : vector<8x8x8xbf16> to vector<64x8xbf16>
    %17 = vector.extract_strided_slice %1 {offsets = [2, 1, 0], sizes = [8, 8, 8], strides = [1, 1, 1]} : vector<10x10x8xbf16> to vector<8x8x8xbf16>
    %18 = vector.shape_cast %17 : vector<8x8x8xbf16> to vector<64x8xbf16>
    %19 = vector.extract_strided_slice %1 {offsets = [2, 2, 0], sizes = [8, 8, 8], strides = [1, 1, 1]} : vector<10x10x8xbf16> to vector<8x8x8xbf16>
    %20 = vector.shape_cast %19 : vector<8x8x8xbf16> to vector<64x8xbf16>
    %21 = tpu.concatenate %4, %6, %8, %10, %12, %14, %16, %18, %20 in 1 : vector<64x8xbf16>, vector<64x8xbf16>, vector<64x8xbf16>, vector<64x8xbf16>, vector<64x8xbf16>, vector<64x8xbf16>, vector<64x8xbf16>, vector<64x8xbf16>, vector<64x8xbf16> -> vector<64x72xbf16>
    %cst = arith.constant dense<0.000000e+00> : vector<64x8xf32>
    %22 = tpu.matmul %21, %2, %cst {dimension_numbers = #tpu.dot_dimension_numbers<[1], [0], [0], [1], [0, 0, 1, 1], [], []>} : vector<64x72xbf16>, vector<72x8xbf16>, vector<64x8xf32> -> vector<64x8xf32>
    %c0_5 = arith.constant 0 : index
    %c0_6 = arith.constant 0 : index
    %c0_7 = arith.constant 0 : index
    %c0_8 = arith.constant 0 : index
    %23 = vector.load %arg4[%c0_5, %c0_6, %c0_7, %c0_8] : memref<1x9x9x4xf32, #tpu.memory_space<vmem>>, vector<1x8x8x4xf32>
    %24 = vector.shape_cast %23 : vector<1x8x8x4xf32> to vector<8x8x4xf32>
    %c0_9 = arith.constant 0 : index
    %c0_10 = arith.constant 0 : index
    %25 = vector.load %arg6[%c0_9, %c0_10] : memref<1x4xf32, #tpu.memory_space<vmem>>, vector<1x4xf32>
    %26 = vector.shape_cast %25 : vector<1x4xf32> to vector<1x1x4xf32>
    %27 = vector.broadcast %26 : vector<1x1x4xf32> to vector<8x8x4xf32>
    %28 = arith.mulf %24, %27 : vector<8x8x4xf32>
    %c0_11 = arith.constant 0 : index
    %c0_12 = arith.constant 0 : index
    %29 = vector.load %arg7[%c0_11, %c0_12] : memref<1x4xf32, #tpu.memory_space<vmem>>, vector<1x4xf32>
    %30 = vector.shape_cast %29 : vector<1x4xf32> to vector<1x1x4xf32>
    %31 = vector.broadcast %30 : vector<1x1x4xf32> to vector<8x8x4xf32>
    %32 = arith.addf %28, %31 : vector<8x8x4xf32>
    %cst_13 = arith.constant 1.000000e-01 : f32
    %33 = vector.broadcast %cst_13 : f32 to vector<8x8x4xf32>
    %34 = arith.mulf %33, %32 : vector<8x8x4xf32>
    %35 = arith.maximumf %32, %34 : vector<8x8x4xf32>
    %36 = arith.truncf %35 : vector<8x8x4xf32> to vector<8x8x4xbf16>
    %37 = vector.shape_cast %36 : vector<8x8x4xbf16> to vector<64x4xbf16>
    %c0_14 = arith.constant 0 : index
    %c0_15 = arith.constant 0 : index
    %38 = vector.load %arg5[%c0_14, %c0_15] : memref<4x8xbf16, #tpu.memory_space<vmem>>, vector<4x8xbf16>
    %cst_16 = arith.constant dense<0.000000e+00> : vector<64x8xf32>
    %39 = tpu.matmul %37, %38, %cst_16 {dimension_numbers = #tpu.dot_dimension_numbers<[1], [0], [0], [1], [0, 0, 1, 1], [], []>} : vector<64x4xbf16>, vector<4x8xbf16>, vector<64x8xf32> -> vector<64x8xf32>
    %40 = arith.addf %22, %39 : vector<64x8xf32>
    %41 = vector.shape_cast %40 : vector<64x8xf32> to vector<8x8x8xf32>
    %c0_17 = arith.constant 0 : index
    %c0_18 = arith.constant 0 : index
    %c0_19 = arith.constant 0 : index
    %c0_20 = arith.constant 0 : index
    %42 = vector.load %arg8[%c0_17, %c0_18, %c0_19, %c0_20] : memref<1x8x8x8xf32, #tpu.memory_space<vmem>>, vector<1x8x8x8xf32>
    %43 = vector.shape_cast %42 : vector<1x8x8x8xf32> to vector<8x8x8xf32>
    %44 = vector.shape_cast %41 : vector<8x8x8xf32> to vector<1x8x8x8xf32>
    tpu.vector_store %arg8[%c0_17, %c0_18, %c0_19, %c0_20], %44 {strides = array<i32>} : memref<1x8x8x8xf32, #tpu.memory_space<vmem>>, vector<1x8x8x8xf32>,
    return
  }
  func.func @transform_0(%arg0: i32, %arg1: i32) -> (i32, i32, i32, i32) {
    %c0_i32 = arith.constant 0 : i32
    %c0_i32_0 = arith.constant 0 : i32
    %c0_i32_1 = arith.constant 0 : i32
    %c0_i32_2 = arith.constant 0 : i32
    return %arg0, %c0_i32, %c0_i32_0, %c0_i32_1 : i32, i32, i32, i32
  }
  func.func @transform_1(%arg0: i32, %arg1: i32) -> (i32, i32) {
    %c0_i32 = arith.constant 0 : i32
    %c0_i32_0 = arith.constant 0 : i32
    return %c0_i32, %arg1 : i32, i32
  }
  func.func @transform_2(%arg0: i32, %arg1: i32) -> (i32, i32, i32, i32) {
    %c4_i32 = arith.constant 4 : i32
    %0 = arith.muli %arg0, %c4_i32 : i32
    %c3_i32 = arith.constant 3 : i32
    %1 = arith.addi %0, %c3_i32 : i32
    %c0_i32 = arith.constant 0 : i32
    %c0_i32_0 = arith.constant 0 : i32
    %c0_i32_1 = arith.constant 0 : i32
    %c0_i32_2 = arith.constant 0 : i32
    return %1, %c0_i32, %c0_i32_0, %c0_i32_1 : i32, i32, i32, i32
  }
  func.func @transform_3(%arg0: i32, %arg1: i32) -> (i32, i32) {
    %c0_i32 = arith.constant 0 : i32
    %c0_i32_0 = arith.constant 0 : i32
    return %c0_i32, %arg1 : i32, i32
  }
  func.func @transform_4(%arg0: i32, %arg1: i32) -> (i32, i32) {
    %c0_i32 = arith.constant 0 : i32
    %c0_i32_0 = arith.constant 0 : i32
    %c0_i32_1 = arith.constant 0 : i32
    return %c0_i32, %c0_i32_0 : i32, i32
  }
  func.func @transform_5(%arg0: i32, %arg1: i32) -> (i32, i32) {
    %c0_i32 = arith.constant 0 : i32
    %c0_i32_0 = arith.constant 0 : i32
    %c0_i32_1 = arith.constant 0 : i32
    return %c0_i32, %c0_i32_0 : i32, i32
  }
  func.func @transform_6(%arg0: i32, %arg1: i32) -> (i32, i32, i32, i32) {
    %c0_i32 = arith.constant 0 : i32
    %c0_i32_0 = arith.constant 0 : i32
    %c0_i32_1 = arith.constant 0 : i32
    return %arg0, %c0_i32, %c0_i32_0, %arg1 : i32, i32, i32, i32
  }
}

module attributes {stable_mosaic.version = 11 : i64} {
  func.func @_conv1_bn_lrelu_kernel(%arg0: i32, %arg1: i32, %arg2: memref<1x10x10x8xf32, #tpu.memory_space<vmem>>, %arg3: memref<72x8xbf16, #tpu.memory_space<vmem>>, %arg4: memref<1x8xf32, #tpu.memory_space<vmem>>, %arg5: memref<1x8xf32, #tpu.memory_space<vmem>>, %arg6: memref<1x8xf32, #tpu.memory_space<vmem>>, %arg7: memref<1x8xf32, #tpu.memory_space<vmem>>, %arg8: memref<1x10x10x8xbf16, #tpu.memory_space<vmem>>) attributes {dimension_semantics = [#tpu.dimension_semantics<parallel>, #tpu.dimension_semantics<parallel>], iteration_bounds = array<i64: 2, 1>, scalar_prefetch = 0 : i64, scratch_operands = 0 : i64, tpu.core_type = #tpu.core_type<tc>, window_params = [{transform_indices = @transform_0, window_bounds = array<i64: 1, 10, 10, 8>}, {transform_indices = @transform_1, window_bounds = array<i64: 72, 8>}, {pipeline_mode = #tpu.pipeline_mode<synchronous>, transform_indices = @transform_2, window_bounds = array<i64: 1, 8>}, {pipeline_mode = #tpu.pipeline_mode<synchronous>, transform_indices = @transform_3, window_bounds = array<i64: 1, 8>}, {transform_indices = @transform_4, window_bounds = array<i64: 1, 8>}, {transform_indices = @transform_5, window_bounds = array<i64: 1, 8>}, {transform_indices = @transform_6, window_bounds = array<i64: 1, 10, 10, 8>}]} {
    %c0 = arith.constant 0 : index
    %c0_0 = arith.constant 0 : index
    %c0_1 = arith.constant 0 : index
    %c0_2 = arith.constant 0 : index
    %0 = vector.load %arg2[%c0, %c0_0, %c0_1, %c0_2] : memref<1x10x10x8xf32, #tpu.memory_space<vmem>>, vector<1x10x10x8xf32>
    %c0_3 = arith.constant 0 : index
    %c0_4 = arith.constant 0 : index
    %1 = vector.load %arg4[%c0_3, %c0_4] : memref<1x8xf32, #tpu.memory_space<vmem>>, vector<1x8xf32>
    %2 = vector.shape_cast %1 : vector<1x8xf32> to vector<1x1x1x8xf32>
    %3 = vector.broadcast %2 : vector<1x1x1x8xf32> to vector<1x10x10x8xf32>
    %4 = arith.mulf %0, %3 : vector<1x10x10x8xf32>
    %c0_5 = arith.constant 0 : index
    %c0_6 = arith.constant 0 : index
    %5 = vector.load %arg5[%c0_5, %c0_6] : memref<1x8xf32, #tpu.memory_space<vmem>>, vector<1x8xf32>
    %6 = vector.shape_cast %5 : vector<1x8xf32> to vector<1x1x1x8xf32>
    %7 = vector.broadcast %6 : vector<1x1x1x8xf32> to vector<1x10x10x8xf32>
    %8 = arith.addf %4, %7 : vector<1x10x10x8xf32>
    %cst = arith.constant 1.000000e-01 : f32
    %9 = vector.broadcast %cst : f32 to vector<1x10x10x8xf32>
    %10 = arith.mulf %9, %8 : vector<1x10x10x8xf32>
    %11 = arith.maximumf %8, %10 : vector<1x10x10x8xf32>
    %12 = arith.truncf %11 : vector<1x10x10x8xf32> to vector<1x10x10x8xbf16>
    %c0_7 = arith.constant 0 : index
    %c0_8 = arith.constant 0 : index
    %13 = vector.load %arg3[%c0_7, %c0_8] : memref<72x8xbf16, #tpu.memory_space<vmem>>, vector<72x8xbf16>
    %14 = vector.extract_strided_slice %12 {offsets = [0, 0, 0, 0], sizes = [1, 8, 8, 8], strides = [1, 1, 1, 1]} : vector<1x10x10x8xbf16> to vector<1x8x8x8xbf16>
    %15 = vector.shape_cast %14 : vector<1x8x8x8xbf16> to vector<8x8x8xbf16>
    %16 = vector.shape_cast %15 : vector<8x8x8xbf16> to vector<64x8xbf16>
    %17 = vector.extract_strided_slice %12 {offsets = [0, 0, 1, 0], sizes = [1, 8, 8, 8], strides = [1, 1, 1, 1]} : vector<1x10x10x8xbf16> to vector<1x8x8x8xbf16>
    %18 = vector.shape_cast %17 : vector<1x8x8x8xbf16> to vector<8x8x8xbf16>
    %19 = vector.shape_cast %18 : vector<8x8x8xbf16> to vector<64x8xbf16>
    %20 = vector.extract_strided_slice %12 {offsets = [0, 0, 2, 0], sizes = [1, 8, 8, 8], strides = [1, 1, 1, 1]} : vector<1x10x10x8xbf16> to vector<1x8x8x8xbf16>
    %21 = vector.shape_cast %20 : vector<1x8x8x8xbf16> to vector<8x8x8xbf16>
    %22 = vector.shape_cast %21 : vector<8x8x8xbf16> to vector<64x8xbf16>
    %23 = vector.extract_strided_slice %12 {offsets = [0, 1, 0, 0], sizes = [1, 8, 8, 8], strides = [1, 1, 1, 1]} : vector<1x10x10x8xbf16> to vector<1x8x8x8xbf16>
    %24 = vector.shape_cast %23 : vector<1x8x8x8xbf16> to vector<8x8x8xbf16>
    %25 = vector.shape_cast %24 : vector<8x8x8xbf16> to vector<64x8xbf16>
    %26 = vector.extract_strided_slice %12 {offsets = [0, 1, 1, 0], sizes = [1, 8, 8, 8], strides = [1, 1, 1, 1]} : vector<1x10x10x8xbf16> to vector<1x8x8x8xbf16>
    %27 = vector.shape_cast %26 : vector<1x8x8x8xbf16> to vector<8x8x8xbf16>
    %28 = vector.shape_cast %27 : vector<8x8x8xbf16> to vector<64x8xbf16>
    %29 = vector.extract_strided_slice %12 {offsets = [0, 1, 2, 0], sizes = [1, 8, 8, 8], strides = [1, 1, 1, 1]} : vector<1x10x10x8xbf16> to vector<1x8x8x8xbf16>
    %30 = vector.shape_cast %29 : vector<1x8x8x8xbf16> to vector<8x8x8xbf16>
    %31 = vector.shape_cast %30 : vector<8x8x8xbf16> to vector<64x8xbf16>
    %32 = vector.extract_strided_slice %12 {offsets = [0, 2, 0, 0], sizes = [1, 8, 8, 8], strides = [1, 1, 1, 1]} : vector<1x10x10x8xbf16> to vector<1x8x8x8xbf16>
    %33 = vector.shape_cast %32 : vector<1x8x8x8xbf16> to vector<8x8x8xbf16>
    %34 = vector.shape_cast %33 : vector<8x8x8xbf16> to vector<64x8xbf16>
    %35 = vector.extract_strided_slice %12 {offsets = [0, 2, 1, 0], sizes = [1, 8, 8, 8], strides = [1, 1, 1, 1]} : vector<1x10x10x8xbf16> to vector<1x8x8x8xbf16>
    %36 = vector.shape_cast %35 : vector<1x8x8x8xbf16> to vector<8x8x8xbf16>
    %37 = vector.shape_cast %36 : vector<8x8x8xbf16> to vector<64x8xbf16>
    %38 = vector.extract_strided_slice %12 {offsets = [0, 2, 2, 0], sizes = [1, 8, 8, 8], strides = [1, 1, 1, 1]} : vector<1x10x10x8xbf16> to vector<1x8x8x8xbf16>
    %39 = vector.shape_cast %38 : vector<1x8x8x8xbf16> to vector<8x8x8xbf16>
    %40 = vector.shape_cast %39 : vector<8x8x8xbf16> to vector<64x8xbf16>
    %41 = tpu.concatenate %16, %19, %22, %25, %28, %31, %34, %37, %40 in 1 : vector<64x8xbf16>, vector<64x8xbf16>, vector<64x8xbf16>, vector<64x8xbf16>, vector<64x8xbf16>, vector<64x8xbf16>, vector<64x8xbf16>, vector<64x8xbf16>, vector<64x8xbf16> -> vector<64x72xbf16>
    %cst_9 = arith.constant dense<0.000000e+00> : vector<64x8xf32>
    %42 = tpu.matmul %41, %13, %cst_9 {dimension_numbers = #tpu.dot_dimension_numbers<[1], [0], [0], [1], [0, 0, 1, 1], [], []>} : vector<64x72xbf16>, vector<72x8xbf16>, vector<64x8xf32> -> vector<64x8xf32>
    %c0_10 = arith.constant 0 : index
    %c0_11 = arith.constant 0 : index
    %43 = vector.load %arg6[%c0_10, %c0_11] : memref<1x8xf32, #tpu.memory_space<vmem>>, vector<1x8xf32>
    %44 = vector.broadcast %43 : vector<1x8xf32> to vector<64x8xf32>
    %45 = arith.mulf %42, %44 : vector<64x8xf32>
    %c0_12 = arith.constant 0 : index
    %c0_13 = arith.constant 0 : index
    %46 = vector.load %arg7[%c0_12, %c0_13] : memref<1x8xf32, #tpu.memory_space<vmem>>, vector<1x8xf32>
    %47 = vector.broadcast %46 : vector<1x8xf32> to vector<64x8xf32>
    %48 = arith.addf %45, %47 : vector<64x8xf32>
    %cst_14 = arith.constant 1.000000e-01 : f32
    %49 = vector.broadcast %cst_14 : f32 to vector<64x8xf32>
    %50 = arith.mulf %49, %48 : vector<64x8xf32>
    %51 = arith.maximumf %48, %50 : vector<64x8xf32>
    %52 = vector.shape_cast %51 : vector<64x8xf32> to vector<8x8x8xf32>
    %cst_15 = arith.constant 0.000000e+00 : f32
    %53 = vector.broadcast %cst_15 : f32 to vector<8x1x8xf32>
    %54 = tpu.concatenate %53, %52, %53 in 1 : vector<8x1x8xf32>, vector<8x8x8xf32>, vector<8x1x8xf32> -> vector<8x10x8xf32>
    %cst_16 = arith.constant 0.000000e+00 : f32
    %55 = vector.broadcast %cst_16 : f32 to vector<1x10x8xf32>
    %56 = tpu.concatenate %55, %54, %55 in 0 : vector<1x10x8xf32>, vector<8x10x8xf32>, vector<1x10x8xf32> -> vector<10x10x8xf32>
    %57 = arith.truncf %56 : vector<10x10x8xf32> to vector<10x10x8xbf16>
    %c0_17 = arith.constant 0 : index
    %c0_18 = arith.constant 0 : index
    %c0_19 = arith.constant 0 : index
    %c0_20 = arith.constant 0 : index
    %58 = vector.load %arg8[%c0_17, %c0_18, %c0_19, %c0_20] : memref<1x10x10x8xbf16, #tpu.memory_space<vmem>>, vector<1x10x10x8xbf16>
    %59 = vector.shape_cast %58 : vector<1x10x10x8xbf16> to vector<10x10x8xbf16>
    %60 = vector.shape_cast %57 : vector<10x10x8xbf16> to vector<1x10x10x8xbf16>
    tpu.vector_store %arg8[%c0_17, %c0_18, %c0_19, %c0_20], %60 {strides = array<i32>} : memref<1x10x10x8xbf16, #tpu.memory_space<vmem>>, vector<1x10x10x8xbf16>,
    return
  }
  func.func @transform_0(%arg0: i32, %arg1: i32) -> (i32, i32, i32, i32) {
    %c0_i32 = arith.constant 0 : i32
    %c0_i32_0 = arith.constant 0 : i32
    %c0_i32_1 = arith.constant 0 : i32
    %c0_i32_2 = arith.constant 0 : i32
    return %arg0, %c0_i32, %c0_i32_0, %c0_i32_1 : i32, i32, i32, i32
  }
  func.func @transform_1(%arg0: i32, %arg1: i32) -> (i32, i32) {
    %c0_i32 = arith.constant 0 : i32
    %c0_i32_0 = arith.constant 0 : i32
    return %c0_i32, %arg1 : i32, i32
  }
  func.func @transform_2(%arg0: i32, %arg1: i32) -> (i32, i32) {
    %c0_i32 = arith.constant 0 : i32
    %c0_i32_0 = arith.constant 0 : i32
    %c0_i32_1 = arith.constant 0 : i32
    return %c0_i32, %c0_i32_0 : i32, i32
  }
  func.func @transform_3(%arg0: i32, %arg1: i32) -> (i32, i32) {
    %c0_i32 = arith.constant 0 : i32
    %c0_i32_0 = arith.constant 0 : i32
    %c0_i32_1 = arith.constant 0 : i32
    return %c0_i32, %c0_i32_0 : i32, i32
  }
  func.func @transform_4(%arg0: i32, %arg1: i32) -> (i32, i32) {
    %c0_i32 = arith.constant 0 : i32
    %c0_i32_0 = arith.constant 0 : i32
    return %c0_i32, %arg1 : i32, i32
  }
  func.func @transform_5(%arg0: i32, %arg1: i32) -> (i32, i32) {
    %c0_i32 = arith.constant 0 : i32
    %c0_i32_0 = arith.constant 0 : i32
    return %c0_i32, %arg1 : i32, i32
  }
  func.func @transform_6(%arg0: i32, %arg1: i32) -> (i32, i32, i32, i32) {
    %c0_i32 = arith.constant 0 : i32
    %c0_i32_0 = arith.constant 0 : i32
    %c0_i32_1 = arith.constant 0 : i32
    return %arg0, %c0_i32, %c0_i32_0, %arg1 : i32, i32, i32, i32
  }
}

module attributes {stable_mosaic.version = 11 : i64} {
  func.func @_conv2_residual_kernel(%arg0: i32, %arg1: i32, %arg2: memref<1x10x10x8xbf16, #tpu.memory_space<vmem>>, %arg3: memref<72x8xbf16, #tpu.memory_space<vmem>>, %arg4: memref<1x8x8x8xf32, #tpu.memory_space<vmem>>, %arg5: memref<1x8x8x8xf32, #tpu.memory_space<vmem>>) attributes {dimension_semantics = [#tpu.dimension_semantics<parallel>, #tpu.dimension_semantics<parallel>], iteration_bounds = array<i64: 2, 1>, scalar_prefetch = 0 : i64, scratch_operands = 0 : i64, tpu.core_type = #tpu.core_type<tc>, window_params = [{transform_indices = @transform_0, window_bounds = array<i64: 1, 10, 10, 8>}, {transform_indices = @transform_1, window_bounds = array<i64: 72, 8>}, {transform_indices = @transform_2, window_bounds = array<i64: 1, 8, 8, 8>}, {transform_indices = @transform_3, window_bounds = array<i64: 1, 8, 8, 8>}]} {
    %c0 = arith.constant 0 : index
    %c0_0 = arith.constant 0 : index
    %c0_1 = arith.constant 0 : index
    %c0_2 = arith.constant 0 : index
    %0 = vector.load %arg2[%c0, %c0_0, %c0_1, %c0_2] : memref<1x10x10x8xbf16, #tpu.memory_space<vmem>>, vector<1x10x10x8xbf16>
    %1 = vector.shape_cast %0 : vector<1x10x10x8xbf16> to vector<10x10x8xbf16>
    %c0_3 = arith.constant 0 : index
    %c0_4 = arith.constant 0 : index
    %2 = vector.load %arg3[%c0_3, %c0_4] : memref<72x8xbf16, #tpu.memory_space<vmem>>, vector<72x8xbf16>
    %3 = vector.extract_strided_slice %1 {offsets = [0, 0, 0], sizes = [8, 8, 8], strides = [1, 1, 1]} : vector<10x10x8xbf16> to vector<8x8x8xbf16>
    %4 = vector.shape_cast %3 : vector<8x8x8xbf16> to vector<64x8xbf16>
    %5 = vector.extract_strided_slice %1 {offsets = [0, 1, 0], sizes = [8, 8, 8], strides = [1, 1, 1]} : vector<10x10x8xbf16> to vector<8x8x8xbf16>
    %6 = vector.shape_cast %5 : vector<8x8x8xbf16> to vector<64x8xbf16>
    %7 = vector.extract_strided_slice %1 {offsets = [0, 2, 0], sizes = [8, 8, 8], strides = [1, 1, 1]} : vector<10x10x8xbf16> to vector<8x8x8xbf16>
    %8 = vector.shape_cast %7 : vector<8x8x8xbf16> to vector<64x8xbf16>
    %9 = vector.extract_strided_slice %1 {offsets = [1, 0, 0], sizes = [8, 8, 8], strides = [1, 1, 1]} : vector<10x10x8xbf16> to vector<8x8x8xbf16>
    %10 = vector.shape_cast %9 : vector<8x8x8xbf16> to vector<64x8xbf16>
    %11 = vector.extract_strided_slice %1 {offsets = [1, 1, 0], sizes = [8, 8, 8], strides = [1, 1, 1]} : vector<10x10x8xbf16> to vector<8x8x8xbf16>
    %12 = vector.shape_cast %11 : vector<8x8x8xbf16> to vector<64x8xbf16>
    %13 = vector.extract_strided_slice %1 {offsets = [1, 2, 0], sizes = [8, 8, 8], strides = [1, 1, 1]} : vector<10x10x8xbf16> to vector<8x8x8xbf16>
    %14 = vector.shape_cast %13 : vector<8x8x8xbf16> to vector<64x8xbf16>
    %15 = vector.extract_strided_slice %1 {offsets = [2, 0, 0], sizes = [8, 8, 8], strides = [1, 1, 1]} : vector<10x10x8xbf16> to vector<8x8x8xbf16>
    %16 = vector.shape_cast %15 : vector<8x8x8xbf16> to vector<64x8xbf16>
    %17 = vector.extract_strided_slice %1 {offsets = [2, 1, 0], sizes = [8, 8, 8], strides = [1, 1, 1]} : vector<10x10x8xbf16> to vector<8x8x8xbf16>
    %18 = vector.shape_cast %17 : vector<8x8x8xbf16> to vector<64x8xbf16>
    %19 = vector.extract_strided_slice %1 {offsets = [2, 2, 0], sizes = [8, 8, 8], strides = [1, 1, 1]} : vector<10x10x8xbf16> to vector<8x8x8xbf16>
    %20 = vector.shape_cast %19 : vector<8x8x8xbf16> to vector<64x8xbf16>
    %21 = tpu.concatenate %4, %6, %8, %10, %12, %14, %16, %18, %20 in 1 : vector<64x8xbf16>, vector<64x8xbf16>, vector<64x8xbf16>, vector<64x8xbf16>, vector<64x8xbf16>, vector<64x8xbf16>, vector<64x8xbf16>, vector<64x8xbf16>, vector<64x8xbf16> -> vector<64x72xbf16>
    %cst = arith.constant dense<0.000000e+00> : vector<64x8xf32>
    %22 = tpu.matmul %21, %2, %cst {dimension_numbers = #tpu.dot_dimension_numbers<[1], [0], [0], [1], [0, 0, 1, 1], [], []>} : vector<64x72xbf16>, vector<72x8xbf16>, vector<64x8xf32> -> vector<64x8xf32>
    %23 = vector.shape_cast %22 : vector<64x8xf32> to vector<8x8x8xf32>
    %c0_5 = arith.constant 0 : index
    %c0_6 = arith.constant 0 : index
    %c0_7 = arith.constant 0 : index
    %c0_8 = arith.constant 0 : index
    %24 = vector.load %arg4[%c0_5, %c0_6, %c0_7, %c0_8] : memref<1x8x8x8xf32, #tpu.memory_space<vmem>>, vector<1x8x8x8xf32>
    %25 = vector.shape_cast %24 : vector<1x8x8x8xf32> to vector<8x8x8xf32>
    %26 = arith.addf %23, %25 : vector<8x8x8xf32>
    %c0_9 = arith.constant 0 : index
    %c0_10 = arith.constant 0 : index
    %c0_11 = arith.constant 0 : index
    %c0_12 = arith.constant 0 : index
    %27 = vector.load %arg5[%c0_9, %c0_10, %c0_11, %c0_12] : memref<1x8x8x8xf32, #tpu.memory_space<vmem>>, vector<1x8x8x8xf32>
    %28 = vector.shape_cast %27 : vector<1x8x8x8xf32> to vector<8x8x8xf32>
    %29 = vector.shape_cast %26 : vector<8x8x8xf32> to vector<1x8x8x8xf32>
    tpu.vector_store %arg5[%c0_9, %c0_10, %c0_11, %c0_12], %29 {strides = array<i32>} : memref<1x8x8x8xf32, #tpu.memory_space<vmem>>, vector<1x8x8x8xf32>,
    return
  }
  func.func @transform_0(%arg0: i32, %arg1: i32) -> (i32, i32, i32, i32) {
    %c0_i32 = arith.constant 0 : i32
    %c0_i32_0 = arith.constant 0 : i32
    %c0_i32_1 = arith.constant 0 : i32
    %c0_i32_2 = arith.constant 0 : i32
    return %arg0, %c0_i32, %c0_i32_0, %c0_i32_1 : i32, i32, i32, i32
  }
  func.func @transform_1(%arg0: i32, %arg1: i32) -> (i32, i32) {
    %c0_i32 = arith.constant 0 : i32
    %c0_i32_0 = arith.constant 0 : i32
    return %c0_i32, %arg1 : i32, i32
  }
  func.func @transform_2(%arg0: i32, %arg1: i32) -> (i32, i32, i32, i32) {
    %c0_i32 = arith.constant 0 : i32
    %c0_i32_0 = arith.constant 0 : i32
    %c0_i32_1 = arith.constant 0 : i32
    return %arg0, %c0_i32, %c0_i32_0, %arg1 : i32, i32, i32, i32
  }
  func.func @transform_3(%arg0: i32, %arg1: i32) -> (i32, i32, i32, i32) {
    %c0_i32 = arith.constant 0 : i32
    %c0_i32_0 = arith.constant 0 : i32
    %c0_i32_1 = arith.constant 0 : i32
    return %arg0, %c0_i32, %c0_i32_0, %arg1 : i32, i32, i32, i32
  }
}

</mosaic_0001>

<llo_original>
// kernel: network_block_forward.5
$region0: #{network_block_forward.5}
  #allocation0 [shape = 'u32[]', space=smem, size = 0x4, offset = 0x4, fixed_abs, tag = 'smem constant byte address 0x4 - core index']
  #allocation1 [shape = 'u32[144,128]{1,0:T(1,128)}', space=vmem, size = 0x12000, scoped, tag = 'internal scratch']
  %s0 = inlined_call_operand.vmem [shape: bf16[2,10,10,8], index: 0, kind: input, shape index: {}]
  %s1 = inlined_call_operand.vmem [shape: bf16[72,8], index: 1, kind: input, shape index: {}]
  %s2 = inlined_call_operand.vmem [shape: f32[8,9,9,4], index: 2, kind: input, shape index: {}]
  %s3 = inlined_call_operand.vmem [shape: bf16[4,8], index: 3, kind: input, shape index: {}]
  %s4 = inlined_call_operand.vmem [shape: f32[1,4], index: 4, kind: input, shape index: {}]
  %s5 = inlined_call_operand.vmem [shape: f32[1,4], index: 5, kind: input, shape index: {}]
  %s6 = inlined_call_operand.vmem [shape: f32[2,8,8,8], index: 6, kind: output, shape index: {}]
  %s7 = sld [smem:[#allocation0]]
  $region57: #{network_block_forward.5} parent=0
    _
  %s9 = ssub.s32 1, %s7
  %s10 = scalar_select 0, %s9, %s7
  loop: start=0, step=1, limit=4
  $region2: #{network_block_forward.5} parent=0 // loop_pre_header
    _
  $region3: #{network_block_forward.5} parent=0 // loop_header
    %s12 = sphi 0, %s16
    %p13 = scmp.ge.s32.totalorder %s12, 4
    %s19 = sphi 0, %s31
    %s20 = sphi 0, %s27
    %s21 = sphi 0, %s19
    %s22 = sphi 0, %s20
    %s23 = sphi 0, %s21
    %s24 = sphi 0, %s22
    %s34 = sphi 0, %s36
    %s37 = sphi 0, %s34
    %s38 = sphi 0, %s37
    %s54 = sphi 0, %s38
    %s60 = sphi 0, %s62
    %s63 = sphi 0, %s60
    %s64 = sphi 0, %s63
    %s80 = sphi 0, %s64
    %s90 = sphi 0, %s92
    %s93 = sphi 0, %s90
    %s94 = sphi 0, %s93
    %s110 = sphi 0, %s94
    %s116 = sphi 0, %s118
    %s119 = sphi 0, %s116
    %s120 = sphi 0, %s119
    %s136 = sphi 0, %s120
    %s140 = sphi 0, %s140
    %s142 = sphi 0, %s140
    %s143 = sphi 0, %s142
    %s157 = sphi 0, %s143
    %s161 = sphi 0, %s161
    %s163 = sphi 0, %s161
    %s164 = sphi 0, %s163
    %s178 = sphi 0, %s164
    %s186 = sphi 0, %s188
    %s189 = sphi 0, %s186
    %s190 = sphi 0, %s189
    %s206 = sphi 0, %s190
  $region4: #{network_block_forward.5} parent=0 // loop_header_branch
    %15 = sbr.rel (%p13) target = $region8
  $region5: #{network_block_forward.5} parent=0 // loop_body
    %s17 = ssub.s32 %s12, 1
    %s18 = ssub.s32 %s12, 2
    %s25 = sadd.s32 1, %s20
    %p26 = scmp.ge.s32.totalorder %s25, 1
    %s27 = scalar_select %p26, 0, %s25
    %s28 = sadd.s32 1, %s19
    %s29 = scalar_select %p26, %s28, %s19
    %p30 = scmp.ge.s32.totalorder %s29, 2
    %s31 = scalar_select %p30, 0, %s29
    %s32 = ssub.s32 %s19, %s31
    %p33 = scmp.eq.s32.totalorder %s32, 0
    %s35 = sadd.s32 %s34, 1
    %s36 = scalar_select %p33, %s34, %s35
    %p39 = pneg %p33
    %p40 = scmp.eq.s32.totalorder %s12, 1
    %p41 = por %p39, %p40
    %p42 = scmp.ne.s32.totalorder %s34, %s37
    %p43 = scmp.eq.s32.totalorder %s12, 0
    %p44 = por %p42, %p43
    %p45 = scmp.ne.s32.totalorder %s34, %s37
    %p46 = scmp.eq.s32.totalorder %s17, 1
    %p47 = por %p45, %p46
    %p48 = scmp.ne.s32.totalorder %s37, %s38
    %p49 = scmp.eq.s32.totalorder %s17, 0
    %p50 = por %p48, %p49
    %p51 = scmp.ne.s32.totalorder %s37, %s38
    %p52 = scmp.eq.s32.totalorder %s18, 1
    %p53 = por %p51, %p52
    %p55 = scmp.ne.s32.totalorder %s38, %s54
    %p56 = scmp.eq.s32.totalorder %s18, 0
    %p57 = por %p55, %p56
    %s58 = ssub.s32 %s20, %s27
    %p59 = scmp.eq.s32.totalorder %s58, 0
    %s61 = sadd.s32 %s60, 1
    %s62 = scalar_select %p59, %s60, %s61
    %p65 = pneg %p59
    %p66 = scmp.eq.s32.totalorder %s12, 1
    %p67 = por %p65, %p66
    %p68 = scmp.ne.s32.totalorder %s60, %s63
    %p69 = scmp.eq.s32.totalorder %s12, 0
    %p70 = por %p68, %p69
    %p71 = scmp.ne.s32.totalorder %s60, %s63
    %p72 = scmp.eq.s32.totalorder %s17, 1
    %p73 = por %p71, %p72
    %p74 = scmp.ne.s32.totalorder %s63, %s64
    %p75 = scmp.eq.s32.totalorder %s17, 0
    %p76 = por %p74, %p75
    %p77 = scmp.ne.s32.totalorder %s63, %s64
    %p78 = scmp.eq.s32.totalorder %s18, 1
    %p79 = por %p77, %p78
    %p81 = scmp.ne.s32.totalorder %s64, %s80
    %p82 = scmp.eq.s32.totalorder %s18, 0
    %p83 = por %p81, %p82
    %s84 = smul.u32 %s19, 4
    %s85 = sadd.s32 %s84, 3
    %s86 = smul.u32 %s31, 4
    %s87 = sadd.s32 %s86, 3
    %s88 = ssub.s32 %s85, %s87
    %p89 = scmp.eq.s32.totalorder %s88, 0
    %s91 = sadd.s32 %s90, 1
    %s92 = scalar_select %p89, %s90, %s91
    %p95 = pneg %p89
    %p96 = scmp.eq.s32.totalorder %s12, 1
    %p97 = por %p95, %p96
    %p98 = scmp.ne.s32.totalorder %s90, %s93
    %p99 = scmp.eq.s32.totalorder %s12, 0
    %p100 = por %p98, %p99
    %p101 = scmp.ne.s32.totalorder %s90, %s93
    %p102 = scmp.eq.s32.totalorder %s17, 1
    %p103 = por %p101, %p102
    %p104 = scmp.ne.s32.totalorder %s93, %s94
    %p105 = scmp.eq.s32.totalorder %s17, 0
    %p106 = por %p104, %p105
    %p107 = scmp.ne.s32.totalorder %s93, %s94
    %p108 = scmp.eq.s32.totalorder %s18, 1
    %p109 = por %p107, %p108
    %p111 = scmp.ne.s32.totalorder %s94, %s110
    %p112 = scmp.eq.s32.totalorder %s18, 0
    %p113 = por %p111, %p112
    %s114 = ssub.s32 %s20, %s27
    %p115 = scmp.eq.s32.totalorder %s114, 0
    %s117 = sadd.s32 %s116, 1
    %s118 = scalar_select %p115, %s116, %s117
    %p121 = pneg %p115
    %p122 = scmp.eq.s32.totalorder %s12, 1
    %p123 = por %p121, %p122
    %p124 = scmp.ne.s32.totalorder %s116, %s119
    %p125 = scmp.eq.s32.totalorder %s12, 0
    %p126 = por %p124, %p125
    %p127 = scmp.ne.s32.totalorder %s116, %s119
    %p128 = scmp.eq.s32.totalorder %s17, 1
    %p129 = por %p127, %p128
    %p130 = scmp.ne.s32.totalorder %s119, %s120
    %p131 = scmp.eq.s32.totalorder %s17, 0
    %p132 = por %p130, %p131
    %p133 = scmp.ne.s32.totalorder %s119, %s120
    %p134 = scmp.eq.s32.totalorder %s18, 1
    %p135 = por %p133, %p134
    %p137 = scmp.ne.s32.totalorder %s120, %s136
    %p138 = scmp.eq.s32.totalorder %s18, 0
    %p139 = por %p137, %p138
    %s141 = sadd.s32 %s140, 1
    %p144 = scmp.eq.s32.totalorder %s12, 1
    %p145 = scmp.ne.s32.totalorder %s140, %s142
    %p146 = scmp.eq.s32.totalorder %s12, 0
    %p147 = por %p145, %p146
    %p148 = scmp.ne.s32.totalorder %s140, %s142
    %p149 = scmp.eq.s32.totalorder %s17, 1
    %p150 = por %p148, %p149
    %p151 = scmp.ne.s32.totalorder %s142, %s143
    %p152 = scmp.eq.s32.totalorder %s17, 0
    %p153 = por %p151, %p152
    %p154 = scmp.ne.s32.totalorder %s142, %s143
    %p155 = scmp.eq.s32.totalorder %s18, 1
    %p156 = por %p154, %p155
    %p158 = scmp.ne.s32.totalorder %s143, %s157
    %p159 = scmp.eq.s32.totalorder %s18, 0
    %p160 = por %p158, %p159
    %s162 = sadd.s32 %s161, 1
    %p165 = scmp.eq.s32.totalorder %s12, 1
    %p166 = scmp.ne.s32.totalorder %s161, %s163
    %p167 = scmp.eq.s32.totalorder %s12, 0
    %p168 = por %p166, %p167
    %p169 = scmp.ne.s32.totalorder %s161, %s163
    %p170 = scmp.eq.s32.totalorder %s17, 1
    %p171 = por %p169, %p170
    %p172 = scmp.ne.s32.totalorder %s163, %s164
    %p173 = scmp.eq.s32.totalorder %s17, 0
    %p174 = por %p172, %p173
    %p175 = scmp.ne.s32.totalorder %s163, %s164
    %p176 = scmp.eq.s32.totalorder %s18, 1
    %p177 = por %p175, %p176
    %p179 = scmp.ne.s32.totalorder %s164, %s178
    %p180 = scmp.eq.s32.totalorder %s18, 0
    %p181 = por %p179, %p180
    %s182 = ssub.s32 %s19, %s31
    %s183 = ssub.s32 %s20, %s27
    %s184 = sor.u32 %s182, %s183
    %p185 = scmp.eq.s32.totalorder %s184, 0
    %s187 = sadd.s32 %s186, 1
    %s188 = scalar_select %p185, %s186, %s187
    %p191 = pneg %p185
    %p192 = scmp.eq.s32.totalorder %s12, 1
    %p193 = por %p191, %p192
    %p194 = scmp.ne.s32.totalorder %s186, %s189
    %p195 = scmp.eq.s32.totalorder %s12, 0
    %p196 = por %p194, %p195
    %p197 = scmp.ne.s32.totalorder %s186, %s189
    %p198 = scmp.eq.s32.totalorder %s17, 1
    %p199 = por %p197, %p198
    %p200 = scmp.ne.s32.totalorder %s189, %s190
    %p201 = scmp.eq.s32.totalorder %s17, 0
    %p202 = por %p200, %p201
    %p203 = scmp.ne.s32.totalorder %s189, %s190
    %p204 = scmp.eq.s32.totalorder %s18, 1
    %p205 = por %p203, %p204
    %p207 = scmp.ne.s32.totalorder %s190, %s206
    %p208 = scmp.eq.s32.totalorder %s18, 0
    %p209 = por %p207, %p208
    %p210 = scmp.le.s32.totalorder 1, %s12
    %p211 = scmp.lt.s32.totalorder %s12, 3
    %p212 = pnand %p210, %p211
    %p213 = pneg %p212
    // Predicated region
    $region9: #{network_block_forward.5} parent=5 // pred_check
      _
    $region10: #{network_block_forward.5} parent=5 // pred_check_branch
      %215 = sbr.rel (%p212) target = $region12
    $region11: #{network_block_forward.5} parent=5 // pred_region
      %s216 = ssub.s32 %s12, 1
      // Predicated region
      $region13: #{network_block_forward.5} parent=11 // pred_check
        %p217 = pneg %p76
      $region14: #{network_block_forward.5} parent=11 // pred_check_branch
        %219 = sbr.rel (%p217) target = $region16
      $region15: #{network_block_forward.5} parent=11 // pred_region
        %p220 = scmp.lt.s32.totalorder %s22, 0
        %s221 = scalar_select %p220, %s22, 0
        %s222 = smul.addr %s221, 4
        %s223 = scalar_lea.vmem %s1, %s222
      $region16: #{network_block_forward.5} parent=11 // pred_fallthru
        _
      // Predicated region
      $region17: #{network_block_forward.5} parent=11 // pred_check
        %p224 = pneg %p132
      $region18: #{network_block_forward.5} parent=11 // pred_check_branch
        %226 = sbr.rel (%p224) target = $region20
      $region19: #{network_block_forward.5} parent=11 // pred_region
        %p227 = scmp.lt.s32.totalorder %s22, 0
        %s228 = scalar_select %p227, %s22, 0
        %s229 = smul.addr %s228, 2
        %s230 = scalar_lea.vmem %s3, %s229
      $region20: #{network_block_forward.5} parent=11 // pred_fallthru
        _
      // Predicated region
      $region21: #{network_block_forward.5} parent=11 // pred_check
        %p231 = pneg %p153
      $region22: #{network_block_forward.5} parent=11 // pred_check_branch
        %233 = sbr.rel (%p231) target = $region24
      $region23: #{network_block_forward.5} parent=11 // pred_region
        _
      $region24: #{network_block_forward.5} parent=11 // pred_fallthru
        _
      // Predicated region
      $region25: #{network_block_forward.5} parent=11 // pred_check
        %p234 = pneg %p174
      $region26: #{network_block_forward.5} parent=11 // pred_check_branch
        %236 = sbr.rel (%p234) target = $region28
      $region27: #{network_block_forward.5} parent=11 // pred_region
        _
      $region28: #{network_block_forward.5} parent=11 // pred_fallthru
        _
    $region12: #{network_block_forward.5} parent=5 // pred_fallthru
      _
    %p237 = scmp.lt.s32.totalorder %s12, 2
    // Predicated region
    $region29: #{network_block_forward.5} parent=5 // pred_check
      %p238 = pneg %p237
    $region30: #{network_block_forward.5} parent=5 // pred_check_branch
      %240 = sbr.rel (%p238) target = $region32
    $region31: #{network_block_forward.5} parent=5 // pred_region
      // Predicated region
      $region33: #{network_block_forward.5} parent=31 // pred_check
        %p241 = pneg %p44
      $region34: #{network_block_forward.5} parent=31 // pred_check_branch
        %243 = sbr.rel (%p241) target = $region36
      $region35: #{network_block_forward.5} parent=31 // pred_region
        %p244 = scmp.lt.s32.totalorder %s19, 1
        %s245 = scalar_select %p244, %s19, 1
        %s246 = smul.addr %s245, 20
        %s247 = smul.addr %s246, 4
        %s248 = scalar_lea.vmem %s0, %s247
      $region36: #{network_block_forward.5} parent=31 // pred_fallthru
        _
      // Predicated region
      $region37: #{network_block_forward.5} parent=31 // pred_check
        %p249 = pneg %p100
      $region38: #{network_block_forward.5} parent=31 // pred_check_branch
        %251 = sbr.rel (%p249) target = $region40
      $region39: #{network_block_forward.5} parent=31 // pred_region
        %s252 = smul.u32 %s19, 4
        %s253 = sadd.s32 %s252, 3
        %p254 = scmp.lt.s32.totalorder %s253, 7
        %s255 = scalar_select %p254, %s253, 7
        %s256 = smul.addr %s255, 18
        %s257 = smul.addr %s256, 8
        %s258 = scalar_lea.vmem %s2, %s257
        %s259 = smul.u32 %s19, 4
        %s260 = sadd.s32 %s259, 3
      $region40: #{network_block_forward.5} parent=31 // pred_fallthru
        _
    $region32: #{network_block_forward.5} parent=5 // pred_fallthru
      _
    %p261 = scmp.le.s32.totalorder 1, %s12
    %p262 = scmp.lt.s32.totalorder %s12, 3
    %p263 = pnand %p261, %p262
    %p264 = pneg %p263
    // Predicated region
    $region41: #{network_block_forward.5} parent=5 // pred_check
      _
    $region42: #{network_block_forward.5} parent=5 // pred_check_branch
      %266 = sbr.rel (%p263) target = $region44
    $region43: #{network_block_forward.5} parent=5 // pred_region
      %s267 = ssub.s32 %s12, 1
      %p268 = scmp.lt.s32.totalorder %s21, 1
      %s269 = scalar_select %p268, %s21, 1
      %s270 = smul.addr %s269, 20
      %s271 = smul.addr %s270, 4
      %s272 = scalar_lea.vmem %s0, %s271
      %p273 = pneg %p50
      %p274 = pneg %p47
      %p275 = scmp.lt.s32.totalorder %s22, 0
      %s276 = scalar_select %p275, %s22, 0
      %s277 = smul.addr %s276, 4
      %s278 = scalar_lea.vmem %s1, %s277
      %p279 = pneg %p76
      %p280 = pneg %p73
      %s281 = smul.u32 %s21, 4
      %s282 = sadd.s32 %s281, 3
      %p283 = scmp.lt.s32.totalorder %s282, 7
      %s284 = scalar_select %p283, %s282, 7
      %s285 = smul.addr %s284, 18
      %s286 = smul.addr %s285, 8
      %s287 = scalar_lea.vmem %s2, %s286
      %p288 = pneg %p106
      %p289 = pneg %p103
      %p290 = scmp.lt.s32.totalorder %s22, 0
      %s291 = scalar_select %p290, %s22, 0
      %s292 = smul.addr %s291, 2
      %s293 = scalar_lea.vmem %s3, %s292
      %p294 = pneg %p132
      %p295 = pneg %p129
      %p296 = pneg %p153
      %p297 = pneg %p150
      %p298 = pneg %p174
      %p299 = pneg %p171
      %p300 = pneg %p202
      %p301 = pneg %p199
      %p302 = scmp.lt.s32.totalorder %s21, 1
      %s303 = scalar_select %p302, %s21, 1
      %p304 = scmp.lt.s32.totalorder %s22, 0
      %s305 = scalar_select %p304, %s22, 0
      %s306 = smul.addr %s303, 8
      %s307 = sadd.s32 %s305, %s306
      %s308 = smul.addr %s307, 8
      %s309 = scalar_lea.vmem %s6, %s308
      %p310 = scmp.lt.s32.totalorder %s21, 1
      %s311 = scalar_select %p310, %s21, 1
      %s312 = smul.addr %s311, 20
      %s313 = smul.addr %s312, 4
      %s314 = scalar_lea.vmem %s0, %s313
      %p315 = scmp.lt.s32.totalorder %s22, 0
      %s316 = scalar_select %p315, %s22, 0
      %s317 = smul.addr %s316, 4
      %s318 = scalar_lea.vmem %s1, %s317
      %s319 = smul.u32 %s21, 4
      %s320 = sadd.s32 %s319, 3
      %p321 = scmp.lt.s32.totalorder %s320, 7
      %s322 = scalar_select %p321, %s320, 7
      %s323 = smul.addr %s322, 18
      %s324 = smul.addr %s323, 8
      %s325 = scalar_lea.vmem %s2, %s324
      %s326 = smul.u32 %s21, 4
      %s327 = sadd.s32 %s326, 3
      %p328 = scmp.lt.s32.totalorder %s22, 0
      %s329 = scalar_select %p328, %s22, 0
      %s330 = smul.addr %s329, 2
      %s331 = scalar_lea.vmem %s3, %s330
      %p332 = scmp.lt.s32.totalorder %s21, 1
      %s333 = scalar_select %p332, %s21, 1
      %p334 = scmp.lt.s32.totalorder %s22, 0
      %s335 = scalar_select %p334, %s22, 0
      %s336 = smul.addr %s333, 8
      %s337 = sadd.s32 %s335, %s336
      %s338 = smul.addr %s337, 8
      %s339 = scalar_lea.vmem %s6, %s338
      %v341 = vld [vmem:[%s314] sm:$0xf]
      %v342 = vld [vmem:[%s314 + $0x4] sm:$0x1]
      %v343 = vld [vmem:[%s314 + $0x8] sm:$0xf]
      %v344 = vld [vmem:[%s314 + $0xc] sm:$0x1]
      %v345 = vld [vmem:[%s314 + $0x10] sm:$0xf]
      %v346 = vld [vmem:[%s314 + $0x14] sm:$0x1]
      %v347 = vld [vmem:[%s314 + $0x18] sm:$0xf]
      %v348 = vld [vmem:[%s314 + $0x1c] sm:$0x1]
      %v349 = vld [vmem:[%s314 + $0x20] sm:$0xf]
      %v350 = vld [vmem:[%s314 + $0x24] sm:$0x1]
      %v351 = vld [vmem:[%s314 + $0x28] sm:$0xf]
      %v352 = vld [vmem:[%s314 + $0x2c] sm:$0x1]
      %v353 = vld [vmem:[%s314 + $0x30] sm:$0xf]
      %v354 = vld [vmem:[%s314 + $0x34] sm:$0x1]
      %v355 = vld [vmem:[%s314 + $0x38] sm:$0xf]
      %v356 = vld [vmem:[%s314 + $0x3c] sm:$0x1]
      %v357 = vld [vmem:[%s314 + $0x40] sm:$0xf]
      %v358 = vld [vmem:[%s314 + $0x44] sm:$0x1]
      %v359 = vld [vmem:[%s314 + $0x48] sm:$0xf]
      %v360 = vld [vmem:[%s314 + $0x4c] sm:$0x1]
      %v361 = vld [vmem:[%s318] sm:$0xf]
      %v362 = vld [vmem:[%s318 + $0x4] sm:$0xf]
      %v363 = vld [vmem:[%s318 + $0x8] sm:$0xf]
      %v364 = vld [vmem:[%s318 + $0xc] sm:$0xf]
      %v365 = vld [vmem:[%s318 + $0x10] sm:$0xf]
      %v366 = vld [vmem:[%s318 + $0x14] sm:$0xf]
      %v367 = vld [vmem:[%s318 + $0x18] sm:$0xf]
      %v368 = vld [vmem:[%s318 + $0x1c] sm:$0xf]
      %v369 = vld [vmem:[%s318 + $0x20] sm:$0xf]
      %vm370 = vsmask.f32 3328
      %vm371 = vsmask.f32 7440
      %vm372 = vmor %vm370, %vm371
      %v374 = vshrl.u32 %v341, 16
      %v376 = vrot.slane %v374, 4
      %v377 = vshll.u32 %v341, 16
      %v379 = vrot.slane %v377, 5
      %v380 = vor.u32 %v376, %v379
      %v381 = vrot.slane %v380, 4
      %v383 = vshll.u32 %v342, 16
      %v385 = vrot.slane %v383, 5
      %v386 = vsel %vm372, %v381, %v385
      %v388 = vshrl.u32 %v343, 16
      %v390 = vrot.slane %v388, 4
      %v391 = vshll.u32 %v343, 16
      %v393 = vrot.slane %v391, 5
      %v394 = vor.u32 %v390, %v393
      %v395 = vrot.slane %v394, 4
      %v397 = vshll.u32 %v344, 16
      %v399 = vrot.slane %v397, 5
      %v400 = vsel %vm372, %v395, %v399
      %v402 = vshrl.u32 %v345, 16
      %v404 = vrot.slane %v402, 4
      %v405 = vshll.u32 %v345, 16
      %v407 = vrot.slane %v405, 5
      %v408 = vor.u32 %v404, %v407
      %v409 = vrot.slane %v408, 4
      %v411 = vshll.u32 %v346, 16
      %v413 = vrot.slane %v411, 5
      %v414 = vsel %vm372, %v409, %v413
      %v416 = vshrl.u32 %v347, 16
      %v418 = vrot.slane %v416, 4
      %v419 = vshll.u32 %v347, 16
      %v421 = vrot.slane %v419, 5
      %v422 = vor.u32 %v418, %v421
      %v423 = vrot.slane %v422, 4
      %v425 = vshll.u32 %v348, 16
      %v427 = vrot.slane %v425, 5
      %v428 = vsel %vm372, %v423, %v427
      %v430 = vshrl.u32 %v349, 16
      %v432 = vrot.slane %v430, 4
      %v433 = vshll.u32 %v349, 16
      %v435 = vrot.slane %v433, 5
      %v436 = vor.u32 %v432, %v435
      %v437 = vrot.slane %v436, 4
      %v439 = vshll.u32 %v350, 16
      %v441 = vrot.slane %v439, 5
      %v442 = vsel %vm372, %v437, %v441
      %v444 = vshrl.u32 %v351, 16
      %v446 = vrot.slane %v444, 4
      %v447 = vshll.u32 %v351, 16
      %v449 = vrot.slane %v447, 5
      %v450 = vor.u32 %v446, %v449
      %v451 = vrot.slane %v450, 4
      %v453 = vshll.u32 %v352, 16
      %v455 = vrot.slane %v453, 5
      %v456 = vsel %vm372, %v451, %v455
      %v458 = vshrl.u32 %v353, 16
      %v460 = vrot.slane %v458, 4
      %v461 = vshll.u32 %v353, 16
      %v463 = vrot.slane %v461, 5
      %v464 = vor.u32 %v460, %v463
      %v465 = vrot.slane %v464, 4
      %v467 = vshll.u32 %v354, 16
      %v469 = vrot.slane %v467, 5
      %v470 = vsel %vm372, %v465, %v469
      %v472 = vshrl.u32 %v355, 16
      %v474 = vrot.slane %v472, 4
      %v475 = vshll.u32 %v355, 16
      %v477 = vrot.slane %v475, 5
      %v478 = vor.u32 %v474, %v477
      %v479 = vrot.slane %v478, 4
      %v481 = vshll.u32 %v356, 16
      %v483 = vrot.slane %v481, 5
      %v484 = vsel %vm372, %v479, %v483
      %vm501 = vcmask 1042432
      %vm502 = vcmask 1046532
      %vm503 = vmor %vm501, %vm502
      %v504 = vrot.slane %v341, 5
      %v505 = vrot.slane %v504, 4
      %v506 = vrot.slane %v342, 5
      %v507 = vsel %vm503, %v505, %v506
      %v508 = vrot.slane %v343, 5
      %v509 = vrot.slane %v508, 4
      %v510 = vrot.slane %v344, 5
      %v511 = vsel %vm503, %v509, %v510
      %v512 = vrot.slane %v345, 5
      %v513 = vrot.slane %v512, 4
      %v514 = vrot.slane %v346, 5
      %v515 = vsel %vm503, %v513, %v514
      %v516 = vrot.slane %v347, 5
      %v517 = vrot.slane %v516, 4
      %v518 = vrot.slane %v348, 5
      %v519 = vsel %vm503, %v517, %v518
      %v520 = vrot.slane %v349, 5
      %v521 = vrot.slane %v520, 4
      %v522 = vrot.slane %v350, 5
      %v523 = vsel %vm503, %v521, %v522
      %v524 = vrot.slane %v351, 5
      %v525 = vrot.slane %v524, 4
      %v526 = vrot.slane %v352, 5
      %v527 = vsel %vm503, %v525, %v526
      %v528 = vrot.slane %v353, 5
      %v529 = vrot.slane %v528, 4
      %v530 = vrot.slane %v354, 5
      %v531 = vsel %vm503, %v529, %v530
      %v532 = vrot.slane %v355, 5
      %v533 = vrot.slane %v532, 4
      %v534 = vrot.slane %v356, 5
      %v535 = vsel %vm503, %v533, %v534
      %v537 = vshrl.u32 %v357, 16
      %v539 = vrot.slane %v537, 4
      %v540 = vshll.u32 %v357, 16
      %v542 = vrot.slane %v540, 5
      %v543 = vor.u32 %v539, %v542
      %v544 = vrot.slane %v543, 4
      %v546 = vshll.u32 %v358, 16
      %v548 = vrot.slane %v546, 5
      %v549 = vsel %vm372, %v544, %v548
      %v552 = vrot.slane %v357, 5
      %v553 = vrot.slane %v552, 4
      %v554 = vrot.slane %v358, 5
      %v555 = vsel %vm503, %v553, %v554
      %v557 = vshrl.u32 %v359, 16
      %v559 = vrot.slane %v557, 4
      %v560 = vshll.u32 %v359, 16
      %v562 = vrot.slane %v560, 5
      %v563 = vor.u32 %v559, %v562
      %v564 = vrot.slane %v563, 4
      %v566 = vshll.u32 %v360, 16
      %v568 = vrot.slane %v566, 5
      %v569 = vsel %vm372, %v564, %v568
      %v572 = vrot.slane %v359, 5
      %v573 = vrot.slane %v572, 4
      %v574 = vrot.slane %v360, 5
      %v575 = vsel %vm503, %v573, %v574
      %v576 = vunpack.c.l.b16 %v341
      %v577 = vunpack.c.l.b16 %v343
      %v578 = vunpack.c.l.b16 %v345
      %v579 = vunpack.c.l.b16 %v347
      %v580 = vunpack.c.l.b16 %v349
      %v581 = vunpack.c.l.b16 %v351
      %v582 = vunpack.c.l.b16 %v353
      %v583 = vunpack.c.l.b16 %v355
      %v584 = vpack.c.b16 %v577, %v576
      %v585 = vpack.c.b16 %v579, %v578
      %v586 = vpack.c.b16 %v581, %v580
      %v587 = vpack.c.b16 %v583, %v582
      %v588 = vunpack.c.l.b16 %v386
      %v589 = vunpack.c.l.b16 %v400
      %v590 = vunpack.c.l.b16 %v414
      %v591 = vunpack.c.l.b16 %v428
      %v592 = vunpack.c.l.b16 %v442
      %v593 = vunpack.c.l.b16 %v456
      %v594 = vunpack.c.l.b16 %v470
      %v595 = vunpack.c.l.b16 %v484
      %v596 = vpack.c.b16 %v589, %v588
      %v597 = vpack.c.b16 %v591, %v590
      %v598 = vpack.c.b16 %v593, %v592
      %v599 = vpack.c.b16 %v595, %v594
      %600 = vrot.lane.b32.xlu0 %v596, 8
      %v601 = vpop.permute.xlu0 %600
      %602 = vrot.lane.b32.xlu0 %v597, 8
      %v603 = vpop.permute.xlu0 %602
      %604 = vrot.lane.b32.xlu0 %v598, 8
      %v605 = vpop.permute.xlu0 %604
      %606 = vrot.lane.b32.xlu0 %v599, 8
      %v607 = vpop.permute.xlu0 %606
      %v608 = vunpack.c.l.b16 %v507
      %v609 = vunpack.c.l.b16 %v511
      %v610 = vunpack.c.l.b16 %v515
      %v611 = vunpack.c.l.b16 %v519
      %v612 = vunpack.c.l.b16 %v523
      %v613 = vunpack.c.l.b16 %v527
      %v614 = vunpack.c.l.b16 %v531
      %v615 = vunpack.c.l.b16 %v535
      %v616 = vpack.c.b16 %v609, %v608
      %v617 = vpack.c.b16 %v611, %v610
      %v618 = vpack.c.b16 %v613, %v612
      %v619 = vpack.c.b16 %v615, %v614
      %620 = vrot.lane.b32.xlu0 %v616, 16
      %v621 = vpop.permute.xlu0 %620
      %622 = vrot.lane.b32.xlu0 %v617, 16
      %v623 = vpop.permute.xlu0 %622
      %624 = vrot.lane.b32.xlu0 %v618, 16
      %v625 = vpop.permute.xlu0 %624
      %626 = vrot.lane.b32.xlu0 %v619, 16
      %v627 = vpop.permute.xlu0 %626
      %v628 = vunpack.c.l.b16 %v357
      %v629 = vpack.c.b16 %v578, %v577
      %v630 = vpack.c.b16 %v580, %v579
      %v631 = vpack.c.b16 %v582, %v581
      %v632 = vpack.c.b16 %v628, %v583
      %633 = vrot.lane.b32.xlu0 %v629, 24
      %v634 = vpop.permute.xlu0 %633
      %635 = vrot.lane.b32.xlu0 %v630, 24
      %v636 = vpop.permute.xlu0 %635
      %637 = vrot.lane.b32.xlu0 %v631, 24
      %v638 = vpop.permute.xlu0 %637
      %639 = vrot.lane.b32.xlu0 %v632, 24
      %v640 = vpop.permute.xlu0 %639
      %v641 = vunpack.c.l.b16 %v549
      %v642 = vpack.c.b16 %v590, %v589
      %v643 = vpack.c.b16 %v592, %v591
      %v644 = vpack.c.b16 %v594, %v593
      %v645 = vpack.c.b16 %v641, %v595
      %646 = vrot.lane.b32.xlu0 %v642, 32
      %v647 = vpop.permute.xlu0 %646
      %648 = vrot.lane.b32.xlu0 %v643, 32
      %v649 = vpop.permute.xlu0 %648
      %650 = vrot.lane.b32.xlu0 %v644, 32
      %v651 = vpop.permute.xlu0 %650
      %652 = vrot.lane.b32.xlu0 %v645, 32
      %v653 = vpop.permute.xlu0 %652
      %v654 = vunpack.c.l.b16 %v555
      %v655 = vpack.c.b16 %v610, %v609
      %v656 = vpack.c.b16 %v612, %v611
      %v657 = vpack.c.b16 %v614, %v613
      %v658 = vpack.c.b16 %v654, %v615
      %659 = vrot.lane.b32.xlu0 %v655, 40
      %v660 = vpop.permute.xlu0 %659
      %661 = vrot.lane.b32.xlu0 %v656, 40
      %v662 = vpop.permute.xlu0 %661
      %663 = vrot.lane.b32.xlu0 %v657, 40
      %v664 = vpop.permute.xlu0 %663
      %665 = vrot.lane.b32.xlu0 %v658, 40
      %v666 = vpop.permute.xlu0 %665
      %v667 = vunpack.c.l.b16 %v359
      %v668 = vpack.c.b16 %v667, %v628
      %669 = vrot.lane.b32.xlu0 %v585, 48
      %v670 = vpop.permute.xlu0 %669
      %671 = vrot.lane.b32.xlu0 %v586, 48
      %v672 = vpop.permute.xlu0 %671
      %673 = vrot.lane.b32.xlu0 %v587, 48
      %v674 = vpop.permute.xlu0 %673
      %675 = vrot.lane.b32.xlu0 %v668, 48
      %v676 = vpop.permute.xlu0 %675
      %v677 = vunpack.c.l.b16 %v569
      %v678 = vpack.c.b16 %v677, %v641
      %679 = vrot.lane.b32.xlu0 %v597, 56
      %v680 = vpop.permute.xlu0 %679
      %681 = vrot.lane.b32.xlu0 %v598, 56
      %v682 = vpop.permute.xlu0 %681
      %683 = vrot.lane.b32.xlu0 %v599, 56
      %v684 = vpop.permute.xlu0 %683
      %685 = vrot.lane.b32.xlu0 %v678, 56
      %v686 = vpop.permute.xlu0 %685
      %v687 = vunpack.c.l.b16 %v575
      %v688 = vpack.c.b16 %v687, %v654
      %689 = vrot.lane.b32.xlu0 %v617, 64
      %v690 = vpop.permute.xlu0 %689
      %691 = vrot.lane.b32.xlu0 %v618, 64
      %v692 = vpop.permute.xlu0 %691
      %693 = vrot.lane.b32.xlu0 %v619, 64
      %v694 = vpop.permute.xlu0 %693
      %695 = vrot.lane.b32.xlu0 %v688, 64
      %v696 = vpop.permute.xlu0 %695
      %vm697 = vcmask 64512
      %v700 = vsel %vm697, %v584, %v601
      %v703 = vsel %vm697, %v585, %v603
      %v706 = vsel %vm697, %v586, %v605
      %v709 = vsel %vm697, %v587, %v607
      %vm710 = vcmask 130048
      %v712 = vsel %vm710, %v700, %v621
      %v714 = vsel %vm710, %v703, %v623
      %v716 = vsel %vm710, %v706, %v625
      %v718 = vsel %vm710, %v709, %v627
      %vm719 = vcmask 195584
      %v721 = vsel %vm719, %v712, %v634
      %v723 = vsel %vm719, %v714, %v636
      %v725 = vsel %vm719, %v716, %v638
      %v727 = vsel %vm719, %v718, %v640
      %vm728 = vcmask 261120
      %v730 = vsel %vm728, %v721, %v647
      %v732 = vsel %vm728, %v723, %v649
      %v734 = vsel %vm728, %v725, %v651
      %v736 = vsel %vm728, %v727, %v653
      %vm737 = vcmask 326656
      %v739 = vsel %vm737, %v730, %v660
      %v741 = vsel %vm737, %v732, %v662
      %v743 = vsel %vm737, %v734, %v664
      %v745 = vsel %vm737, %v736, %v666
      %vm746 = vcmask 392192
      %v748 = vsel %vm746, %v739, %v670
      %v750 = vsel %vm746, %v741, %v672
      %v752 = vsel %vm746, %v743, %v674
      %v754 = vsel %vm746, %v745, %v676
      %vm755 = vcmask 457728
      %v757 = vsel %vm755, %v748, %v680
      %v759 = vsel %vm755, %v750, %v682
      %v761 = vsel %vm755, %v752, %v684
      %v763 = vsel %vm755, %v754, %v686
      %vm764 = vcmask 523264
      %v766 = vsel %vm764, %v757, %v690
      %v768 = vsel %vm764, %v759, %v692
      %v770 = vsel %vm764, %v761, %v694
      %v772 = vsel %vm764, %v763, %v696
      %v773 = vld [vmem:[%s325] sm:$0xff]
      %v774 = vld [vmem:[%s325 + $0x10] sm:$0xff]
      %v775 = vld [vmem:[%s325 + $0x20] sm:$0xff]
      %v776 = vld [vmem:[%s325 + $0x30] sm:$0xff]
      %v777 = vld [vmem:[%s325 + $0x40] sm:$0xff]
      %v778 = vld [vmem:[%s325 + $0x50] sm:$0xff]
      %v779 = vld [vmem:[%s325 + $0x60] sm:$0xff]
      %v780 = vld [vmem:[%s325 + $0x70] sm:$0xff]
      %v781 = vld [vmem:[%s4] sm:$0x1]
      %v783 = vlaneseq
      %v784 = vshrl.u32 %v783, 7
      %v785 = vsub.s32 0, %v784
      %v786 = vrot.slane %v781, %v785
      %v788 = vmul.f32 %v773, %v786
      %v789 = vmul.f32 %v774, %v786
      %v790 = vmul.f32 %v775, %v786
      %v791 = vmul.f32 %v776, %v786
      %v792 = vmul.f32 %v777, %v786
      %v793 = vmul.f32 %v778, %v786
      %v794 = vmul.f32 %v779, %v786
      %v795 = vmul.f32 %v780, %v786
      %v796 = vld [vmem:[%s5] sm:$0x1]
      %v798 = vlaneseq
      %v799 = vshrl.u32 %v798, 7
      %v800 = vsub.s32 0, %v799
      %v801 = vrot.slane %v796, %v800
      %v803 = vadd.f32 %v788, %v801
      %v804 = vadd.f32 %v789, %v801
      %v805 = vadd.f32 %v790, %v801
      %v806 = vadd.f32 %v791, %v801
      %v807 = vadd.f32 %v792, %v801
      %v808 = vadd.f32 %v793, %v801
      %v809 = vadd.f32 %v794, %v801
      %v810 = vadd.f32 %v795, %v801
      %v811 = vmul.f32 %v803, 0.1
      %v812 = vmul.f32 %v804, 0.1
      %v813 = vmul.f32 %v805, 0.1
      %v814 = vmul.f32 %v806, 0.1
      %v815 = vmul.f32 %v807, 0.1
      %v816 = vmul.f32 %v808, 0.1
      %v817 = vmul.f32 %v809, 0.1
      %v818 = vmul.f32 %v810, 0.1
      %v819 = vmax.f32 %v803, %v811
      %v820 = vmax.f32 %v804, %v812
      %v821 = vmax.f32 %v805, %v813
      %v822 = vmax.f32 %v806, %v814
      %v823 = vmax.f32 %v807, %v815
      %v824 = vmax.f32 %v808, %v816
      %v825 = vmax.f32 %v809, %v817
      %v826 = vmax.f32 %v810, %v818
      %v827 = vpack.c.bf16 %v819, %v819
      %v828 = vpack.c.bf16 %v820, %v820
      %v829 = vpack.c.bf16 %v821, %v821
      %v830 = vpack.c.bf16 %v822, %v822
      %v831 = vpack.c.bf16 %v823, %v823
      %v832 = vpack.c.bf16 %v824, %v824
      %v833 = vpack.c.bf16 %v825, %v825
      %v834 = vpack.c.bf16 %v826, %v826
      %v835 = vld [vmem:[%s331] sm:$0x3]
      %v844 = vunpack.c.l.b16 %v827
      %v845 = vunpack.c.l.b16 %v828
      %v846 = vunpack.c.l.b16 %v829
      %v847 = vunpack.c.l.b16 %v830
      %v848 = vunpack.c.l.b16 %v831
      %v849 = vunpack.c.l.b16 %v832
      %v850 = vunpack.c.l.b16 %v833
      %v851 = vunpack.c.l.b16 %v834
      %v852 = vpack.c.b16 %v845, %v844
      %v853 = vpack.c.b16 %v847, %v846
      %v854 = vpack.c.b16 %v849, %v848
      %v855 = vpack.c.b16 %v851, %v850
      %vm856 = vcmask 31744
      %v858 = vsel %vm856, %v852, 0
      %v861 = vsel %vm856, %v853, 0
      %v864 = vsel %vm856, %v854, 0
      %v867 = vsel %vm856, %v855, 0
      %vm869 = vcmask 1041408
      %v871 = vsel %vm869, %v835, 0
      %873 = vmatprep.subr.bf16.mxu0 0
      %874 = vmatpush1.bf16.msra.mxu0 %v871
      %875 = vmatprep.subr.bf16.mxu0 0
      %876 = vmatpush1.bf16.msra.mxu0 0
      %877 = vmatprep.subr.bf16.mxu0 0
      %878 = vmatpush1.bf16.msra.mxu0 0
      %879 = vmatprep.subr.bf16.mxu0 0
      %880 = vmatpush1.bf16.msra.mxu0 0
      %881 = vmatprep.subr.bf16.mxu0 0
      %882 = vmatpush1.bf16.msra.mxu0 0
      %883 = vmatprep.subr.bf16.mxu0 0
      %884 = vmatpush1.bf16.msra.mxu0 0
      %885 = vmatprep.subr.bf16.mxu0 0
      %886 = vmatpush1.bf16.msra.mxu0 0
      %887 = vmatprep.subr.bf16.mxu0 0
      %888 = vmatpush1.bf16.msra.mxu0 0
      %889 = vmatprep.subr.bf16.mxu0 0
      %890 = vmatpush1.bf16.msra.mxu0 0
      %891 = vmatprep.subr.bf16.mxu0 0
      %892 = vmatpush1.bf16.msra.mxu0 0
      %893 = vmatprep.subr.bf16.mxu0 0
      %894 = vmatpush1.bf16.msra.mxu0 0
      %895 = vmatprep.subr.bf16.mxu0 0
      %896 = vmatpush1.bf16.msra.mxu0 0
      %897 = vmatprep.subr.bf16.mxu0 0
      %898 = vmatpush1.bf16.msra.mxu0 0
      %899 = vmatprep.subr.bf16.mxu0 0
      %900 = vmatpush1.bf16.msra.mxu0 0
      %901 = vmatprep.subr.bf16.mxu0 0
      %902 = vmatpush1.bf16.msra.mxu0 0
      %903 = vmatprep.subr.bf16.mxu0 0
      %904 = vmatpush1.bf16.msra.mxu0 0
      %905 = vmatprep.mubr.bf16.mxu0 0
      %906 = vmatmul.mubr.bf16.gmra.mrb[0].mxu0 %v858
      %v907 = vpop.f32.mrb[0].mxu0
      %v908 = vadd.f32 0.0, %v907
      %v909 = vpop.f32.mrb[0].mxu0
      %v910 = vpop.f32.mrb[0].mxu0
      %v911 = vadd.f32 0.0, %v910
      %v912 = vpop.f32.mrb[0].mxu0
      %913 = vmatprep.mubr.bf16.mxu0 0
      %914 = vmatmul.mubr.bf16.gmra.mrb[0].mxu0 %v861
      %v915 = vpop.f32.mrb[0].mxu0
      %v916 = vadd.f32 0.0, %v915
      %v917 = vpop.f32.mrb[0].mxu0
      %v918 = vpop.f32.mrb[0].mxu0
      %v919 = vadd.f32 0.0, %v918
      %v920 = vpop.f32.mrb[0].mxu0
      %921 = vmatprep.mubr.bf16.mxu0 0
      %922 = vmatmul.mubr.bf16.gmra.mrb[0].mxu0 %v864
      %v923 = vpop.f32.mrb[0].mxu0
      %v924 = vadd.f32 0.0, %v923
      %v925 = vpop.f32.mrb[0].mxu0
      %v926 = vpop.f32.mrb[0].mxu0
      %v927 = vadd.f32 0.0, %v926
      %v928 = vpop.f32.mrb[0].mxu0
      %929 = vmatprep.mubr.bf16.mxu0 0
      %930 = vmatmul.mubr.bf16.gmra.mrb[0].mxu0 %v867
      %v931 = vpop.f32.mrb[0].mxu0
      %v932 = vadd.f32 0.0, %v931
      %v933 = vpop.f32.mrb[0].mxu0
      %v934 = vpop.f32.mrb[0].mxu0
      %v935 = vadd.f32 0.0, %v934
      %v936 = vpop.f32.mrb[0].mxu0
      %937 = vdwg.mxu0
      %v947 = vunpack.c.l.b16 %v361
      %v948 = vunpack.c.l.b16 %v362
      %v949 = vunpack.c.l.b16 %v363
      %v950 = vunpack.c.l.b16 %v364
      %v951 = vunpack.c.l.b16 %v365
      %v952 = vunpack.c.l.b16 %v366
      %v953 = vunpack.c.l.b16 %v367
      %v954 = vunpack.c.l.b16 %v368
      %v955 = vunpack.c.l.b16 %v369
      %v956 = vpack.c.b16 %v948, %v947
      %v957 = vpack.c.b16 %v950, %v949
      %v958 = vpack.c.b16 %v952, %v951
      %v959 = vpack.c.b16 %v954, %v953
      %v960 = vpack.c.b16 %v955, %v955
      %vm965 = vcmask 588800
      %v966 = vsel %vm965, %v766, 0
      %v968 = vsel %vm965, %v768, 0
      %v970 = vsel %vm965, %v770, 0
      %v972 = vsel %vm965, %v772, 0
      %vm974 = vcmask 1043456
      %v976 = vsel %vm974, %v960, 0
      %978 = vmatprep.subr.bf16.mxu0 0
      %979 = vmatpush1.bf16.msra.mxu0 %v956
      %980 = vmatprep.subr.bf16.mxu0 0
      %981 = vmatpush1.bf16.msra.mxu0 %v957
      %982 = vmatprep.subr.bf16.mxu0 0
      %983 = vmatpush1.bf16.msra.mxu0 %v958
      %984 = vmatprep.subr.bf16.mxu0 0
      %985 = vmatpush1.bf16.msra.mxu0 %v959
      %986 = vmatprep.subr.bf16.mxu0 0
      %987 = vmatpush1.bf16.msra.mxu0 %v976
      %988 = vmatprep.subr.bf16.mxu0 0
      %989 = vmatpush1.bf16.msra.mxu0 0
      %990 = vmatprep.subr.bf16.mxu0 0
      %991 = vmatpush1.bf16.msra.mxu0 0
      %992 = vmatprep.subr.bf16.mxu0 0
      %993 = vmatpush1.bf16.msra.mxu0 0
      %994 = vmatprep.subr.bf16.mxu0 0
      %995 = vmatpush1.bf16.msra.mxu0 0
      %996 = vmatprep.subr.bf16.mxu0 0
      %997 = vmatpush1.bf16.msra.mxu0 0
      %998 = vmatprep.subr.bf16.mxu0 0
      %999 = vmatpush1.bf16.msra.mxu0 0
      %1000 = vmatprep.subr.bf16.mxu0 0
      %1001 = vmatpush1.bf16.msra.mxu0 0
      %1002 = vmatprep.subr.bf16.mxu0 0
      %1003 = vmatpush1.bf16.msra.mxu0 0
      %1004 = vmatprep.subr.bf16.mxu0 0
      %1005 = vmatpush1.bf16.msra.mxu0 0
      %1006 = vmatprep.subr.bf16.mxu0 0
      %1007 = vmatpush1.bf16.msra.mxu0 0
      %1008 = vmatprep.subr.bf16.mxu0 0
      %1009 = vmatpush1.bf16.msra.mxu0 0
      %1010 = vmatprep.mubr.bf16.mxu0 0
      %1011 = vmatmul.mubr.bf16.gmra.mrb[0].mxu0 %v966
      %v1012 = vpop.f32.mrb[0].mxu0
      %v1013 = vadd.f32 %v908, %v1012
      %v1014 = vpop.f32.mrb[0].mxu0
      %v1015 = vpop.f32.mrb[0].mxu0
      %v1016 = vadd.f32 %v911, %v1015
      %v1017 = vpop.f32.mrb[0].mxu0
      %1018 = vmatprep.mubr.bf16.mxu0 0
      %1019 = vmatmul.mubr.bf16.gmra.mrb[0].mxu0 %v968
      %v1020 = vpop.f32.mrb[0].mxu0
      %v1021 = vadd.f32 %v916, %v1020
      %v1022 = vpop.f32.mrb[0].mxu0
      %v1023 = vpop.f32.mrb[0].mxu0
      %v1024 = vadd.f32 %v919, %v1023
      %v1025 = vpop.f32.mrb[0].mxu0
      %1026 = vmatprep.mubr.bf16.mxu0 0
      %1027 = vmatmul.mubr.bf16.gmra.mrb[0].mxu0 %v970
      %v1028 = vpop.f32.mrb[0].mxu0
      %v1029 = vadd.f32 %v924, %v1028
      %v1030 = vpop.f32.mrb[0].mxu0
      %v1031 = vpop.f32.mrb[0].mxu0
      %v1032 = vadd.f32 %v927, %v1031
      %v1033 = vpop.f32.mrb[0].mxu0
      %1034 = vmatprep.mubr.bf16.mxu0 0
      %1035 = vmatmul.mubr.bf16.gmra.mrb[0].mxu0 %v972
      %v1036 = vpop.f32.mrb[0].mxu0
      %v1037 = vadd.f32 %v932, %v1036
      %v1038 = vpop.f32.mrb[0].mxu0
      %v1039 = vpop.f32.mrb[0].mxu0
      %v1040 = vadd.f32 %v935, %v1039
      %v1041 = vpop.f32.mrb[0].mxu0
      %1042 = vdwg.mxu0
      %1043 = vst.msk [vmem:[%s339] sm:$0xff] %vm697, %v1013
      %1044 = vst.msk [vmem:[%s339 + $0x8] sm:$0xff] %vm697, %v1016
      %1045 = vst.msk [vmem:[%s339 + $0x10] sm:$0xff] %vm697, %v1021
      %1046 = vst.msk [vmem:[%s339 + $0x18] sm:$0xff] %vm697, %v1024
      %1047 = vst.msk [vmem:[%s339 + $0x20] sm:$0xff] %vm697, %v1029
      %1048 = vst.msk [vmem:[%s339 + $0x28] sm:$0xff] %vm697, %v1032
      %1049 = vst.msk [vmem:[%s339 + $0x30] sm:$0xff] %vm697, %v1037
      %1050 = vst.msk [vmem:[%s339 + $0x38] sm:$0xff] %vm697, %v1040
      %p1051 = scmp.lt.s32.totalorder %s21, 1
      %s1052 = scalar_select %p1051, %s21, 1
      %p1053 = scmp.lt.s32.totalorder %s22, 0
      %s1054 = scalar_select %p1053, %s22, 0
      %s1055 = smul.addr %s1052, 8
      %s1056 = sadd.s32 %s1054, %s1055
      %s1057 = smul.addr %s1056, 8
      %s1058 = scalar_lea.vmem %s6, %s1057
      // Predicated region
      $region45: #{network_block_forward.5} parent=43 // pred_check
        %p1059 = pneg %p199
      $region46: #{network_block_forward.5} parent=43 // pred_check_branch
        %1061 = sbr.rel (%p1059) target = $region48
      $region47: #{network_block_forward.5} parent=43 // pred_region
        _
      $region48: #{network_block_forward.5} parent=43 // pred_fallthru
        _
    $region44: #{network_block_forward.5} parent=5 // pred_fallthru
      _
    %p1062 = scmp.le.s32.totalorder 2, %s12
    // Predicated region
    $region49: #{network_block_forward.5} parent=5 // pred_check
      %p1063 = pneg %p1062
    $region50: #{network_block_forward.5} parent=5 // pred_check_branch
      %1065 = sbr.rel (%p1063) target = $region52
    $region51: #{network_block_forward.5} parent=5 // pred_region
      %s1066 = ssub.s32 %s12, 2
      // Predicated region
      $region53: #{network_block_forward.5} parent=51 // pred_check
        %p1067 = pneg %p205
      $region54: #{network_block_forward.5} parent=51 // pred_check_branch
        %1069 = sbr.rel (%p1067) target = $region56
      $region55: #{network_block_forward.5} parent=51 // pred_region
        %p1070 = scmp.lt.s32.totalorder %s23, 1
        %s1071 = scalar_select %p1070, %s23, 1
        %p1072 = scmp.lt.s32.totalorder %s24, 0
        %s1073 = scalar_select %p1072, %s24, 0
        %s1074 = smul.addr %s1071, 8
        %s1075 = sadd.s32 %s1073, %s1074
        %s1076 = smul.addr %s1075, 8
        %s1077 = scalar_lea.vmem %s6, %s1076
      $region56: #{network_block_forward.5} parent=51 // pred_fallthru
        _
    $region52: #{network_block_forward.5} parent=5 // pred_fallthru
      _
  $region6: #{network_block_forward.5} parent=0 // loop_footer
    %s16 = sadd.s32 1, %s12
  $region7: #{network_block_forward.5} parent=0 // loop_footer_branch
    %11 = sbr.rel target = $region3
  $region8: #{network_block_forward.5} parent=0 // loop_exit
    _

// kernel: network_block_forward.6
$region0: #{network_block_forward.6}
  #allocation0 [shape = 'u32[]', space=smem, size = 0x4, offset = 0x4, fixed_abs, tag = 'smem constant byte address 0x4 - core index']
  #allocation1 [shape = 'u32[144,128]{1,0:T(1,128)}', space=vmem, size = 0x12000, scoped, tag = 'internal scratch']
  %s0 = inlined_call_operand.vmem [shape: f32[2,10,10,8], index: 0, kind: input, shape index: {}]
  %s1 = inlined_call_operand.vmem [shape: bf16[72,8], index: 1, kind: input, shape index: {}]
  %s2 = inlined_call_operand.vmem [shape: f32[1,8], index: 2, kind: input, shape index: {}]
  %s3 = inlined_call_operand.vmem [shape: f32[1,8], index: 3, kind: input, shape index: {}]
  %s4 = inlined_call_operand.vmem [shape: f32[1,8], index: 4, kind: input, shape index: {}]
  %s5 = inlined_call_operand.vmem [shape: f32[1,8], index: 5, kind: input, shape index: {}]
  %s6 = inlined_call_operand.vmem [shape: bf16[2,10,10,8], index: 6, kind: output, shape index: {}]
  %s7 = sld [smem:[#allocation0]]
  $region57: #{network_block_forward.6} parent=0
    _
  %s9 = ssub.s32 1, %s7
  %s10 = scalar_select 0, %s9, %s7
  loop: start=0, step=1, limit=4
  $region2: #{network_block_forward.6} parent=0 // loop_pre_header
    _
  $region3: #{network_block_forward.6} parent=0 // loop_header
    %s12 = sphi 0, %s16
    %p13 = scmp.ge.s32.totalorder %s12, 4
    %s19 = sphi 0, %s31
    %s20 = sphi 0, %s27
    %s21 = sphi 0, %s19
    %s22 = sphi 0, %s20
    %s23 = sphi 0, %s21
    %s24 = sphi 0, %s22
    %s34 = sphi 0, %s36
    %s37 = sphi 0, %s34
    %s38 = sphi 0, %s37
    %s54 = sphi 0, %s38
    %s60 = sphi 0, %s62
    %s63 = sphi 0, %s60
    %s64 = sphi 0, %s63
    %s80 = sphi 0, %s64
    %s84 = sphi 0, %s84
    %s86 = sphi 0, %s84
    %s87 = sphi 0, %s86
    %s101 = sphi 0, %s87
    %s105 = sphi 0, %s105
    %s107 = sphi 0, %s105
    %s108 = sphi 0, %s107
    %s122 = sphi 0, %s108
    %s128 = sphi 0, %s130
    %s131 = sphi 0, %s128
    %s132 = sphi 0, %s131
    %s148 = sphi 0, %s132
    %s154 = sphi 0, %s156
    %s157 = sphi 0, %s154
    %s158 = sphi 0, %s157
    %s174 = sphi 0, %s158
    %s182 = sphi 0, %s184
    %s185 = sphi 0, %s182
    %s186 = sphi 0, %s185
    %s202 = sphi 0, %s186
  $region4: #{network_block_forward.6} parent=0 // loop_header_branch
    %15 = sbr.rel (%p13) target = $region8
  $region5: #{network_block_forward.6} parent=0 // loop_body
    %s17 = ssub.s32 %s12, 1
    %s18 = ssub.s32 %s12, 2
    %s25 = sadd.s32 1, %s20
    %p26 = scmp.ge.s32.totalorder %s25, 1
    %s27 = scalar_select %p26, 0, %s25
    %s28 = sadd.s32 1, %s19
    %s29 = scalar_select %p26, %s28, %s19
    %p30 = scmp.ge.s32.totalorder %s29, 2
    %s31 = scalar_select %p30, 0, %s29
    %s32 = ssub.s32 %s19, %s31
    %p33 = scmp.eq.s32.totalorder %s32, 0
    %s35 = sadd.s32 %s34, 1
    %s36 = scalar_select %p33, %s34, %s35
    %p39 = pneg %p33
    %p40 = scmp.eq.s32.totalorder %s12, 1
    %p41 = por %p39, %p40
    %p42 = scmp.ne.s32.totalorder %s34, %s37
    %p43 = scmp.eq.s32.totalorder %s12, 0
    %p44 = por %p42, %p43
    %p45 = scmp.ne.s32.totalorder %s34, %s37
    %p46 = scmp.eq.s32.totalorder %s17, 1
    %p47 = por %p45, %p46
    %p48 = scmp.ne.s32.totalorder %s37, %s38
    %p49 = scmp.eq.s32.totalorder %s17, 0
    %p50 = por %p48, %p49
    %p51 = scmp.ne.s32.totalorder %s37, %s38
    %p52 = scmp.eq.s32.totalorder %s18, 1
    %p53 = por %p51, %p52
    %p55 = scmp.ne.s32.totalorder %s38, %s54
    %p56 = scmp.eq.s32.totalorder %s18, 0
    %p57 = por %p55, %p56
    %s58 = ssub.s32 %s20, %s27
    %p59 = scmp.eq.s32.totalorder %s58, 0
    %s61 = sadd.s32 %s60, 1
    %s62 = scalar_select %p59, %s60, %s61
    %p65 = pneg %p59
    %p66 = scmp.eq.s32.totalorder %s12, 1
    %p67 = por %p65, %p66
    %p68 = scmp.ne.s32.totalorder %s60, %s63
    %p69 = scmp.eq.s32.totalorder %s12, 0
    %p70 = por %p68, %p69
    %p71 = scmp.ne.s32.totalorder %s60, %s63
    %p72 = scmp.eq.s32.totalorder %s17, 1
    %p73 = por %p71, %p72
    %p74 = scmp.ne.s32.totalorder %s63, %s64
    %p75 = scmp.eq.s32.totalorder %s17, 0
    %p76 = por %p74, %p75
    %p77 = scmp.ne.s32.totalorder %s63, %s64
    %p78 = scmp.eq.s32.totalorder %s18, 1
    %p79 = por %p77, %p78
    %p81 = scmp.ne.s32.totalorder %s64, %s80
    %p82 = scmp.eq.s32.totalorder %s18, 0
    %p83 = por %p81, %p82
    %s85 = sadd.s32 %s84, 1
    %p88 = scmp.eq.s32.totalorder %s12, 1
    %p89 = scmp.ne.s32.totalorder %s84, %s86
    %p90 = scmp.eq.s32.totalorder %s12, 0
    %p91 = por %p89, %p90
    %p92 = scmp.ne.s32.totalorder %s84, %s86
    %p93 = scmp.eq.s32.totalorder %s17, 1
    %p94 = por %p92, %p93
    %p95 = scmp.ne.s32.totalorder %s86, %s87
    %p96 = scmp.eq.s32.totalorder %s17, 0
    %p97 = por %p95, %p96
    %p98 = scmp.ne.s32.totalorder %s86, %s87
    %p99 = scmp.eq.s32.totalorder %s18, 1
    %p100 = por %p98, %p99
    %p102 = scmp.ne.s32.totalorder %s87, %s101
    %p103 = scmp.eq.s32.totalorder %s18, 0
    %p104 = por %p102, %p103
    %s106 = sadd.s32 %s105, 1
    %p109 = scmp.eq.s32.totalorder %s12, 1
    %p110 = scmp.ne.s32.totalorder %s105, %s107
    %p111 = scmp.eq.s32.totalorder %s12, 0
    %p112 = por %p110, %p111
    %p113 = scmp.ne.s32.totalorder %s105, %s107
    %p114 = scmp.eq.s32.totalorder %s17, 1
    %p115 = por %p113, %p114
    %p116 = scmp.ne.s32.totalorder %s107, %s108
    %p117 = scmp.eq.s32.totalorder %s17, 0
    %p118 = por %p116, %p117
    %p119 = scmp.ne.s32.totalorder %s107, %s108
    %p120 = scmp.eq.s32.totalorder %s18, 1
    %p121 = por %p119, %p120
    %p123 = scmp.ne.s32.totalorder %s108, %s122
    %p124 = scmp.eq.s32.totalorder %s18, 0
    %p125 = por %p123, %p124
    %s126 = ssub.s32 %s20, %s27
    %p127 = scmp.eq.s32.totalorder %s126, 0
    %s129 = sadd.s32 %s128, 1
    %s130 = scalar_select %p127, %s128, %s129
    %p133 = pneg %p127
    %p134 = scmp.eq.s32.totalorder %s12, 1
    %p135 = por %p133, %p134
    %p136 = scmp.ne.s32.totalorder %s128, %s131
    %p137 = scmp.eq.s32.totalorder %s12, 0
    %p138 = por %p136, %p137
    %p139 = scmp.ne.s32.totalorder %s128, %s131
    %p140 = scmp.eq.s32.totalorder %s17, 1
    %p141 = por %p139, %p140
    %p142 = scmp.ne.s32.totalorder %s131, %s132
    %p143 = scmp.eq.s32.totalorder %s17, 0
    %p144 = por %p142, %p143
    %p145 = scmp.ne.s32.totalorder %s131, %s132
    %p146 = scmp.eq.s32.totalorder %s18, 1
    %p147 = por %p145, %p146
    %p149 = scmp.ne.s32.totalorder %s132, %s148
    %p150 = scmp.eq.s32.totalorder %s18, 0
    %p151 = por %p149, %p150
    %s152 = ssub.s32 %s20, %s27
    %p153 = scmp.eq.s32.totalorder %s152, 0
    %s155 = sadd.s32 %s154, 1
    %s156 = scalar_select %p153, %s154, %s155
    %p159 = pneg %p153
    %p160 = scmp.eq.s32.totalorder %s12, 1
    %p161 = por %p159, %p160
    %p162 = scmp.ne.s32.totalorder %s154, %s157
    %p163 = scmp.eq.s32.totalorder %s12, 0
    %p164 = por %p162, %p163
    %p165 = scmp.ne.s32.totalorder %s154, %s157
    %p166 = scmp.eq.s32.totalorder %s17, 1
    %p167 = por %p165, %p166
    %p168 = scmp.ne.s32.totalorder %s157, %s158
    %p169 = scmp.eq.s32.totalorder %s17, 0
    %p170 = por %p168, %p169
    %p171 = scmp.ne.s32.totalorder %s157, %s158
    %p172 = scmp.eq.s32.totalorder %s18, 1
    %p173 = por %p171, %p172
    %p175 = scmp.ne.s32.totalorder %s158, %s174
    %p176 = scmp.eq.s32.totalorder %s18, 0
    %p177 = por %p175, %p176
    %s178 = ssub.s32 %s19, %s31
    %s179 = ssub.s32 %s20, %s27
    %s180 = sor.u32 %s178, %s179
    %p181 = scmp.eq.s32.totalorder %s180, 0
    %s183 = sadd.s32 %s182, 1
    %s184 = scalar_select %p181, %s182, %s183
    %p187 = pneg %p181
    %p188 = scmp.eq.s32.totalorder %s12, 1
    %p189 = por %p187, %p188
    %p190 = scmp.ne.s32.totalorder %s182, %s185
    %p191 = scmp.eq.s32.totalorder %s12, 0
    %p192 = por %p190, %p191
    %p193 = scmp.ne.s32.totalorder %s182, %s185
    %p194 = scmp.eq.s32.totalorder %s17, 1
    %p195 = por %p193, %p194
    %p196 = scmp.ne.s32.totalorder %s185, %s186
    %p197 = scmp.eq.s32.totalorder %s17, 0
    %p198 = por %p196, %p197
    %p199 = scmp.ne.s32.totalorder %s185, %s186
    %p200 = scmp.eq.s32.totalorder %s18, 1
    %p201 = por %p199, %p200
    %p203 = scmp.ne.s32.totalorder %s186, %s202
    %p204 = scmp.eq.s32.totalorder %s18, 0
    %p205 = por %p203, %p204
    %p206 = scmp.le.s32.totalorder 1, %s12
    %p207 = scmp.lt.s32.totalorder %s12, 3
    %p208 = pnand %p206, %p207
    %p209 = pneg %p208
    // Predicated region
    $region9: #{network_block_forward.6} parent=5 // pred_check
      _
    $region10: #{network_block_forward.6} parent=5 // pred_check_branch
      %211 = sbr.rel (%p208) target = $region12
    $region11: #{network_block_forward.6} parent=5 // pred_region
      %s212 = ssub.s32 %s12, 1
      // Predicated region
      $region13: #{network_block_forward.6} parent=11 // pred_check
        %p213 = pneg %p76
      $region14: #{network_block_forward.6} parent=11 // pred_check_branch
        %215 = sbr.rel (%p213) target = $region16
      $region15: #{network_block_forward.6} parent=11 // pred_region
        %p216 = scmp.lt.s32.totalorder %s22, 0
        %s217 = scalar_select %p216, %s22, 0
        %s218 = smul.addr %s217, 4
        %s219 = scalar_lea.vmem %s1, %s218
      $region16: #{network_block_forward.6} parent=11 // pred_fallthru
        _
      // Predicated region
      $region17: #{network_block_forward.6} parent=11 // pred_check
        %p220 = pneg %p97
      $region18: #{network_block_forward.6} parent=11 // pred_check_branch
        %222 = sbr.rel (%p220) target = $region20
      $region19: #{network_block_forward.6} parent=11 // pred_region
        _
      $region20: #{network_block_forward.6} parent=11 // pred_fallthru
        _
      // Predicated region
      $region21: #{network_block_forward.6} parent=11 // pred_check
        %p223 = pneg %p118
      $region22: #{network_block_forward.6} parent=11 // pred_check_branch
        %225 = sbr.rel (%p223) target = $region24
      $region23: #{network_block_forward.6} parent=11 // pred_region
        _
      $region24: #{network_block_forward.6} parent=11 // pred_fallthru
        _
      // Predicated region
      $region25: #{network_block_forward.6} parent=11 // pred_check
        %p226 = pneg %p144
      $region26: #{network_block_forward.6} parent=11 // pred_check_branch
        %228 = sbr.rel (%p226) target = $region28
      $region27: #{network_block_forward.6} parent=11 // pred_region
        %p229 = scmp.lt.s32.totalorder %s22, 0
        %s230 = scalar_select %p229, %s22, 0
        %s231 = scalar_lea.vmem %s4, %s230
      $region28: #{network_block_forward.6} parent=11 // pred_fallthru
        _
      // Predicated region
      $region29: #{network_block_forward.6} parent=11 // pred_check
        %p232 = pneg %p170
      $region30: #{network_block_forward.6} parent=11 // pred_check_branch
        %234 = sbr.rel (%p232) target = $region32
      $region31: #{network_block_forward.6} parent=11 // pred_region
        %p235 = scmp.lt.s32.totalorder %s22, 0
        %s236 = scalar_select %p235, %s22, 0
        %s237 = scalar_lea.vmem %s5, %s236
      $region32: #{network_block_forward.6} parent=11 // pred_fallthru
        _
    $region12: #{network_block_forward.6} parent=5 // pred_fallthru
      _
    %p238 = scmp.lt.s32.totalorder %s12, 2
    // Predicated region
    $region33: #{network_block_forward.6} parent=5 // pred_check
      %p239 = pneg %p238
    $region34: #{network_block_forward.6} parent=5 // pred_check_branch
      %241 = sbr.rel (%p239) target = $region36
    $region35: #{network_block_forward.6} parent=5 // pred_region
      // Predicated region
      $region37: #{network_block_forward.6} parent=35 // pred_check
        %p242 = pneg %p44
      $region38: #{network_block_forward.6} parent=35 // pred_check_branch
        %244 = sbr.rel (%p242) target = $region40
      $region39: #{network_block_forward.6} parent=35 // pred_region
        %p245 = scmp.lt.s32.totalorder %s19, 1
        %s246 = scalar_select %p245, %s19, 1
        %s247 = smul.addr %s246, 20
        %s248 = smul.addr %s247, 8
        %s249 = scalar_lea.vmem %s0, %s248
      $region40: #{network_block_forward.6} parent=35 // pred_fallthru
        _
    $region36: #{network_block_forward.6} parent=5 // pred_fallthru
      _
    %p250 = scmp.le.s32.totalorder 1, %s12
    %p251 = scmp.lt.s32.totalorder %s12, 3
    %p252 = pnand %p250, %p251
    %p253 = pneg %p252
    // Predicated region
    $region41: #{network_block_forward.6} parent=5 // pred_check
      _
    $region42: #{network_block_forward.6} parent=5 // pred_check_branch
      %255 = sbr.rel (%p252) target = $region44
    $region43: #{network_block_forward.6} parent=5 // pred_region
      %s256 = ssub.s32 %s12, 1
      %p257 = scmp.lt.s32.totalorder %s21, 1
      %s258 = scalar_select %p257, %s21, 1
      %s259 = smul.addr %s258, 20
      %s260 = smul.addr %s259, 8
      %s261 = scalar_lea.vmem %s0, %s260
      %p262 = pneg %p50
      %p263 = pneg %p47
      %p264 = scmp.lt.s32.totalorder %s22, 0
      %s265 = scalar_select %p264, %s22, 0
      %s266 = smul.addr %s265, 4
      %s267 = scalar_lea.vmem %s1, %s266
      %p268 = pneg %p76
      %p269 = pneg %p73
      %p270 = pneg %p97
      %p271 = pneg %p94
      %p272 = pneg %p118
      %p273 = pneg %p115
      %p274 = scmp.lt.s32.totalorder %s22, 0
      %s275 = scalar_select %p274, %s22, 0
      %s276 = scalar_lea.vmem %s4, %s275
      %p277 = pneg %p144
      %p278 = pneg %p141
      %p279 = scmp.lt.s32.totalorder %s22, 0
      %s280 = scalar_select %p279, %s22, 0
      %s281 = scalar_lea.vmem %s5, %s280
      %p282 = pneg %p170
      %p283 = pneg %p167
      %p284 = pneg %p198
      %p285 = pneg %p195
      %p286 = scmp.lt.s32.totalorder %s21, 1
      %s287 = scalar_select %p286, %s21, 1
      %p288 = scmp.lt.s32.totalorder %s22, 0
      %s289 = scalar_select %p288, %s22, 0
      %s290 = smul.addr %s287, 20
      %s291 = sadd.s32 %s289, %s290
      %s292 = smul.addr %s291, 4
      %s293 = scalar_lea.vmem %s6, %s292
      %p294 = scmp.lt.s32.totalorder %s21, 1
      %s295 = scalar_select %p294, %s21, 1
      %s296 = smul.addr %s295, 20
      %s297 = smul.addr %s296, 8
      %s298 = scalar_lea.vmem %s0, %s297
      %p299 = scmp.lt.s32.totalorder %s22, 0
      %s300 = scalar_select %p299, %s22, 0
      %s301 = smul.addr %s300, 4
      %s302 = scalar_lea.vmem %s1, %s301
      %p303 = scmp.lt.s32.totalorder %s22, 0
      %s304 = scalar_select %p303, %s22, 0
      %s305 = scalar_lea.vmem %s4, %s304
      %p306 = scmp.lt.s32.totalorder %s22, 0
      %s307 = scalar_select %p306, %s22, 0
      %s308 = scalar_lea.vmem %s5, %s307
      %p309 = scmp.lt.s32.totalorder %s21, 1
      %s310 = scalar_select %p309, %s21, 1
      %p311 = scmp.lt.s32.totalorder %s22, 0
      %s312 = scalar_select %p311, %s22, 0
      %s313 = smul.addr %s310, 20
      %s314 = sadd.s32 %s312, %s313
      %s315 = smul.addr %s314, 4
      %s316 = scalar_lea.vmem %s6, %s315
      %v318 = vld [vmem:[%s298] sm:$0xff]
      %v319 = vld [vmem:[%s298 + $0x8] sm:$0x3]
      %v320 = vld [vmem:[%s298 + $0x10] sm:$0xff]
      %v321 = vld [vmem:[%s298 + $0x18] sm:$0x3]
      %v322 = vld [vmem:[%s298 + $0x20] sm:$0xff]
      %v323 = vld [vmem:[%s298 + $0x28] sm:$0x3]
      %v324 = vld [vmem:[%s298 + $0x30] sm:$0xff]
      %v325 = vld [vmem:[%s298 + $0x38] sm:$0x3]
      %v326 = vld [vmem:[%s298 + $0x40] sm:$0xff]
      %v327 = vld [vmem:[%s298 + $0x48] sm:$0x3]
      %v328 = vld [vmem:[%s298 + $0x50] sm:$0xff]
      %v329 = vld [vmem:[%s298 + $0x58] sm:$0x3]
      %v330 = vld [vmem:[%s298 + $0x60] sm:$0xff]
      %v331 = vld [vmem:[%s298 + $0x68] sm:$0x3]
      %v332 = vld [vmem:[%s298 + $0x70] sm:$0xff]
      %v333 = vld [vmem:[%s298 + $0x78] sm:$0x3]
      %v334 = vld [vmem:[%s298 + $0x80] sm:$0xff]
      %v335 = vld [vmem:[%s298 + $0x88] sm:$0x3]
      %v336 = vld [vmem:[%s298 + $0x90] sm:$0xff]
      %v337 = vld [vmem:[%s298 + $0x98] sm:$0x3]
      %v338 = vld [vmem:[%s2] sm:$0x1]
      %v340 = vlaneseq
      %v341 = vshrl.u32 %v340, 7
      %v342 = vsub.s32 0, %v341
      %v343 = vrot.slane %v338, %v342
      %v345 = vmul.f32 %v318, %v343
      %v346 = vmul.f32 %v319, %v343
      %v347 = vmul.f32 %v320, %v343
      %v348 = vmul.f32 %v321, %v343
      %v349 = vmul.f32 %v322, %v343
      %v350 = vmul.f32 %v323, %v343
      %v351 = vmul.f32 %v324, %v343
      %v352 = vmul.f32 %v325, %v343
      %v353 = vmul.f32 %v326, %v343
      %v354 = vmul.f32 %v327, %v343
      %v355 = vmul.f32 %v328, %v343
      %v356 = vmul.f32 %v329, %v343
      %v357 = vmul.f32 %v330, %v343
      %v358 = vmul.f32 %v331, %v343
      %v359 = vmul.f32 %v332, %v343
      %v360 = vmul.f32 %v333, %v343
      %v361 = vmul.f32 %v334, %v343
      %v362 = vmul.f32 %v335, %v343
      %v363 = vmul.f32 %v336, %v343
      %v364 = vmul.f32 %v337, %v343
      %v365 = vld [vmem:[%s3] sm:$0x1]
      %v367 = vlaneseq
      %v368 = vshrl.u32 %v367, 7
      %v369 = vsub.s32 0, %v368
      %v370 = vrot.slane %v365, %v369
      %v372 = vadd.f32 %v345, %v370
      %v373 = vadd.f32 %v346, %v370
      %v374 = vadd.f32 %v347, %v370
      %v375 = vadd.f32 %v348, %v370
      %v376 = vadd.f32 %v349, %v370
      %v377 = vadd.f32 %v350, %v370
      %v378 = vadd.f32 %v351, %v370
      %v379 = vadd.f32 %v352, %v370
      %v380 = vadd.f32 %v353, %v370
      %v381 = vadd.f32 %v354, %v370
      %v382 = vadd.f32 %v355, %v370
      %v383 = vadd.f32 %v356, %v370
      %v384 = vadd.f32 %v357, %v370
      %v385 = vadd.f32 %v358, %v370
      %v386 = vadd.f32 %v359, %v370
      %v387 = vadd.f32 %v360, %v370
      %v388 = vadd.f32 %v361, %v370
      %v389 = vadd.f32 %v362, %v370
      %v390 = vadd.f32 %v363, %v370
      %v391 = vadd.f32 %v364, %v370
      %v392 = vmul.f32 %v372, 0.1
      %v393 = vmul.f32 %v373, 0.1
      %v394 = vmul.f32 %v374, 0.1
      %v395 = vmul.f32 %v375, 0.1
      %v396 = vmul.f32 %v376, 0.1
      %v397 = vmul.f32 %v377, 0.1
      %v398 = vmul.f32 %v378, 0.1
      %v399 = vmul.f32 %v379, 0.1
      %v400 = vmul.f32 %v380, 0.1
      %v401 = vmul.f32 %v381, 0.1
      %v402 = vmul.f32 %v382, 0.1
      %v403 = vmul.f32 %v383, 0.1
      %v404 = vmul.f32 %v384, 0.1
      %v405 = vmul.f32 %v385, 0.1
      %v406 = vmul.f32 %v386, 0.1
      %v407 = vmul.f32 %v387, 0.1
      %v408 = vmul.f32 %v388, 0.1
      %v409 = vmul.f32 %v389, 0.1
      %v410 = vmul.f32 %v390, 0.1
      %v411 = vmul.f32 %v391, 0.1
      %v412 = vmax.f32 %v372, %v392
      %v413 = vmax.f32 %v373, %v393
      %v414 = vmax.f32 %v374, %v394
      %v415 = vmax.f32 %v375, %v395
      %v416 = vmax.f32 %v376, %v396
      %v417 = vmax.f32 %v377, %v397
      %v418 = vmax.f32 %v378, %v398
      %v419 = vmax.f32 %v379, %v399
      %v420 = vmax.f32 %v380, %v400
      %v421 = vmax.f32 %v381, %v401
      %v422 = vmax.f32 %v382, %v402
      %v423 = vmax.f32 %v383, %v403
      %v424 = vmax.f32 %v384, %v404
      %v425 = vmax.f32 %v385, %v405
      %v426 = vmax.f32 %v386, %v406
      %v427 = vmax.f32 %v387, %v407
      %v428 = vmax.f32 %v388, %v408
      %v429 = vmax.f32 %v389, %v409
      %v430 = vmax.f32 %v390, %v410
      %v431 = vmax.f32 %v391, %v411
      %v432 = vpack.c.bf16 %v413, %v412
      %v433 = vpack.c.bf16 %v415, %v414
      %v434 = vpack.c.bf16 %v417, %v416
      %v435 = vpack.c.bf16 %v419, %v418
      %v436 = vpack.c.bf16 %v421, %v420
      %v437 = vpack.c.bf16 %v423, %v422
      %v438 = vpack.c.bf16 %v425, %v424
      %v439 = vpack.c.bf16 %v427, %v426
      %v440 = vpack.c.bf16 %v429, %v428
      %v441 = vpack.c.bf16 %v431, %v430
      %v442 = vld [vmem:[%s302] sm:$0xf]
      %v443 = vld [vmem:[%s302 + $0x4] sm:$0xf]
      %v444 = vld [vmem:[%s302 + $0x8] sm:$0xf]
      %v445 = vld [vmem:[%s302 + $0xc] sm:$0xf]
      %v446 = vld [vmem:[%s302 + $0x10] sm:$0xf]
      %v447 = vld [vmem:[%s302 + $0x14] sm:$0xf]
      %v448 = vld [vmem:[%s302 + $0x18] sm:$0xf]
      %v449 = vld [vmem:[%s302 + $0x1c] sm:$0xf]
      %v450 = vld [vmem:[%s302 + $0x20] sm:$0xf]
      %v459 = vunpack.c.l.b16 %v432
      %v460 = vunpack.c.h.b16 %v432
      %v461 = vunpack.c.l.b16 %v433
      %v462 = vunpack.c.h.b16 %v433
      %v463 = vunpack.c.l.b16 %v434
      %v464 = vunpack.c.h.b16 %v434
      %v465 = vunpack.c.l.b16 %v435
      %v466 = vunpack.c.h.b16 %v435
      %v467 = vunpack.c.l.b16 %v436
      %v468 = vunpack.c.h.b16 %v436
      %v469 = vunpack.c.l.b16 %v437
      %v470 = vunpack.c.h.b16 %v437
      %v471 = vunpack.c.l.b16 %v438
      %v472 = vunpack.c.h.b16 %v438
      %v473 = vunpack.c.l.b16 %v439
      %v474 = vunpack.c.h.b16 %v439
      %v475 = vpack.c.b16 %v459, %v459
      %v476 = vpack.c.b16 %v460, %v460
      %v477 = vpack.c.b16 %v461, %v461
      %v478 = vpack.c.b16 %v462, %v462
      %v479 = vpack.c.b16 %v463, %v463
      %v480 = vpack.c.b16 %v464, %v464
      %v481 = vpack.c.b16 %v465, %v465
      %v482 = vpack.c.b16 %v466, %v466
      %v483 = vpack.c.b16 %v467, %v467
      %v484 = vpack.c.b16 %v468, %v468
      %v485 = vpack.c.b16 %v469, %v469
      %v486 = vpack.c.b16 %v470, %v470
      %v487 = vpack.c.b16 %v471, %v471
      %v488 = vpack.c.b16 %v472, %v472
      %v489 = vpack.c.b16 %v473, %v473
      %v490 = vpack.c.b16 %v474, %v474
      %vm491 = vsmask.f32 3328
      %vm492 = vsmask.f32 7440
      %vm493 = vmor %vm491, %vm492
      %v495 = vshrl.u32 %v475, 16
      %v497 = vrot.slane %v495, 4
      %v498 = vshll.u32 %v475, 16
      %v500 = vrot.slane %v498, 5
      %v501 = vor.u32 %v497, %v500
      %v502 = vrot.slane %v501, 4
      %v504 = vshll.u32 %v476, 16
      %v506 = vrot.slane %v504, 5
      %v507 = vsel %vm493, %v502, %v506
      %v509 = vshrl.u32 %v477, 16
      %v511 = vrot.slane %v509, 4
      %v512 = vshll.u32 %v477, 16
      %v514 = vrot.slane %v512, 5
      %v515 = vor.u32 %v511, %v514
      %v516 = vrot.slane %v515, 4
      %v518 = vshll.u32 %v478, 16
      %v520 = vrot.slane %v518, 5
      %v521 = vsel %vm493, %v516, %v520
      %v523 = vshrl.u32 %v479, 16
      %v525 = vrot.slane %v523, 4
      %v526 = vshll.u32 %v479, 16
      %v528 = vrot.slane %v526, 5
      %v529 = vor.u32 %v525, %v528
      %v530 = vrot.slane %v529, 4
      %v532 = vshll.u32 %v480, 16
      %v534 = vrot.slane %v532, 5
      %v535 = vsel %vm493, %v530, %v534
      %v537 = vshrl.u32 %v481, 16
      %v539 = vrot.slane %v537, 4
      %v540 = vshll.u32 %v481, 16
      %v542 = vrot.slane %v540, 5
      %v543 = vor.u32 %v539, %v542
      %v544 = vrot.slane %v543, 4
      %v546 = vshll.u32 %v482, 16
      %v548 = vrot.slane %v546, 5
      %v549 = vsel %vm493, %v544, %v548
      %v551 = vshrl.u32 %v483, 16
      %v553 = vrot.slane %v551, 4
      %v554 = vshll.u32 %v483, 16
      %v556 = vrot.slane %v554, 5
      %v557 = vor.u32 %v553, %v556
      %v558 = vrot.slane %v557, 4
      %v560 = vshll.u32 %v484, 16
      %v562 = vrot.slane %v560, 5
      %v563 = vsel %vm493, %v558, %v562
      %v565 = vshrl.u32 %v485, 16
      %v567 = vrot.slane %v565, 4
      %v568 = vshll.u32 %v485, 16
      %v570 = vrot.slane %v568, 5
      %v571 = vor.u32 %v567, %v570
      %v572 = vrot.slane %v571, 4
      %v574 = vshll.u32 %v486, 16
      %v576 = vrot.slane %v574, 5
      %v577 = vsel %vm493, %v572, %v576
      %v579 = vshrl.u32 %v487, 16
      %v581 = vrot.slane %v579, 4
      %v582 = vshll.u32 %v487, 16
      %v584 = vrot.slane %v582, 5
      %v585 = vor.u32 %v581, %v584
      %v586 = vrot.slane %v585, 4
      %v588 = vshll.u32 %v488, 16
      %v590 = vrot.slane %v588, 5
      %v591 = vsel %vm493, %v586, %v590
      %v593 = vshrl.u32 %v489, 16
      %v595 = vrot.slane %v593, 4
      %v596 = vshll.u32 %v489, 16
      %v598 = vrot.slane %v596, 5
      %v599 = vor.u32 %v595, %v598
      %v600 = vrot.slane %v599, 4
      %v602 = vshll.u32 %v490, 16
      %v604 = vrot.slane %v602, 5
      %v605 = vsel %vm493, %v600, %v604
      %vm606 = vcmask 1042432
      %vm607 = vcmask 1046532
      %vm608 = vmor %vm606, %vm607
      %v609 = vrot.slane %v475, 5
      %v610 = vrot.slane %v609, 4
      %v611 = vrot.slane %v476, 5
      %v612 = vsel %vm608, %v610, %v611
      %v613 = vrot.slane %v477, 5
      %v614 = vrot.slane %v613, 4
      %v615 = vrot.slane %v478, 5
      %v616 = vsel %vm608, %v614, %v615
      %v617 = vrot.slane %v479, 5
      %v618 = vrot.slane %v617, 4
      %v619 = vrot.slane %v480, 5
      %v620 = vsel %vm608, %v618, %v619
      %v621 = vrot.slane %v481, 5
      %v622 = vrot.slane %v621, 4
      %v623 = vrot.slane %v482, 5
      %v624 = vsel %vm608, %v622, %v623
      %v625 = vrot.slane %v483, 5
      %v626 = vrot.slane %v625, 4
      %v627 = vrot.slane %v484, 5
      %v628 = vsel %vm608, %v626, %v627
      %v629 = vrot.slane %v485, 5
      %v630 = vrot.slane %v629, 4
      %v631 = vrot.slane %v486, 5
      %v632 = vsel %vm608, %v630, %v631
      %v633 = vrot.slane %v487, 5
      %v634 = vrot.slane %v633, 4
      %v635 = vrot.slane %v488, 5
      %v636 = vsel %vm608, %v634, %v635
      %v637 = vrot.slane %v489, 5
      %v638 = vrot.slane %v637, 4
      %v639 = vrot.slane %v490, 5
      %v640 = vsel %vm608, %v638, %v639
      %v642 = vunpack.c.l.b16 %v440
      %v643 = vunpack.c.h.b16 %v440
      %v644 = vpack.c.b16 %v642, %v642
      %v645 = vpack.c.b16 %v643, %v643
      %v647 = vshrl.u32 %v644, 16
      %v649 = vrot.slane %v647, 4
      %v650 = vshll.u32 %v644, 16
      %v652 = vrot.slane %v650, 5
      %v653 = vor.u32 %v649, %v652
      %v654 = vrot.slane %v653, 4
      %v656 = vshll.u32 %v645, 16
      %v658 = vrot.slane %v656, 5
      %v659 = vsel %vm493, %v654, %v658
      %v660 = vrot.slane %v644, 5
      %v661 = vrot.slane %v660, 4
      %v662 = vrot.slane %v645, 5
      %v663 = vsel %vm608, %v661, %v662
      %v665 = vunpack.c.l.b16 %v441
      %v666 = vunpack.c.h.b16 %v441
      %v667 = vpack.c.b16 %v665, %v665
      %v668 = vpack.c.b16 %v666, %v666
      %v670 = vshrl.u32 %v667, 16
      %v672 = vrot.slane %v670, 4
      %v673 = vshll.u32 %v667, 16
      %v675 = vrot.slane %v673, 5
      %v676 = vor.u32 %v672, %v675
      %v677 = vrot.slane %v676, 4
      %v679 = vshll.u32 %v668, 16
      %v681 = vrot.slane %v679, 5
      %v682 = vsel %vm493, %v677, %v681
      %v683 = vrot.slane %v667, 5
      %v684 = vrot.slane %v683, 4
      %v685 = vrot.slane %v668, 5
      %v686 = vsel %vm608, %v684, %v685
      %v687 = vpack.c.b16 %v461, %v459
      %v688 = vpack.c.b16 %v465, %v463
      %v689 = vpack.c.b16 %v469, %v467
      %v690 = vpack.c.b16 %v473, %v471
      %v691 = vunpack.c.l.b16 %v507
      %v692 = vunpack.c.l.b16 %v521
      %v693 = vunpack.c.l.b16 %v535
      %v694 = vunpack.c.l.b16 %v549
      %v695 = vunpack.c.l.b16 %v563
      %v696 = vunpack.c.l.b16 %v577
      %v697 = vunpack.c.l.b16 %v591
      %v698 = vunpack.c.l.b16 %v605
      %v699 = vpack.c.b16 %v692, %v691
      %v700 = vpack.c.b16 %v694, %v693
      %v701 = vpack.c.b16 %v696, %v695
      %v702 = vpack.c.b16 %v698, %v697
      %703 = vrot.lane.b32.xlu0 %v699, 8
      %v704 = vpop.permute.xlu0 %703
      %705 = vrot.lane.b32.xlu0 %v700, 8
      %v706 = vpop.permute.xlu0 %705
      %707 = vrot.lane.b32.xlu0 %v701, 8
      %v708 = vpop.permute.xlu0 %707
      %709 = vrot.lane.b32.xlu0 %v702, 8
      %v710 = vpop.permute.xlu0 %709
      %v711 = vunpack.c.l.b16 %v612
      %v712 = vunpack.c.l.b16 %v616
      %v713 = vunpack.c.l.b16 %v620
      %v714 = vunpack.c.l.b16 %v624
      %v715 = vunpack.c.l.b16 %v628
      %v716 = vunpack.c.l.b16 %v632
      %v717 = vunpack.c.l.b16 %v636
      %v718 = vunpack.c.l.b16 %v640
      %v719 = vpack.c.b16 %v712, %v711
      %v720 = vpack.c.b16 %v714, %v713
      %v721 = vpack.c.b16 %v716, %v715
      %v722 = vpack.c.b16 %v718, %v717
      %723 = vrot.lane.b32.xlu0 %v719, 16
      %v724 = vpop.permute.xlu0 %723
      %725 = vrot.lane.b32.xlu0 %v720, 16
      %v726 = vpop.permute.xlu0 %725
      %727 = vrot.lane.b32.xlu0 %v721, 16
      %v728 = vpop.permute.xlu0 %727
      %729 = vrot.lane.b32.xlu0 %v722, 16
      %v730 = vpop.permute.xlu0 %729
      %v731 = vpack.c.b16 %v463, %v461
      %v732 = vpack.c.b16 %v467, %v465
      %v733 = vpack.c.b16 %v471, %v469
      %v734 = vpack.c.b16 %v642, %v473
      %735 = vrot.lane.b32.xlu0 %v731, 24
      %v736 = vpop.permute.xlu0 %735
      %737 = vrot.lane.b32.xlu0 %v732, 24
      %v738 = vpop.permute.xlu0 %737
      %739 = vrot.lane.b32.xlu0 %v733, 24
      %v740 = vpop.permute.xlu0 %739
      %741 = vrot.lane.b32.xlu0 %v734, 24
      %v742 = vpop.permute.xlu0 %741
      %v743 = vunpack.c.l.b16 %v659
      %v744 = vpack.c.b16 %v693, %v692
      %v745 = vpack.c.b16 %v695, %v694
      %v746 = vpack.c.b16 %v697, %v696
      %v747 = vpack.c.b16 %v743, %v698
      %748 = vrot.lane.b32.xlu0 %v744, 32
      %v749 = vpop.permute.xlu0 %748
      %750 = vrot.lane.b32.xlu0 %v745, 32
      %v751 = vpop.permute.xlu0 %750
      %752 = vrot.lane.b32.xlu0 %v746, 32
      %v753 = vpop.permute.xlu0 %752
      %754 = vrot.lane.b32.xlu0 %v747, 32
      %v755 = vpop.permute.xlu0 %754
      %v756 = vunpack.c.l.b16 %v663
      %v757 = vpack.c.b16 %v713, %v712
      %v758 = vpack.c.b16 %v715, %v714
      %v759 = vpack.c.b16 %v717, %v716
      %v760 = vpack.c.b16 %v756, %v718
      %761 = vrot.lane.b32.xlu0 %v757, 40
      %v762 = vpop.permute.xlu0 %761
      %763 = vrot.lane.b32.xlu0 %v758, 40
      %v764 = vpop.permute.xlu0 %763
      %765 = vrot.lane.b32.xlu0 %v759, 40
      %v766 = vpop.permute.xlu0 %765
      %767 = vrot.lane.b32.xlu0 %v760, 40
      %v768 = vpop.permute.xlu0 %767
      %v769 = vpack.c.b16 %v665, %v642
      %770 = vrot.lane.b32.xlu0 %v688, 48
      %v771 = vpop.permute.xlu0 %770
      %772 = vrot.lane.b32.xlu0 %v689, 48
      %v773 = vpop.permute.xlu0 %772
      %774 = vrot.lane.b32.xlu0 %v690, 48
      %v775 = vpop.permute.xlu0 %774
      %776 = vrot.lane.b32.xlu0 %v769, 48
      %v777 = vpop.permute.xlu0 %776
      %v778 = vunpack.c.l.b16 %v682
      %v779 = vpack.c.b16 %v778, %v743
      %780 = vrot.lane.b32.xlu0 %v700, 56
      %v781 = vpop.permute.xlu0 %780
      %782 = vrot.lane.b32.xlu0 %v701, 56
      %v783 = vpop.permute.xlu0 %782
      %784 = vrot.lane.b32.xlu0 %v702, 56
      %v785 = vpop.permute.xlu0 %784
      %786 = vrot.lane.b32.xlu0 %v779, 56
      %v787 = vpop.permute.xlu0 %786
      %v788 = vunpack.c.l.b16 %v686
      %v789 = vpack.c.b16 %v788, %v756
      %790 = vrot.lane.b32.xlu0 %v720, 64
      %v791 = vpop.permute.xlu0 %790
      %792 = vrot.lane.b32.xlu0 %v721, 64
      %v793 = vpop.permute.xlu0 %792
      %794 = vrot.lane.b32.xlu0 %v722, 64
      %v795 = vpop.permute.xlu0 %794
      %796 = vrot.lane.b32.xlu0 %v789, 64
      %v797 = vpop.permute.xlu0 %796
      %vm798 = vcmask 64512
      %v801 = vsel %vm798, %v687, %v704
      %v804 = vsel %vm798, %v688, %v706
      %v807 = vsel %vm798, %v689, %v708
      %v810 = vsel %vm798, %v690, %v710
      %vm811 = vcmask 130048
      %v813 = vsel %vm811, %v801, %v724
      %v815 = vsel %vm811, %v804, %v726
      %v817 = vsel %vm811, %v807, %v728
      %v819 = vsel %vm811, %v810, %v730
      %vm820 = vcmask 195584
      %v822 = vsel %vm820, %v813, %v736
      %v824 = vsel %vm820, %v815, %v738
      %v826 = vsel %vm820, %v817, %v740
      %v828 = vsel %vm820, %v819, %v742
      %vm829 = vcmask 261120
      %v831 = vsel %vm829, %v822, %v749
      %v833 = vsel %vm829, %v824, %v751
      %v835 = vsel %vm829, %v826, %v753
      %v837 = vsel %vm829, %v828, %v755
      %vm838 = vcmask 326656
      %v840 = vsel %vm838, %v831, %v762
      %v842 = vsel %vm838, %v833, %v764
      %v844 = vsel %vm838, %v835, %v766
      %v846 = vsel %vm838, %v837, %v768
      %vm847 = vcmask 392192
      %v849 = vsel %vm847, %v840, %v771
      %v851 = vsel %vm847, %v842, %v773
      %v853 = vsel %vm847, %v844, %v775
      %v855 = vsel %vm847, %v846, %v777
      %vm856 = vcmask 457728
      %v858 = vsel %vm856, %v849, %v781
      %v860 = vsel %vm856, %v851, %v783
      %v862 = vsel %vm856, %v853, %v785
      %v864 = vsel %vm856, %v855, %v787
      %vm865 = vcmask 523264
      %v867 = vsel %vm865, %v858, %v791
      %v869 = vsel %vm865, %v860, %v793
      %v871 = vsel %vm865, %v862, %v795
      %v873 = vsel %vm865, %v864, %v797
      %v883 = vunpack.c.l.b16 %v442
      %v884 = vunpack.c.l.b16 %v443
      %v885 = vunpack.c.l.b16 %v444
      %v886 = vunpack.c.l.b16 %v445
      %v887 = vunpack.c.l.b16 %v446
      %v888 = vunpack.c.l.b16 %v447
      %v889 = vunpack.c.l.b16 %v448
      %v890 = vunpack.c.l.b16 %v449
      %v891 = vunpack.c.l.b16 %v450
      %v892 = vpack.c.b16 %v884, %v883
      %v893 = vpack.c.b16 %v886, %v885
      %v894 = vpack.c.b16 %v888, %v887
      %v895 = vpack.c.b16 %v890, %v889
      %v896 = vpack.c.b16 %v891, %v891
      %vm901 = vcmask 588800
      %v902 = vsel %vm901, %v867, 0
      %v904 = vsel %vm901, %v869, 0
      %v906 = vsel %vm901, %v871, 0
      %v908 = vsel %vm901, %v873, 0
      %vm910 = vcmask 1043456
      %v912 = vsel %vm910, %v896, 0
      %914 = vmatprep.subr.bf16.mxu0 0
      %915 = vmatpush1.bf16.msra.mxu0 %v892
      %916 = vmatprep.subr.bf16.mxu0 0
      %917 = vmatpush1.bf16.msra.mxu0 %v893
      %918 = vmatprep.subr.bf16.mxu0 0
      %919 = vmatpush1.bf16.msra.mxu0 %v894
      %920 = vmatprep.subr.bf16.mxu0 0
      %921 = vmatpush1.bf16.msra.mxu0 %v895
      %922 = vmatprep.subr.bf16.mxu0 0
      %923 = vmatpush1.bf16.msra.mxu0 %v912
      %924 = vmatprep.subr.bf16.mxu0 0
      %925 = vmatpush1.bf16.msra.mxu0 0
      %926 = vmatprep.subr.bf16.mxu0 0
      %927 = vmatpush1.bf16.msra.mxu0 0
      %928 = vmatprep.subr.bf16.mxu0 0
      %929 = vmatpush1.bf16.msra.mxu0 0
      %930 = vmatprep.subr.bf16.mxu0 0
      %931 = vmatpush1.bf16.msra.mxu0 0
      %932 = vmatprep.subr.bf16.mxu0 0
      %933 = vmatpush1.bf16.msra.mxu0 0
      %934 = vmatprep.subr.bf16.mxu0 0
      %935 = vmatpush1.bf16.msra.mxu0 0
      %936 = vmatprep.subr.bf16.mxu0 0
      %937 = vmatpush1.bf16.msra.mxu0 0
      %938 = vmatprep.subr.bf16.mxu0 0
      %939 = vmatpush1.bf16.msra.mxu0 0
      %940 = vmatprep.subr.bf16.mxu0 0
      %941 = vmatpush1.bf16.msra.mxu0 0
      %942 = vmatprep.subr.bf16.mxu0 0
      %943 = vmatpush1.bf16.msra.mxu0 0
      %944 = vmatprep.subr.bf16.mxu0 0
      %945 = vmatpush1.bf16.msra.mxu0 0
      %946 = vmatprep.mubr.bf16.mxu0 0
      %947 = vmatmul.mubr.bf16.gmra.mrb[0].mxu0 %v902
      %v948 = vpop.f32.mrb[0].mxu0
      %v949 = vadd.f32 0.0, %v948
      %v950 = vpop.f32.mrb[0].mxu0
      %v951 = vpop.f32.mrb[0].mxu0
      %v952 = vadd.f32 0.0, %v951
      %v953 = vpop.f32.mrb[0].mxu0
      %954 = vmatprep.mubr.bf16.mxu0 0
      %955 = vmatmul.mubr.bf16.gmra.mrb[0].mxu0 %v904
      %v956 = vpop.f32.mrb[0].mxu0
      %v957 = vadd.f32 0.0, %v956
      %v958 = vpop.f32.mrb[0].mxu0
      %v959 = vpop.f32.mrb[0].mxu0
      %v960 = vadd.f32 0.0, %v959
      %v961 = vpop.f32.mrb[0].mxu0
      %962 = vmatprep.mubr.bf16.mxu0 0
      %963 = vmatmul.mubr.bf16.gmra.mrb[0].mxu0 %v906
      %v964 = vpop.f32.mrb[0].mxu0
      %v965 = vadd.f32 0.0, %v964
      %v966 = vpop.f32.mrb[0].mxu0
      %v967 = vpop.f32.mrb[0].mxu0
      %v968 = vadd.f32 0.0, %v967
      %v969 = vpop.f32.mrb[0].mxu0
      %970 = vmatprep.mubr.bf16.mxu0 0
      %971 = vmatmul.mubr.bf16.gmra.mrb[0].mxu0 %v908
      %v972 = vpop.f32.mrb[0].mxu0
      %v973 = vadd.f32 0.0, %v972
      %v974 = vpop.f32.mrb[0].mxu0
      %v975 = vpop.f32.mrb[0].mxu0
      %v976 = vadd.f32 0.0, %v975
      %v977 = vpop.f32.mrb[0].mxu0
      %978 = vdwg.mxu0
      %v979 = vld [vmem:[%s305] sm:$0x1]
      %v981 = vlaneseq
      %v982 = vshrl.u32 %v981, 7
      %v983 = vsub.s32 0, %v982
      %v984 = vrot.slane %v979, %v983
      %v986 = vmul.f32 %v949, %v984
      %v987 = vmul.f32 %v952, %v984
      %v988 = vmul.f32 %v957, %v984
      %v989 = vmul.f32 %v960, %v984
      %v990 = vmul.f32 %v965, %v984
      %v991 = vmul.f32 %v968, %v984
      %v992 = vmul.f32 %v973, %v984
      %v993 = vmul.f32 %v976, %v984
      %v994 = vld [vmem:[%s308] sm:$0x1]
      %v996 = vlaneseq
      %v997 = vshrl.u32 %v996, 7
      %v998 = vsub.s32 0, %v997
      %v999 = vrot.slane %v994, %v998
      %v1001 = vadd.f32 %v986, %v999
      %v1002 = vadd.f32 %v987, %v999
      %v1003 = vadd.f32 %v988, %v999
      %v1004 = vadd.f32 %v989, %v999
      %v1005 = vadd.f32 %v990, %v999
      %v1006 = vadd.f32 %v991, %v999
      %v1007 = vadd.f32 %v992, %v999
      %v1008 = vadd.f32 %v993, %v999
      %v1009 = vmul.f32 %v1001, 0.1
      %v1010 = vmul.f32 %v1002, 0.1
      %v1011 = vmul.f32 %v1003, 0.1
      %v1012 = vmul.f32 %v1004, 0.1
      %v1013 = vmul.f32 %v1005, 0.1
      %v1014 = vmul.f32 %v1006, 0.1
      %v1015 = vmul.f32 %v1007, 0.1
      %v1016 = vmul.f32 %v1008, 0.1
      %v1017 = vmax.f32 %v1001, %v1009
      %v1018 = vmax.f32 %v1002, %v1010
      %v1019 = vmax.f32 %v1003, %v1011
      %v1020 = vmax.f32 %v1004, %v1012
      %v1021 = vmax.f32 %v1005, %v1013
      %v1022 = vmax.f32 %v1006, %v1014
      %v1023 = vmax.f32 %v1007, %v1015
      %v1024 = vmax.f32 %v1008, %v1016
      %v1033 = vrot.slane %v1017, 7
      %v1034 = vrot.slane %v1018, 7
      %v1035 = vrot.slane %v1019, 7
      %v1036 = vrot.slane %v1020, 7
      %v1037 = vrot.slane %v1021, 7
      %v1038 = vrot.slane %v1022, 7
      %v1039 = vrot.slane %v1023, 7
      %v1040 = vrot.slane %v1024, 7
      %vm1049 = vcmask 1040384
      %v1050 = vsel %vm1049, 0.0, %v1033
      %v1051 = vsel %vm1049, 0.0, %v1034
      %v1052 = vsel %vm1049, 0.0, %v1035
      %v1053 = vsel %vm1049, 0.0, %v1036
      %v1054 = vsel %vm1049, 0.0, %v1037
      %v1055 = vsel %vm1049, 0.0, %v1038
      %v1056 = vsel %vm1049, 0.0, %v1039
      %v1057 = vsel %vm1049, 0.0, %v1040
      %v1058 = vsel %vm1049, %v1033, 0.0
      %v1059 = vsel %vm1049, %v1034, 0.0
      %v1060 = vsel %vm1049, %v1035, 0.0
      %v1061 = vsel %vm1049, %v1036, 0.0
      %v1062 = vsel %vm1049, %v1037, 0.0
      %v1063 = vsel %vm1049, %v1038, 0.0
      %v1064 = vsel %vm1049, %v1039, 0.0
      %v1065 = vsel %vm1049, %v1040, 0.0
      %v1066 = vpack.c.bf16 0.0, 0.0
      %v1067 = vpack.c.bf16 %v1058, %v1050
      %v1068 = vpack.c.bf16 %v1059, %v1051
      %v1069 = vpack.c.bf16 %v1060, %v1052
      %v1070 = vpack.c.bf16 %v1061, %v1053
      %v1071 = vpack.c.bf16 %v1062, %v1054
      %v1072 = vpack.c.bf16 %v1063, %v1055
      %v1073 = vpack.c.bf16 %v1064, %v1056
      %v1074 = vpack.c.bf16 %v1065, %v1057
      %v1084 = vunpack.c.l.b16 %v1066
      %v1085 = vunpack.c.h.b16 %v1066
      %v1086 = vunpack.c.l.b16 %v1067
      %v1087 = vunpack.c.h.b16 %v1067
      %v1088 = vunpack.c.l.b16 %v1068
      %v1089 = vunpack.c.h.b16 %v1068
      %v1090 = vunpack.c.l.b16 %v1069
      %v1091 = vunpack.c.h.b16 %v1069
      %v1092 = vunpack.c.l.b16 %v1070
      %v1093 = vunpack.c.h.b16 %v1070
      %v1094 = vunpack.c.l.b16 %v1071
      %v1095 = vunpack.c.h.b16 %v1071
      %v1096 = vunpack.c.l.b16 %v1072
      %v1097 = vunpack.c.h.b16 %v1072
      %v1098 = vunpack.c.l.b16 %v1073
      %v1099 = vunpack.c.h.b16 %v1073
      %v1100 = vunpack.c.l.b16 %v1074
      %v1101 = vunpack.c.h.b16 %v1074
      %v1102 = vpack.c.b16 %v1084, %v1084
      %v1103 = vpack.c.b16 %v1085, %v1085
      %v1104 = vpack.c.b16 %v1086, %v1086
      %v1105 = vpack.c.b16 %v1087, %v1087
      %v1106 = vpack.c.b16 %v1088, %v1088
      %v1107 = vpack.c.b16 %v1089, %v1089
      %v1108 = vpack.c.b16 %v1090, %v1090
      %v1109 = vpack.c.b16 %v1091, %v1091
      %v1110 = vpack.c.b16 %v1092, %v1092
      %v1111 = vpack.c.b16 %v1093, %v1093
      %v1112 = vpack.c.b16 %v1094, %v1094
      %v1113 = vpack.c.b16 %v1095, %v1095
      %v1114 = vpack.c.b16 %v1096, %v1096
      %v1115 = vpack.c.b16 %v1097, %v1097
      %v1116 = vpack.c.b16 %v1098, %v1098
      %v1117 = vpack.c.b16 %v1099, %v1099
      %v1118 = vpack.c.b16 %v1100, %v1100
      %v1119 = vpack.c.b16 %v1101, %v1101
      %vm1138 = vcmask 60416
      %1139 = vst.msk [vmem:[%s316] sm:$0xf] %vm1138, %v1102
      %vm1140 = vcmask 57344
      %1141 = vst.msk [vmem:[%s316 + $0x4] sm:$0x1] %vm1140, %v1103
      %1142 = vst.msk [vmem:[%s316 + $0x8] sm:$0xf] %vm1138, %v1104
      %1143 = vst.msk [vmem:[%s316 + $0xc] sm:$0x1] %vm1140, %v1105
      %1144 = vst.msk [vmem:[%s316 + $0x10] sm:$0xf] %vm1138, %v1106
      %1145 = vst.msk [vmem:[%s316 + $0x14] sm:$0x1] %vm1140, %v1107
      %1146 = vst.msk [vmem:[%s316 + $0x18] sm:$0xf] %vm1138, %v1108
      %1147 = vst.msk [vmem:[%s316 + $0x1c] sm:$0x1] %vm1140, %v1109
      %1148 = vst.msk [vmem:[%s316 + $0x20] sm:$0xf] %vm1138, %v1110
      %1149 = vst.msk [vmem:[%s316 + $0x24] sm:$0x1] %vm1140, %v1111
      %1150 = vst.msk [vmem:[%s316 + $0x28] sm:$0xf] %vm1138, %v1112
      %1151 = vst.msk [vmem:[%s316 + $0x2c] sm:$0x1] %vm1140, %v1113
      %1152 = vst.msk [vmem:[%s316 + $0x30] sm:$0xf] %vm1138, %v1114
      %1153 = vst.msk [vmem:[%s316 + $0x34] sm:$0x1] %vm1140, %v1115
      %1154 = vst.msk [vmem:[%s316 + $0x38] sm:$0xf] %vm1138, %v1116
      %1155 = vst.msk [vmem:[%s316 + $0x3c] sm:$0x1] %vm1140, %v1117
      %1156 = vst.msk [vmem:[%s316 + $0x40] sm:$0xf] %vm1138, %v1118
      %1157 = vst.msk [vmem:[%s316 + $0x44] sm:$0x1] %vm1140, %v1119
      %1158 = vst.msk [vmem:[%s316 + $0x48] sm:$0xf] %vm1138, %v1102
      %1159 = vst.msk [vmem:[%s316 + $0x4c] sm:$0x1] %vm1140, %v1103
      %p1160 = scmp.lt.s32.totalorder %s21, 1
      %s1161 = scalar_select %p1160, %s21, 1
      %p1162 = scmp.lt.s32.totalorder %s22, 0
      %s1163 = scalar_select %p1162, %s22, 0
      %s1164 = smul.addr %s1161, 20
      %s1165 = sadd.s32 %s1163, %s1164
      %s1166 = smul.addr %s1165, 4
      %s1167 = scalar_lea.vmem %s6, %s1166
      // Predicated region
      $region45: #{network_block_forward.6} parent=43 // pred_check
        %p1168 = pneg %p195
      $region46: #{network_block_forward.6} parent=43 // pred_check_branch
        %1170 = sbr.rel (%p1168) target = $region48
      $region47: #{network_block_forward.6} parent=43 // pred_region
        _
      $region48: #{network_block_forward.6} parent=43 // pred_fallthru
        _
    $region44: #{network_block_forward.6} parent=5 // pred_fallthru
      _
    %p1171 = scmp.le.s32.totalorder 2, %s12
    // Predicated region
    $region49: #{network_block_forward.6} parent=5 // pred_check
      %p1172 = pneg %p1171
    $region50: #{network_block_forward.6} parent=5 // pred_check_branch
      %1174 = sbr.rel (%p1172) target = $region52
    $region51: #{network_block_forward.6} parent=5 // pred_region
      %s1175 = ssub.s32 %s12, 2
      // Predicated region
      $region53: #{network_block_forward.6} parent=51 // pred_check
        %p1176 = pneg %p201
      $region54: #{network_block_forward.6} parent=51 // pred_check_branch
        %1178 = sbr.rel (%p1176) target = $region56
      $region55: #{network_block_forward.6} parent=51 // pred_region
        %p1179 = scmp.lt.s32.totalorder %s23, 1
        %s1180 = scalar_select %p1179, %s23, 1
        %p1181 = scmp.lt.s32.totalorder %s24, 0
        %s1182 = scalar_select %p1181, %s24, 0
        %s1183 = smul.addr %s1180, 20
        %s1184 = sadd.s32 %s1182, %s1183
        %s1185 = smul.addr %s1184, 4
        %s1186 = scalar_lea.vmem %s6, %s1185
      $region56: #{network_block_forward.6} parent=51 // pred_fallthru
        _
    $region52: #{network_block_forward.6} parent=5 // pred_fallthru
      _
  $region6: #{network_block_forward.6} parent=0 // loop_footer
    %s16 = sadd.s32 1, %s12
  $region7: #{network_block_forward.6} parent=0 // loop_footer_branch
    %11 = sbr.rel target = $region3
  $region8: #{network_block_forward.6} parent=0 // loop_exit
    _

// kernel: network_block_forward.7
$region0: #{network_block_forward.7}
  #allocation0 [shape = 'u32[]', space=smem, size = 0x4, offset = 0x4, fixed_abs, tag = 'smem constant byte address 0x4 - core index']
  #allocation1 [shape = 'u32[144,128]{1,0:T(1,128)}', space=vmem, size = 0x12000, scoped, tag = 'internal scratch']
  %s0 = inlined_call_operand.vmem [shape: bf16[2,10,10,8], index: 0, kind: input, shape index: {}]
  %s1 = inlined_call_operand.vmem [shape: bf16[72,8], index: 1, kind: input, shape index: {}]
  %s2 = inlined_call_operand.vmem [shape: f32[2,8,8,8], index: 2, kind: input, shape index: {}]
  %s3 = inlined_call_operand.vmem [shape: f32[2,8,8,8], index: 3, kind: output, shape index: {}]
  %s4 = sld [smem:[#allocation0]]
  $region45: #{network_block_forward.7} parent=0
    _
  %s6 = ssub.s32 1, %s4
  %s7 = scalar_select 0, %s6, %s4
  loop: start=0, step=1, limit=4
  $region2: #{network_block_forward.7} parent=0 // loop_pre_header
    _
  $region3: #{network_block_forward.7} parent=0 // loop_header
    %s9 = sphi 0, %s13
    %p10 = scmp.ge.s32.totalorder %s9, 4
    %s16 = sphi 0, %s28
    %s17 = sphi 0, %s24
    %s18 = sphi 0, %s16
    %s19 = sphi 0, %s17
    %s20 = sphi 0, %s18
    %s21 = sphi 0, %s19
    %s31 = sphi 0, %s33
    %s34 = sphi 0, %s31
    %s35 = sphi 0, %s34
    %s51 = sphi 0, %s35
    %s57 = sphi 0, %s59
    %s60 = sphi 0, %s57
    %s61 = sphi 0, %s60
    %s77 = sphi 0, %s61
    %s85 = sphi 0, %s87
    %s88 = sphi 0, %s85
    %s89 = sphi 0, %s88
    %s105 = sphi 0, %s89
    %s113 = sphi 0, %s115
    %s116 = sphi 0, %s113
    %s117 = sphi 0, %s116
    %s133 = sphi 0, %s117
  $region4: #{network_block_forward.7} parent=0 // loop_header_branch
    %12 = sbr.rel (%p10) target = $region8
  $region5: #{network_block_forward.7} parent=0 // loop_body
    %s14 = ssub.s32 %s9, 1
    %s15 = ssub.s32 %s9, 2
    %s22 = sadd.s32 1, %s17
    %p23 = scmp.ge.s32.totalorder %s22, 1
    %s24 = scalar_select %p23, 0, %s22
    %s25 = sadd.s32 1, %s16
    %s26 = scalar_select %p23, %s25, %s16
    %p27 = scmp.ge.s32.totalorder %s26, 2
    %s28 = scalar_select %p27, 0, %s26
    %s29 = ssub.s32 %s16, %s28
    %p30 = scmp.eq.s32.totalorder %s29, 0
    %s32 = sadd.s32 %s31, 1
    %s33 = scalar_select %p30, %s31, %s32
    %p36 = pneg %p30
    %p37 = scmp.eq.s32.totalorder %s9, 1
    %p38 = por %p36, %p37
    %p39 = scmp.ne.s32.totalorder %s31, %s34
    %p40 = scmp.eq.s32.totalorder %s9, 0
    %p41 = por %p39, %p40
    %p42 = scmp.ne.s32.totalorder %s31, %s34
    %p43 = scmp.eq.s32.totalorder %s14, 1
    %p44 = por %p42, %p43
    %p45 = scmp.ne.s32.totalorder %s34, %s35
    %p46 = scmp.eq.s32.totalorder %s14, 0
    %p47 = por %p45, %p46
    %p48 = scmp.ne.s32.totalorder %s34, %s35
    %p49 = scmp.eq.s32.totalorder %s15, 1
    %p50 = por %p48, %p49
    %p52 = scmp.ne.s32.totalorder %s35, %s51
    %p53 = scmp.eq.s32.totalorder %s15, 0
    %p54 = por %p52, %p53
    %s55 = ssub.s32 %s17, %s24
    %p56 = scmp.eq.s32.totalorder %s55, 0
    %s58 = sadd.s32 %s57, 1
    %s59 = scalar_select %p56, %s57, %s58
    %p62 = pneg %p56
    %p63 = scmp.eq.s32.totalorder %s9, 1
    %p64 = por %p62, %p63
    %p65 = scmp.ne.s32.totalorder %s57, %s60
    %p66 = scmp.eq.s32.totalorder %s9, 0
    %p67 = por %p65, %p66
    %p68 = scmp.ne.s32.totalorder %s57, %s60
    %p69 = scmp.eq.s32.totalorder %s14, 1
    %p70 = por %p68, %p69
    %p71 = scmp.ne.s32.totalorder %s60, %s61
    %p72 = scmp.eq.s32.totalorder %s14, 0
    %p73 = por %p71, %p72
    %p74 = scmp.ne.s32.totalorder %s60, %s61
    %p75 = scmp.eq.s32.totalorder %s15, 1
    %p76 = por %p74, %p75
    %p78 = scmp.ne.s32.totalorder %s61, %s77
    %p79 = scmp.eq.s32.totalorder %s15, 0
    %p80 = por %p78, %p79
    %s81 = ssub.s32 %s16, %s28
    %s82 = ssub.s32 %s17, %s24
    %s83 = sor.u32 %s81, %s82
    %p84 = scmp.eq.s32.totalorder %s83, 0
    %s86 = sadd.s32 %s85, 1
    %s87 = scalar_select %p84, %s85, %s86
    %p90 = pneg %p84
    %p91 = scmp.eq.s32.totalorder %s9, 1
    %p92 = por %p90, %p91
    %p93 = scmp.ne.s32.totalorder %s85, %s88
    %p94 = scmp.eq.s32.totalorder %s9, 0
    %p95 = por %p93, %p94
    %p96 = scmp.ne.s32.totalorder %s85, %s88
    %p97 = scmp.eq.s32.totalorder %s14, 1
    %p98 = por %p96, %p97
    %p99 = scmp.ne.s32.totalorder %s88, %s89
    %p100 = scmp.eq.s32.totalorder %s14, 0
    %p101 = por %p99, %p100
    %p102 = scmp.ne.s32.totalorder %s88, %s89
    %p103 = scmp.eq.s32.totalorder %s15, 1
    %p104 = por %p102, %p103
    %p106 = scmp.ne.s32.totalorder %s89, %s105
    %p107 = scmp.eq.s32.totalorder %s15, 0
    %p108 = por %p106, %p107
    %s109 = ssub.s32 %s16, %s28
    %s110 = ssub.s32 %s17, %s24
    %s111 = sor.u32 %s109, %s110
    %p112 = scmp.eq.s32.totalorder %s111, 0
    %s114 = sadd.s32 %s113, 1
    %s115 = scalar_select %p112, %s113, %s114
    %p118 = pneg %p112
    %p119 = scmp.eq.s32.totalorder %s9, 1
    %p120 = por %p118, %p119
    %p121 = scmp.ne.s32.totalorder %s113, %s116
    %p122 = scmp.eq.s32.totalorder %s9, 0
    %p123 = por %p121, %p122
    %p124 = scmp.ne.s32.totalorder %s113, %s116
    %p125 = scmp.eq.s32.totalorder %s14, 1
    %p126 = por %p124, %p125
    %p127 = scmp.ne.s32.totalorder %s116, %s117
    %p128 = scmp.eq.s32.totalorder %s14, 0
    %p129 = por %p127, %p128
    %p130 = scmp.ne.s32.totalorder %s116, %s117
    %p131 = scmp.eq.s32.totalorder %s15, 1
    %p132 = por %p130, %p131
    %p134 = scmp.ne.s32.totalorder %s117, %s133
    %p135 = scmp.eq.s32.totalorder %s15, 0
    %p136 = por %p134, %p135
    %p137 = scmp.le.s32.totalorder 1, %s9
    %p138 = scmp.lt.s32.totalorder %s9, 3
    %p139 = pnand %p137, %p138
    %p140 = pneg %p139
    // Predicated region
    $region9: #{network_block_forward.7} parent=5 // pred_check
      _
    $region10: #{network_block_forward.7} parent=5 // pred_check_branch
      %142 = sbr.rel (%p139) target = $region12
    $region11: #{network_block_forward.7} parent=5 // pred_region
      %s143 = ssub.s32 %s9, 1
      // Predicated region
      $region13: #{network_block_forward.7} parent=11 // pred_check
        %p144 = pneg %p73
      $region14: #{network_block_forward.7} parent=11 // pred_check_branch
        %146 = sbr.rel (%p144) target = $region16
      $region15: #{network_block_forward.7} parent=11 // pred_region
        %p147 = scmp.lt.s32.totalorder %s19, 0
        %s148 = scalar_select %p147, %s19, 0
        %s149 = smul.addr %s148, 4
        %s150 = scalar_lea.vmem %s1, %s149
      $region16: #{network_block_forward.7} parent=11 // pred_fallthru
        _
    $region12: #{network_block_forward.7} parent=5 // pred_fallthru
      _
    %p151 = scmp.lt.s32.totalorder %s9, 2
    // Predicated region
    $region17: #{network_block_forward.7} parent=5 // pred_check
      %p152 = pneg %p151
    $region18: #{network_block_forward.7} parent=5 // pred_check_branch
      %154 = sbr.rel (%p152) target = $region20
    $region19: #{network_block_forward.7} parent=5 // pred_region
      // Predicated region
      $region21: #{network_block_forward.7} parent=19 // pred_check
        %p155 = pneg %p41
      $region22: #{network_block_forward.7} parent=19 // pred_check_branch
        %157 = sbr.rel (%p155) target = $region24
      $region23: #{network_block_forward.7} parent=19 // pred_region
        %p158 = scmp.lt.s32.totalorder %s16, 1
        %s159 = scalar_select %p158, %s16, 1
        %s160 = smul.addr %s159, 20
        %s161 = smul.addr %s160, 4
        %s162 = scalar_lea.vmem %s0, %s161
      $region24: #{network_block_forward.7} parent=19 // pred_fallthru
        _
      // Predicated region
      $region25: #{network_block_forward.7} parent=19 // pred_check
        %p163 = pneg %p95
      $region26: #{network_block_forward.7} parent=19 // pred_check_branch
        %165 = sbr.rel (%p163) target = $region28
      $region27: #{network_block_forward.7} parent=19 // pred_region
        %p166 = scmp.lt.s32.totalorder %s16, 1
        %s167 = scalar_select %p166, %s16, 1
        %p168 = scmp.lt.s32.totalorder %s17, 0
        %s169 = scalar_select %p168, %s17, 0
        %s170 = smul.addr %s167, 8
        %s171 = sadd.s32 %s169, %s170
        %s172 = smul.addr %s171, 8
        %s173 = scalar_lea.vmem %s2, %s172
      $region28: #{network_block_forward.7} parent=19 // pred_fallthru
        _
    $region20: #{network_block_forward.7} parent=5 // pred_fallthru
      _
    %p174 = scmp.le.s32.totalorder 1, %s9
    %p175 = scmp.lt.s32.totalorder %s9, 3
    %p176 = pnand %p174, %p175
    %p177 = pneg %p176
    // Predicated region
    $region29: #{network_block_forward.7} parent=5 // pred_check
      _
    $region30: #{network_block_forward.7} parent=5 // pred_check_branch
      %179 = sbr.rel (%p176) target = $region32
    $region31: #{network_block_forward.7} parent=5 // pred_region
      %s180 = ssub.s32 %s9, 1
      %p181 = scmp.lt.s32.totalorder %s18, 1
      %s182 = scalar_select %p181, %s18, 1
      %s183 = smul.addr %s182, 20
      %s184 = smul.addr %s183, 4
      %s185 = scalar_lea.vmem %s0, %s184
      %p186 = pneg %p47
      %p187 = pneg %p44
      %p188 = scmp.lt.s32.totalorder %s19, 0
      %s189 = scalar_select %p188, %s19, 0
      %s190 = smul.addr %s189, 4
      %s191 = scalar_lea.vmem %s1, %s190
      %p192 = pneg %p73
      %p193 = pneg %p70
      %p194 = scmp.lt.s32.totalorder %s18, 1
      %s195 = scalar_select %p194, %s18, 1
      %p196 = scmp.lt.s32.totalorder %s19, 0
      %s197 = scalar_select %p196, %s19, 0
      %s198 = smul.addr %s195, 8
      %s199 = sadd.s32 %s197, %s198
      %s200 = smul.addr %s199, 8
      %s201 = scalar_lea.vmem %s2, %s200
      %p202 = pneg %p101
      %p203 = pneg %p98
      %p204 = pneg %p129
      %p205 = pneg %p126
      %p206 = scmp.lt.s32.totalorder %s18, 1
      %s207 = scalar_select %p206, %s18, 1
      %p208 = scmp.lt.s32.totalorder %s19, 0
      %s209 = scalar_select %p208, %s19, 0
      %s210 = smul.addr %s207, 8
      %s211 = sadd.s32 %s209, %s210
      %s212 = smul.addr %s211, 8
      %s213 = scalar_lea.vmem %s3, %s212
      %p214 = scmp.lt.s32.totalorder %s18, 1
      %s215 = scalar_select %p214, %s18, 1
      %s216 = smul.addr %s215, 20
      %s217 = smul.addr %s216, 4
      %s218 = scalar_lea.vmem %s0, %s217
      %p219 = scmp.lt.s32.totalorder %s19, 0
      %s220 = scalar_select %p219, %s19, 0
      %s221 = smul.addr %s220, 4
      %s222 = scalar_lea.vmem %s1, %s221
      %p223 = scmp.lt.s32.totalorder %s18, 1
      %s224 = scalar_select %p223, %s18, 1
      %p225 = scmp.lt.s32.totalorder %s19, 0
      %s226 = scalar_select %p225, %s19, 0
      %s227 = smul.addr %s224, 8
      %s228 = sadd.s32 %s226, %s227
      %s229 = smul.addr %s228, 8
      %s230 = scalar_lea.vmem %s2, %s229
      %p231 = scmp.lt.s32.totalorder %s18, 1
      %s232 = scalar_select %p231, %s18, 1
      %p233 = scmp.lt.s32.totalorder %s19, 0
      %s234 = scalar_select %p233, %s19, 0
      %s235 = smul.addr %s232, 8
      %s236 = sadd.s32 %s234, %s235
      %s237 = smul.addr %s236, 8
      %s238 = scalar_lea.vmem %s3, %s237
      %v240 = vld [vmem:[%s218] sm:$0xf]
      %v241 = vld [vmem:[%s218 + $0x4] sm:$0x1]
      %v242 = vld [vmem:[%s218 + $0x8] sm:$0xf]
      %v243 = vld [vmem:[%s218 + $0xc] sm:$0x1]
      %v244 = vld [vmem:[%s218 + $0x10] sm:$0xf]
      %v245 = vld [vmem:[%s218 + $0x14] sm:$0x1]
      %v246 = vld [vmem:[%s218 + $0x18] sm:$0xf]
      %v247 = vld [vmem:[%s218 + $0x1c] sm:$0x1]
      %v248 = vld [vmem:[%s218 + $0x20] sm:$0xf]
      %v249 = vld [vmem:[%s218 + $0x24] sm:$0x1]
      %v250 = vld [vmem:[%s218 + $0x28] sm:$0xf]
      %v251 = vld [vmem:[%s218 + $0x2c] sm:$0x1]
      %v252 = vld [vmem:[%s218 + $0x30] sm:$0xf]
      %v253 = vld [vmem:[%s218 + $0x34] sm:$0x1]
      %v254 = vld [vmem:[%s218 + $0x38] sm:$0xf]
      %v255 = vld [vmem:[%s218 + $0x3c] sm:$0x1]
      %v256 = vld [vmem:[%s218 + $0x40] sm:$0xf]
      %v257 = vld [vmem:[%s218 + $0x44] sm:$0x1]
      %v258 = vld [vmem:[%s218 + $0x48] sm:$0xf]
      %v259 = vld [vmem:[%s218 + $0x4c] sm:$0x1]
      %v260 = vld [vmem:[%s222] sm:$0xf]
      %v261 = vld [vmem:[%s222 + $0x4] sm:$0xf]
      %v262 = vld [vmem:[%s222 + $0x8] sm:$0xf]
      %v263 = vld [vmem:[%s222 + $0xc] sm:$0xf]
      %v264 = vld [vmem:[%s222 + $0x10] sm:$0xf]
      %v265 = vld [vmem:[%s222 + $0x14] sm:$0xf]
      %v266 = vld [vmem:[%s222 + $0x18] sm:$0xf]
      %v267 = vld [vmem:[%s222 + $0x1c] sm:$0xf]
      %v268 = vld [vmem:[%s222 + $0x20] sm:$0xf]
      %vm269 = vsmask.f32 3328
      %vm270 = vsmask.f32 7440
      %vm271 = vmor %vm269, %vm270
      %v273 = vshrl.u32 %v240, 16
      %v275 = vrot.slane %v273, 4
      %v276 = vshll.u32 %v240, 16
      %v278 = vrot.slane %v276, 5
      %v279 = vor.u32 %v275, %v278
      %v280 = vrot.slane %v279, 4
      %v282 = vshll.u32 %v241, 16
      %v284 = vrot.slane %v282, 5
      %v285 = vsel %vm271, %v280, %v284
      %v287 = vshrl.u32 %v242, 16
      %v289 = vrot.slane %v287, 4
      %v290 = vshll.u32 %v242, 16
      %v292 = vrot.slane %v290, 5
      %v293 = vor.u32 %v289, %v292
      %v294 = vrot.slane %v293, 4
      %v296 = vshll.u32 %v243, 16
      %v298 = vrot.slane %v296, 5
      %v299 = vsel %vm271, %v294, %v298
      %v301 = vshrl.u32 %v244, 16
      %v303 = vrot.slane %v301, 4
      %v304 = vshll.u32 %v244, 16
      %v306 = vrot.slane %v304, 5
      %v307 = vor.u32 %v303, %v306
      %v308 = vrot.slane %v307, 4
      %v310 = vshll.u32 %v245, 16
      %v312 = vrot.slane %v310, 5
      %v313 = vsel %vm271, %v308, %v312
      %v315 = vshrl.u32 %v246, 16
      %v317 = vrot.slane %v315, 4
      %v318 = vshll.u32 %v246, 16
      %v320 = vrot.slane %v318, 5
      %v321 = vor.u32 %v317, %v320
      %v322 = vrot.slane %v321, 4
      %v324 = vshll.u32 %v247, 16
      %v326 = vrot.slane %v324, 5
      %v327 = vsel %vm271, %v322, %v326
      %v329 = vshrl.u32 %v248, 16
      %v331 = vrot.slane %v329, 4
      %v332 = vshll.u32 %v248, 16
      %v334 = vrot.slane %v332, 5
      %v335 = vor.u32 %v331, %v334
      %v336 = vrot.slane %v335, 4
      %v338 = vshll.u32 %v249, 16
      %v340 = vrot.slane %v338, 5
      %v341 = vsel %vm271, %v336, %v340
      %v343 = vshrl.u32 %v250, 16
      %v345 = vrot.slane %v343, 4
      %v346 = vshll.u32 %v250, 16
      %v348 = vrot.slane %v346, 5
      %v349 = vor.u32 %v345, %v348
      %v350 = vrot.slane %v349, 4
      %v352 = vshll.u32 %v251, 16
      %v354 = vrot.slane %v352, 5
      %v355 = vsel %vm271, %v350, %v354
      %v357 = vshrl.u32 %v252, 16
      %v359 = vrot.slane %v357, 4
      %v360 = vshll.u32 %v252, 16
      %v362 = vrot.slane %v360, 5
      %v363 = vor.u32 %v359, %v362
      %v364 = vrot.slane %v363, 4
      %v366 = vshll.u32 %v253, 16
      %v368 = vrot.slane %v366, 5
      %v369 = vsel %vm271, %v364, %v368
      %v371 = vshrl.u32 %v254, 16
      %v373 = vrot.slane %v371, 4
      %v374 = vshll.u32 %v254, 16
      %v376 = vrot.slane %v374, 5
      %v377 = vor.u32 %v373, %v376
      %v378 = vrot.slane %v377, 4
      %v380 = vshll.u32 %v255, 16
      %v382 = vrot.slane %v380, 5
      %v383 = vsel %vm271, %v378, %v382
      %vm400 = vcmask 1042432
      %vm401 = vcmask 1046532
      %vm402 = vmor %vm400, %vm401
      %v403 = vrot.slane %v240, 5
      %v404 = vrot.slane %v403, 4
      %v405 = vrot.slane %v241, 5
      %v406 = vsel %vm402, %v404, %v405
      %v407 = vrot.slane %v242, 5
      %v408 = vrot.slane %v407, 4
      %v409 = vrot.slane %v243, 5
      %v410 = vsel %vm402, %v408, %v409
      %v411 = vrot.slane %v244, 5
      %v412 = vrot.slane %v411, 4
      %v413 = vrot.slane %v245, 5
      %v414 = vsel %vm402, %v412, %v413
      %v415 = vrot.slane %v246, 5
      %v416 = vrot.slane %v415, 4
      %v417 = vrot.slane %v247, 5
      %v418 = vsel %vm402, %v416, %v417
      %v419 = vrot.slane %v248, 5
      %v420 = vrot.slane %v419, 4
      %v421 = vrot.slane %v249, 5
      %v422 = vsel %vm402, %v420, %v421
      %v423 = vrot.slane %v250, 5
      %v424 = vrot.slane %v423, 4
      %v425 = vrot.slane %v251, 5
      %v426 = vsel %vm402, %v424, %v425
      %v427 = vrot.slane %v252, 5
      %v428 = vrot.slane %v427, 4
      %v429 = vrot.slane %v253, 5
      %v430 = vsel %vm402, %v428, %v429
      %v431 = vrot.slane %v254, 5
      %v432 = vrot.slane %v431, 4
      %v433 = vrot.slane %v255, 5
      %v434 = vsel %vm402, %v432, %v433
      %v436 = vshrl.u32 %v256, 16
      %v438 = vrot.slane %v436, 4
      %v439 = vshll.u32 %v256, 16
      %v441 = vrot.slane %v439, 5
      %v442 = vor.u32 %v438, %v441
      %v443 = vrot.slane %v442, 4
      %v445 = vshll.u32 %v257, 16
      %v447 = vrot.slane %v445, 5
      %v448 = vsel %vm271, %v443, %v447
      %v451 = vrot.slane %v256, 5
      %v452 = vrot.slane %v451, 4
      %v453 = vrot.slane %v257, 5
      %v454 = vsel %vm402, %v452, %v453
      %v456 = vshrl.u32 %v258, 16
      %v458 = vrot.slane %v456, 4
      %v459 = vshll.u32 %v258, 16
      %v461 = vrot.slane %v459, 5
      %v462 = vor.u32 %v458, %v461
      %v463 = vrot.slane %v462, 4
      %v465 = vshll.u32 %v259, 16
      %v467 = vrot.slane %v465, 5
      %v468 = vsel %vm271, %v463, %v467
      %v471 = vrot.slane %v258, 5
      %v472 = vrot.slane %v471, 4
      %v473 = vrot.slane %v259, 5
      %v474 = vsel %vm402, %v472, %v473
      %v475 = vunpack.c.l.b16 %v240
      %v476 = vunpack.c.l.b16 %v242
      %v477 = vunpack.c.l.b16 %v244
      %v478 = vunpack.c.l.b16 %v246
      %v479 = vunpack.c.l.b16 %v248
      %v480 = vunpack.c.l.b16 %v250
      %v481 = vunpack.c.l.b16 %v252
      %v482 = vunpack.c.l.b16 %v254
      %v483 = vpack.c.b16 %v476, %v475
      %v484 = vpack.c.b16 %v478, %v477
      %v485 = vpack.c.b16 %v480, %v479
      %v486 = vpack.c.b16 %v482, %v481
      %v487 = vunpack.c.l.b16 %v285
      %v488 = vunpack.c.l.b16 %v299
      %v489 = vunpack.c.l.b16 %v313
      %v490 = vunpack.c.l.b16 %v327
      %v491 = vunpack.c.l.b16 %v341
      %v492 = vunpack.c.l.b16 %v355
      %v493 = vunpack.c.l.b16 %v369
      %v494 = vunpack.c.l.b16 %v383
      %v495 = vpack.c.b16 %v488, %v487
      %v496 = vpack.c.b16 %v490, %v489
      %v497 = vpack.c.b16 %v492, %v491
      %v498 = vpack.c.b16 %v494, %v493
      %499 = vrot.lane.b32.xlu0 %v495, 8
      %v500 = vpop.permute.xlu0 %499
      %501 = vrot.lane.b32.xlu0 %v496, 8
      %v502 = vpop.permute.xlu0 %501
      %503 = vrot.lane.b32.xlu0 %v497, 8
      %v504 = vpop.permute.xlu0 %503
      %505 = vrot.lane.b32.xlu0 %v498, 8
      %v506 = vpop.permute.xlu0 %505
      %v507 = vunpack.c.l.b16 %v406
      %v508 = vunpack.c.l.b16 %v410
      %v509 = vunpack.c.l.b16 %v414
      %v510 = vunpack.c.l.b16 %v418
      %v511 = vunpack.c.l.b16 %v422
      %v512 = vunpack.c.l.b16 %v426
      %v513 = vunpack.c.l.b16 %v430
      %v514 = vunpack.c.l.b16 %v434
      %v515 = vpack.c.b16 %v508, %v507
      %v516 = vpack.c.b16 %v510, %v509
      %v517 = vpack.c.b16 %v512, %v511
      %v518 = vpack.c.b16 %v514, %v513
      %519 = vrot.lane.b32.xlu0 %v515, 16
      %v520 = vpop.permute.xlu0 %519
      %521 = vrot.lane.b32.xlu0 %v516, 16
      %v522 = vpop.permute.xlu0 %521
      %523 = vrot.lane.b32.xlu0 %v517, 16
      %v524 = vpop.permute.xlu0 %523
      %525 = vrot.lane.b32.xlu0 %v518, 16
      %v526 = vpop.permute.xlu0 %525
      %v527 = vunpack.c.l.b16 %v256
      %v528 = vpack.c.b16 %v477, %v476
      %v529 = vpack.c.b16 %v479, %v478
      %v530 = vpack.c.b16 %v481, %v480
      %v531 = vpack.c.b16 %v527, %v482
      %532 = vrot.lane.b32.xlu0 %v528, 24
      %v533 = vpop.permute.xlu0 %532
      %534 = vrot.lane.b32.xlu0 %v529, 24
      %v535 = vpop.permute.xlu0 %534
      %536 = vrot.lane.b32.xlu0 %v530, 24
      %v537 = vpop.permute.xlu0 %536
      %538 = vrot.lane.b32.xlu0 %v531, 24
      %v539 = vpop.permute.xlu0 %538
      %v540 = vunpack.c.l.b16 %v448
      %v541 = vpack.c.b16 %v489, %v488
      %v542 = vpack.c.b16 %v491, %v490
      %v543 = vpack.c.b16 %v493, %v492
      %v544 = vpack.c.b16 %v540, %v494
      %545 = vrot.lane.b32.xlu0 %v541, 32
      %v546 = vpop.permute.xlu0 %545
      %547 = vrot.lane.b32.xlu0 %v542, 32
      %v548 = vpop.permute.xlu0 %547
      %549 = vrot.lane.b32.xlu0 %v543, 32
      %v550 = vpop.permute.xlu0 %549
      %551 = vrot.lane.b32.xlu0 %v544, 32
      %v552 = vpop.permute.xlu0 %551
      %v553 = vunpack.c.l.b16 %v454
      %v554 = vpack.c.b16 %v509, %v508
      %v555 = vpack.c.b16 %v511, %v510
      %v556 = vpack.c.b16 %v513, %v512
      %v557 = vpack.c.b16 %v553, %v514
      %558 = vrot.lane.b32.xlu0 %v554, 40
      %v559 = vpop.permute.xlu0 %558
      %560 = vrot.lane.b32.xlu0 %v555, 40
      %v561 = vpop.permute.xlu0 %560
      %562 = vrot.lane.b32.xlu0 %v556, 40
      %v563 = vpop.permute.xlu0 %562
      %564 = vrot.lane.b32.xlu0 %v557, 40
      %v565 = vpop.permute.xlu0 %564
      %v566 = vunpack.c.l.b16 %v258
      %v567 = vpack.c.b16 %v566, %v527
      %568 = vrot.lane.b32.xlu0 %v484, 48
      %v569 = vpop.permute.xlu0 %568
      %570 = vrot.lane.b32.xlu0 %v485, 48
      %v571 = vpop.permute.xlu0 %570
      %572 = vrot.lane.b32.xlu0 %v486, 48
      %v573 = vpop.permute.xlu0 %572
      %574 = vrot.lane.b32.xlu0 %v567, 48
      %v575 = vpop.permute.xlu0 %574
      %v576 = vunpack.c.l.b16 %v468
      %v577 = vpack.c.b16 %v576, %v540
      %578 = vrot.lane.b32.xlu0 %v496, 56
      %v579 = vpop.permute.xlu0 %578
      %580 = vrot.lane.b32.xlu0 %v497, 56
      %v581 = vpop.permute.xlu0 %580
      %582 = vrot.lane.b32.xlu0 %v498, 56
      %v583 = vpop.permute.xlu0 %582
      %584 = vrot.lane.b32.xlu0 %v577, 56
      %v585 = vpop.permute.xlu0 %584
      %v586 = vunpack.c.l.b16 %v474
      %v587 = vpack.c.b16 %v586, %v553
      %588 = vrot.lane.b32.xlu0 %v516, 64
      %v589 = vpop.permute.xlu0 %588
      %590 = vrot.lane.b32.xlu0 %v517, 64
      %v591 = vpop.permute.xlu0 %590
      %592 = vrot.lane.b32.xlu0 %v518, 64
      %v593 = vpop.permute.xlu0 %592
      %594 = vrot.lane.b32.xlu0 %v587, 64
      %v595 = vpop.permute.xlu0 %594
      %vm596 = vcmask 64512
      %v599 = vsel %vm596, %v483, %v500
      %v602 = vsel %vm596, %v484, %v502
      %v605 = vsel %vm596, %v485, %v504
      %v608 = vsel %vm596, %v486, %v506
      %vm609 = vcmask 130048
      %v611 = vsel %vm609, %v599, %v520
      %v613 = vsel %vm609, %v602, %v522
      %v615 = vsel %vm609, %v605, %v524
      %v617 = vsel %vm609, %v608, %v526
      %vm618 = vcmask 195584
      %v620 = vsel %vm618, %v611, %v533
      %v622 = vsel %vm618, %v613, %v535
      %v624 = vsel %vm618, %v615, %v537
      %v626 = vsel %vm618, %v617, %v539
      %vm627 = vcmask 261120
      %v629 = vsel %vm627, %v620, %v546
      %v631 = vsel %vm627, %v622, %v548
      %v633 = vsel %vm627, %v624, %v550
      %v635 = vsel %vm627, %v626, %v552
      %vm636 = vcmask 326656
      %v638 = vsel %vm636, %v629, %v559
      %v640 = vsel %vm636, %v631, %v561
      %v642 = vsel %vm636, %v633, %v563
      %v644 = vsel %vm636, %v635, %v565
      %vm645 = vcmask 392192
      %v647 = vsel %vm645, %v638, %v569
      %v649 = vsel %vm645, %v640, %v571
      %v651 = vsel %vm645, %v642, %v573
      %v653 = vsel %vm645, %v644, %v575
      %vm654 = vcmask 457728
      %v656 = vsel %vm654, %v647, %v579
      %v658 = vsel %vm654, %v649, %v581
      %v660 = vsel %vm654, %v651, %v583
      %v662 = vsel %vm654, %v653, %v585
      %vm663 = vcmask 523264
      %v665 = vsel %vm663, %v656, %v589
      %v667 = vsel %vm663, %v658, %v591
      %v669 = vsel %vm663, %v660, %v593
      %v671 = vsel %vm663, %v662, %v595
      %v681 = vunpack.c.l.b16 %v260
      %v682 = vunpack.c.l.b16 %v261
      %v683 = vunpack.c.l.b16 %v262
      %v684 = vunpack.c.l.b16 %v263
      %v685 = vunpack.c.l.b16 %v264
      %v686 = vunpack.c.l.b16 %v265
      %v687 = vunpack.c.l.b16 %v266
      %v688 = vunpack.c.l.b16 %v267
      %v689 = vunpack.c.l.b16 %v268
      %v690 = vpack.c.b16 %v682, %v681
      %v691 = vpack.c.b16 %v684, %v683
      %v692 = vpack.c.b16 %v686, %v685
      %v693 = vpack.c.b16 %v688, %v687
      %v694 = vpack.c.b16 %v689, %v689
      %vm699 = vcmask 588800
      %v700 = vsel %vm699, %v665, 0
      %v702 = vsel %vm699, %v667, 0
      %v704 = vsel %vm699, %v669, 0
      %v706 = vsel %vm699, %v671, 0
      %vm708 = vcmask 1043456
      %v710 = vsel %vm708, %v694, 0
      %712 = vmatprep.subr.bf16.mxu0 0
      %713 = vmatpush1.bf16.msra.mxu0 %v690
      %714 = vmatprep.subr.bf16.mxu0 0
      %715 = vmatpush1.bf16.msra.mxu0 %v691
      %716 = vmatprep.subr.bf16.mxu0 0
      %717 = vmatpush1.bf16.msra.mxu0 %v692
      %718 = vmatprep.subr.bf16.mxu0 0
      %719 = vmatpush1.bf16.msra.mxu0 %v693
      %720 = vmatprep.subr.bf16.mxu0 0
      %721 = vmatpush1.bf16.msra.mxu0 %v710
      %722 = vmatprep.subr.bf16.mxu0 0
      %723 = vmatpush1.bf16.msra.mxu0 0
      %724 = vmatprep.subr.bf16.mxu0 0
      %725 = vmatpush1.bf16.msra.mxu0 0
      %726 = vmatprep.subr.bf16.mxu0 0
      %727 = vmatpush1.bf16.msra.mxu0 0
      %728 = vmatprep.subr.bf16.mxu0 0
      %729 = vmatpush1.bf16.msra.mxu0 0
      %730 = vmatprep.subr.bf16.mxu0 0
      %731 = vmatpush1.bf16.msra.mxu0 0
      %732 = vmatprep.subr.bf16.mxu0 0
      %733 = vmatpush1.bf16.msra.mxu0 0
      %734 = vmatprep.subr.bf16.mxu0 0
      %735 = vmatpush1.bf16.msra.mxu0 0
      %736 = vmatprep.subr.bf16.mxu0 0
      %737 = vmatpush1.bf16.msra.mxu0 0
      %738 = vmatprep.subr.bf16.mxu0 0
      %739 = vmatpush1.bf16.msra.mxu0 0
      %740 = vmatprep.subr.bf16.mxu0 0
      %741 = vmatpush1.bf16.msra.mxu0 0
      %742 = vmatprep.subr.bf16.mxu0 0
      %743 = vmatpush1.bf16.msra.mxu0 0
      %744 = vmatprep.mubr.bf16.mxu0 0
      %745 = vmatmul.mubr.bf16.gmra.mrb[0].mxu0 %v700
      %v746 = vpop.f32.mrb[0].mxu0
      %v747 = vadd.f32 0.0, %v746
      %v748 = vpop.f32.mrb[0].mxu0
      %v749 = vpop.f32.mrb[0].mxu0
      %v750 = vadd.f32 0.0, %v749
      %v751 = vpop.f32.mrb[0].mxu0
      %752 = vmatprep.mubr.bf16.mxu0 0
      %753 = vmatmul.mubr.bf16.gmra.mrb[0].mxu0 %v702
      %v754 = vpop.f32.mrb[0].mxu0
      %v755 = vadd.f32 0.0, %v754
      %v756 = vpop.f32.mrb[0].mxu0
      %v757 = vpop.f32.mrb[0].mxu0
      %v758 = vadd.f32 0.0, %v757
      %v759 = vpop.f32.mrb[0].mxu0
      %760 = vmatprep.mubr.bf16.mxu0 0
      %761 = vmatmul.mubr.bf16.gmra.mrb[0].mxu0 %v704
      %v762 = vpop.f32.mrb[0].mxu0
      %v763 = vadd.f32 0.0, %v762
      %v764 = vpop.f32.mrb[0].mxu0
      %v765 = vpop.f32.mrb[0].mxu0
      %v766 = vadd.f32 0.0, %v765
      %v767 = vpop.f32.mrb[0].mxu0
      %768 = vmatprep.mubr.bf16.mxu0 0
      %769 = vmatmul.mubr.bf16.gmra.mrb[0].mxu0 %v706
      %v770 = vpop.f32.mrb[0].mxu0
      %v771 = vadd.f32 0.0, %v770
      %v772 = vpop.f32.mrb[0].mxu0
      %v773 = vpop.f32.mrb[0].mxu0
      %v774 = vadd.f32 0.0, %v773
      %v775 = vpop.f32.mrb[0].mxu0
      %776 = vdwg.mxu0
      %v777 = vld [vmem:[%s230] sm:$0xff]
      %v778 = vld [vmem:[%s230 + $0x8] sm:$0xff]
      %v779 = vld [vmem:[%s230 + $0x10] sm:$0xff]
      %v780 = vld [vmem:[%s230 + $0x18] sm:$0xff]
      %v781 = vld [vmem:[%s230 + $0x20] sm:$0xff]
      %v782 = vld [vmem:[%s230 + $0x28] sm:$0xff]
      %v783 = vld [vmem:[%s230 + $0x30] sm:$0xff]
      %v784 = vld [vmem:[%s230 + $0x38] sm:$0xff]
      %v785 = vadd.f32 %v747, %v777
      %v786 = vadd.f32 %v750, %v778
      %v787 = vadd.f32 %v755, %v779
      %v788 = vadd.f32 %v758, %v780
      %v789 = vadd.f32 %v763, %v781
      %v790 = vadd.f32 %v766, %v782
      %v791 = vadd.f32 %v771, %v783
      %v792 = vadd.f32 %v774, %v784
      %793 = vst.msk [vmem:[%s238] sm:$0xff] %vm596, %v785
      %794 = vst.msk [vmem:[%s238 + $0x8] sm:$0xff] %vm596, %v786
      %795 = vst.msk [vmem:[%s238 + $0x10] sm:$0xff] %vm596, %v787
      %796 = vst.msk [vmem:[%s238 + $0x18] sm:$0xff] %vm596, %v788
      %797 = vst.msk [vmem:[%s238 + $0x20] sm:$0xff] %vm596, %v789
      %798 = vst.msk [vmem:[%s238 + $0x28] sm:$0xff] %vm596, %v790
      %799 = vst.msk [vmem:[%s238 + $0x30] sm:$0xff] %vm596, %v791
      %800 = vst.msk [vmem:[%s238 + $0x38] sm:$0xff] %vm596, %v792
      %p801 = scmp.lt.s32.totalorder %s18, 1
      %s802 = scalar_select %p801, %s18, 1
      %p803 = scmp.lt.s32.totalorder %s19, 0
      %s804 = scalar_select %p803, %s19, 0
      %s805 = smul.addr %s802, 8
      %s806 = sadd.s32 %s804, %s805
      %s807 = smul.addr %s806, 8
      %s808 = scalar_lea.vmem %s3, %s807
      // Predicated region
      $region33: #{network_block_forward.7} parent=31 // pred_check
        %p809 = pneg %p126
      $region34: #{network_block_forward.7} parent=31 // pred_check_branch
        %811 = sbr.rel (%p809) target = $region36
      $region35: #{network_block_forward.7} parent=31 // pred_region
        _
      $region36: #{network_block_forward.7} parent=31 // pred_fallthru
        _
    $region32: #{network_block_forward.7} parent=5 // pred_fallthru
      _
    %p812 = scmp.le.s32.totalorder 2, %s9
    // Predicated region
    $region37: #{network_block_forward.7} parent=5 // pred_check
      %p813 = pneg %p812
    $region38: #{network_block_forward.7} parent=5 // pred_check_branch
      %815 = sbr.rel (%p813) target = $region40
    $region39: #{network_block_forward.7} parent=5 // pred_region
      %s816 = ssub.s32 %s9, 2
      // Predicated region
      $region41: #{network_block_forward.7} parent=39 // pred_check
        %p817 = pneg %p132
      $region42: #{network_block_forward.7} parent=39 // pred_check_branch
        %819 = sbr.rel (%p817) target = $region44
      $region43: #{network_block_forward.7} parent=39 // pred_region
        %p820 = scmp.lt.s32.totalorder %s20, 1
        %s821 = scalar_select %p820, %s20, 1
        %p822 = scmp.lt.s32.totalorder %s21, 0
        %s823 = scalar_select %p822, %s21, 0
        %s824 = smul.addr %s821, 8
        %s825 = sadd.s32 %s823, %s824
        %s826 = smul.addr %s825, 8
        %s827 = scalar_lea.vmem %s3, %s826
      $region44: #{network_block_forward.7} parent=39 // pred_fallthru
        _
    $region40: #{network_block_forward.7} parent=5 // pred_fallthru
      _
  $region6: #{network_block_forward.7} parent=0 // loop_footer
    %s13 = sadd.s32 1, %s9
  $region7: #{network_block_forward.7} parent=0 // loop_footer_branch
    %8 = sbr.rel target = $region3
  $region8: #{network_block_forward.7} parent=0 // loop_exit
    _

// kernel: network_block_forward.4
$region0: #{network_block_forward.4}
  #allocation0 [shape = 'u32[]', space=smem, size = 0x4, offset = 0x4, fixed_abs, tag = 'smem constant byte address 0x4 - core index']
  #allocation1 [shape = 'u32[144,128]{1,0:T(1,128)}', space=vmem, size = 0x12000, scoped, tag = 'internal scratch']
  %s0 = inlined_call_operand.vmem [shape: f32[8,9,9,4], index: 0, kind: input, shape index: {}]
  %s1 = inlined_call_operand.vmem [shape: bf16[36,8], index: 1, kind: input, shape index: {}]
  %s2 = inlined_call_operand.vmem [shape: f32[1,4], index: 2, kind: input, shape index: {}]
  %s3 = inlined_call_operand.vmem [shape: f32[1,4], index: 3, kind: input, shape index: {}]
  %s4 = inlined_call_operand.vmem [shape: f32[1,8], index: 4, kind: input, shape index: {}]
  %s5 = inlined_call_operand.vmem [shape: f32[1,8], index: 5, kind: input, shape index: {}]
  %s6 = inlined_call_operand.vmem [shape: bf16[2,10,10,8], index: 6, kind: output, shape index: {}]
  %s7 = sld [smem:[#allocation0]]
  $region57: #{network_block_forward.4} parent=0
    _
  %s9 = ssub.s32 1, %s7
  %s10 = scalar_select 0, %s9, %s7
  loop: start=0, step=1, limit=4
  $region2: #{network_block_forward.4} parent=0 // loop_pre_header
    _
  $region3: #{network_block_forward.4} parent=0 // loop_header
    %s12 = sphi 0, %s16
    %p13 = scmp.ge.s32.totalorder %s12, 4
    %s19 = sphi 0, %s31
    %s20 = sphi 0, %s27
    %s21 = sphi 0, %s19
    %s22 = sphi 0, %s20
    %s23 = sphi 0, %s21
    %s24 = sphi 0, %s22
    %s34 = sphi 0, %s36
    %s37 = sphi 0, %s34
    %s38 = sphi 0, %s37
    %s54 = sphi 0, %s38
    %s60 = sphi 0, %s62
    %s63 = sphi 0, %s60
    %s64 = sphi 0, %s63
    %s80 = sphi 0, %s64
    %s84 = sphi 0, %s84
    %s86 = sphi 0, %s84
    %s87 = sphi 0, %s86
    %s101 = sphi 0, %s87
    %s105 = sphi 0, %s105
    %s107 = sphi 0, %s105
    %s108 = sphi 0, %s107
    %s122 = sphi 0, %s108
    %s128 = sphi 0, %s130
    %s131 = sphi 0, %s128
    %s132 = sphi 0, %s131
    %s148 = sphi 0, %s132
    %s154 = sphi 0, %s156
    %s157 = sphi 0, %s154
    %s158 = sphi 0, %s157
    %s174 = sphi 0, %s158
    %s182 = sphi 0, %s184
    %s185 = sphi 0, %s182
    %s186 = sphi 0, %s185
    %s202 = sphi 0, %s186
  $region4: #{network_block_forward.4} parent=0 // loop_header_branch
    %15 = sbr.rel (%p13) target = $region8
  $region5: #{network_block_forward.4} parent=0 // loop_body
    %s17 = ssub.s32 %s12, 1
    %s18 = ssub.s32 %s12, 2
    %s25 = sadd.s32 1, %s20
    %p26 = scmp.ge.s32.totalorder %s25, 1
    %s27 = scalar_select %p26, 0, %s25
    %s28 = sadd.s32 1, %s19
    %s29 = scalar_select %p26, %s28, %s19
    %p30 = scmp.ge.s32.totalorder %s29, 2
    %s31 = scalar_select %p30, 0, %s29
    %s32 = ssub.s32 %s19, %s31
    %p33 = scmp.eq.s32.totalorder %s32, 0
    %s35 = sadd.s32 %s34, 1
    %s36 = scalar_select %p33, %s34, %s35
    %p39 = pneg %p33
    %p40 = scmp.eq.s32.totalorder %s12, 1
    %p41 = por %p39, %p40
    %p42 = scmp.ne.s32.totalorder %s34, %s37
    %p43 = scmp.eq.s32.totalorder %s12, 0
    %p44 = por %p42, %p43
    %p45 = scmp.ne.s32.totalorder %s34, %s37
    %p46 = scmp.eq.s32.totalorder %s17, 1
    %p47 = por %p45, %p46
    %p48 = scmp.ne.s32.totalorder %s37, %s38
    %p49 = scmp.eq.s32.totalorder %s17, 0
    %p50 = por %p48, %p49
    %p51 = scmp.ne.s32.totalorder %s37, %s38
    %p52 = scmp.eq.s32.totalorder %s18, 1
    %p53 = por %p51, %p52
    %p55 = scmp.ne.s32.totalorder %s38, %s54
    %p56 = scmp.eq.s32.totalorder %s18, 0
    %p57 = por %p55, %p56
    %s58 = ssub.s32 %s20, %s27
    %p59 = scmp.eq.s32.totalorder %s58, 0
    %s61 = sadd.s32 %s60, 1
    %s62 = scalar_select %p59, %s60, %s61
    %p65 = pneg %p59
    %p66 = scmp.eq.s32.totalorder %s12, 1
    %p67 = por %p65, %p66
    %p68 = scmp.ne.s32.totalorder %s60, %s63
    %p69 = scmp.eq.s32.totalorder %s12, 0
    %p70 = por %p68, %p69
    %p71 = scmp.ne.s32.totalorder %s60, %s63
    %p72 = scmp.eq.s32.totalorder %s17, 1
    %p73 = por %p71, %p72
    %p74 = scmp.ne.s32.totalorder %s63, %s64
    %p75 = scmp.eq.s32.totalorder %s17, 0
    %p76 = por %p74, %p75
    %p77 = scmp.ne.s32.totalorder %s63, %s64
    %p78 = scmp.eq.s32.totalorder %s18, 1
    %p79 = por %p77, %p78
    %p81 = scmp.ne.s32.totalorder %s64, %s80
    %p82 = scmp.eq.s32.totalorder %s18, 0
    %p83 = por %p81, %p82
    %s85 = sadd.s32 %s84, 1
    %p88 = scmp.eq.s32.totalorder %s12, 1
    %p89 = scmp.ne.s32.totalorder %s84, %s86
    %p90 = scmp.eq.s32.totalorder %s12, 0
    %p91 = por %p89, %p90
    %p92 = scmp.ne.s32.totalorder %s84, %s86
    %p93 = scmp.eq.s32.totalorder %s17, 1
    %p94 = por %p92, %p93
    %p95 = scmp.ne.s32.totalorder %s86, %s87
    %p96 = scmp.eq.s32.totalorder %s17, 0
    %p97 = por %p95, %p96
    %p98 = scmp.ne.s32.totalorder %s86, %s87
    %p99 = scmp.eq.s32.totalorder %s18, 1
    %p100 = por %p98, %p99
    %p102 = scmp.ne.s32.totalorder %s87, %s101
    %p103 = scmp.eq.s32.totalorder %s18, 0
    %p104 = por %p102, %p103
    %s106 = sadd.s32 %s105, 1
    %p109 = scmp.eq.s32.totalorder %s12, 1
    %p110 = scmp.ne.s32.totalorder %s105, %s107
    %p111 = scmp.eq.s32.totalorder %s12, 0
    %p112 = por %p110, %p111
    %p113 = scmp.ne.s32.totalorder %s105, %s107
    %p114 = scmp.eq.s32.totalorder %s17, 1
    %p115 = por %p113, %p114
    %p116 = scmp.ne.s32.totalorder %s107, %s108
    %p117 = scmp.eq.s32.totalorder %s17, 0
    %p118 = por %p116, %p117
    %p119 = scmp.ne.s32.totalorder %s107, %s108
    %p120 = scmp.eq.s32.totalorder %s18, 1
    %p121 = por %p119, %p120
    %p123 = scmp.ne.s32.totalorder %s108, %s122
    %p124 = scmp.eq.s32.totalorder %s18, 0
    %p125 = por %p123, %p124
    %s126 = ssub.s32 %s20, %s27
    %p127 = scmp.eq.s32.totalorder %s126, 0
    %s129 = sadd.s32 %s128, 1
    %s130 = scalar_select %p127, %s128, %s129
    %p133 = pneg %p127
    %p134 = scmp.eq.s32.totalorder %s12, 1
    %p135 = por %p133, %p134
    %p136 = scmp.ne.s32.totalorder %s128, %s131
    %p137 = scmp.eq.s32.totalorder %s12, 0
    %p138 = por %p136, %p137
    %p139 = scmp.ne.s32.totalorder %s128, %s131
    %p140 = scmp.eq.s32.totalorder %s17, 1
    %p141 = por %p139, %p140
    %p142 = scmp.ne.s32.totalorder %s131, %s132
    %p143 = scmp.eq.s32.totalorder %s17, 0
    %p144 = por %p142, %p143
    %p145 = scmp.ne.s32.totalorder %s131, %s132
    %p146 = scmp.eq.s32.totalorder %s18, 1
    %p147 = por %p145, %p146
    %p149 = scmp.ne.s32.totalorder %s132, %s148
    %p150 = scmp.eq.s32.totalorder %s18, 0
    %p151 = por %p149, %p150
    %s152 = ssub.s32 %s20, %s27
    %p153 = scmp.eq.s32.totalorder %s152, 0
    %s155 = sadd.s32 %s154, 1
    %s156 = scalar_select %p153, %s154, %s155
    %p159 = pneg %p153
    %p160 = scmp.eq.s32.totalorder %s12, 1
    %p161 = por %p159, %p160
    %p162 = scmp.ne.s32.totalorder %s154, %s157
    %p163 = scmp.eq.s32.totalorder %s12, 0
    %p164 = por %p162, %p163
    %p165 = scmp.ne.s32.totalorder %s154, %s157
    %p166 = scmp.eq.s32.totalorder %s17, 1
    %p167 = por %p165, %p166
    %p168 = scmp.ne.s32.totalorder %s157, %s158
    %p169 = scmp.eq.s32.totalorder %s17, 0
    %p170 = por %p168, %p169
    %p171 = scmp.ne.s32.totalorder %s157, %s158
    %p172 = scmp.eq.s32.totalorder %s18, 1
    %p173 = por %p171, %p172
    %p175 = scmp.ne.s32.totalorder %s158, %s174
    %p176 = scmp.eq.s32.totalorder %s18, 0
    %p177 = por %p175, %p176
    %s178 = ssub.s32 %s19, %s31
    %s179 = ssub.s32 %s20, %s27
    %s180 = sor.u32 %s178, %s179
    %p181 = scmp.eq.s32.totalorder %s180, 0
    %s183 = sadd.s32 %s182, 1
    %s184 = scalar_select %p181, %s182, %s183
    %p187 = pneg %p181
    %p188 = scmp.eq.s32.totalorder %s12, 1
    %p189 = por %p187, %p188
    %p190 = scmp.ne.s32.totalorder %s182, %s185
    %p191 = scmp.eq.s32.totalorder %s12, 0
    %p192 = por %p190, %p191
    %p193 = scmp.ne.s32.totalorder %s182, %s185
    %p194 = scmp.eq.s32.totalorder %s17, 1
    %p195 = por %p193, %p194
    %p196 = scmp.ne.s32.totalorder %s185, %s186
    %p197 = scmp.eq.s32.totalorder %s17, 0
    %p198 = por %p196, %p197
    %p199 = scmp.ne.s32.totalorder %s185, %s186
    %p200 = scmp.eq.s32.totalorder %s18, 1
    %p201 = por %p199, %p200
    %p203 = scmp.ne.s32.totalorder %s186, %s202
    %p204 = scmp.eq.s32.totalorder %s18, 0
    %p205 = por %p203, %p204
    %p206 = scmp.le.s32.totalorder 1, %s12
    %p207 = scmp.lt.s32.totalorder %s12, 3
    %p208 = pnand %p206, %p207
    %p209 = pneg %p208
    // Predicated region
    $region9: #{network_block_forward.4} parent=5 // pred_check
      _
    $region10: #{network_block_forward.4} parent=5 // pred_check_branch
      %211 = sbr.rel (%p208) target = $region12
    $region11: #{network_block_forward.4} parent=5 // pred_region
      %s212 = ssub.s32 %s12, 1
      // Predicated region
      $region13: #{network_block_forward.4} parent=11 // pred_check
        %p213 = pneg %p76
      $region14: #{network_block_forward.4} parent=11 // pred_check_branch
        %215 = sbr.rel (%p213) target = $region16
      $region15: #{network_block_forward.4} parent=11 // pred_region
        %p216 = scmp.lt.s32.totalorder %s22, 0
        %s217 = scalar_select %p216, %s22, 0
        %s218 = smul.addr %s217, 4
        %s219 = scalar_lea.vmem %s1, %s218
      $region16: #{network_block_forward.4} parent=11 // pred_fallthru
        _
      // Predicated region
      $region17: #{network_block_forward.4} parent=11 // pred_check
        %p220 = pneg %p97
      $region18: #{network_block_forward.4} parent=11 // pred_check_branch
        %222 = sbr.rel (%p220) target = $region20
      $region19: #{network_block_forward.4} parent=11 // pred_region
        _
      $region20: #{network_block_forward.4} parent=11 // pred_fallthru
        _
      // Predicated region
      $region21: #{network_block_forward.4} parent=11 // pred_check
        %p223 = pneg %p118
      $region22: #{network_block_forward.4} parent=11 // pred_check_branch
        %225 = sbr.rel (%p223) target = $region24
      $region23: #{network_block_forward.4} parent=11 // pred_region
        _
      $region24: #{network_block_forward.4} parent=11 // pred_fallthru
        _
      // Predicated region
      $region25: #{network_block_forward.4} parent=11 // pred_check
        %p226 = pneg %p144
      $region26: #{network_block_forward.4} parent=11 // pred_check_branch
        %228 = sbr.rel (%p226) target = $region28
      $region27: #{network_block_forward.4} parent=11 // pred_region
        %p229 = scmp.lt.s32.totalorder %s22, 0
        %s230 = scalar_select %p229, %s22, 0
        %s231 = scalar_lea.vmem %s4, %s230
      $region28: #{network_block_forward.4} parent=11 // pred_fallthru
        _
      // Predicated region
      $region29: #{network_block_forward.4} parent=11 // pred_check
        %p232 = pneg %p170
      $region30: #{network_block_forward.4} parent=11 // pred_check_branch
        %234 = sbr.rel (%p232) target = $region32
      $region31: #{network_block_forward.4} parent=11 // pred_region
        %p235 = scmp.lt.s32.totalorder %s22, 0
        %s236 = scalar_select %p235, %s22, 0
        %s237 = scalar_lea.vmem %s5, %s236
      $region32: #{network_block_forward.4} parent=11 // pred_fallthru
        _
    $region12: #{network_block_forward.4} parent=5 // pred_fallthru
      _
    %p238 = scmp.lt.s32.totalorder %s12, 2
    // Predicated region
    $region33: #{network_block_forward.4} parent=5 // pred_check
      %p239 = pneg %p238
    $region34: #{network_block_forward.4} parent=5 // pred_check_branch
      %241 = sbr.rel (%p239) target = $region36
    $region35: #{network_block_forward.4} parent=5 // pred_region
      // Predicated region
      $region37: #{network_block_forward.4} parent=35 // pred_check
        %p242 = pneg %p44
      $region38: #{network_block_forward.4} parent=35 // pred_check_branch
        %244 = sbr.rel (%p242) target = $region40
      $region39: #{network_block_forward.4} parent=35 // pred_region
        %s245 = smul.u32 4, %s19
        %p246 = scmp.lt.s32.totalorder %s245, 7
        %s247 = scalar_select %p246, %s245, 7
        %s248 = smul.addr %s247, 18
        %s249 = smul.addr %s248, 8
        %s250 = scalar_lea.vmem %s0, %s249
        %s251 = smul.u32 4, %s19
      $region40: #{network_block_forward.4} parent=35 // pred_fallthru
        _
    $region36: #{network_block_forward.4} parent=5 // pred_fallthru
      _
    %p252 = scmp.le.s32.totalorder 1, %s12
    %p253 = scmp.lt.s32.totalorder %s12, 3
    %p254 = pnand %p252, %p253
    %p255 = pneg %p254
    // Predicated region
    $region41: #{network_block_forward.4} parent=5 // pred_check
      _
    $region42: #{network_block_forward.4} parent=5 // pred_check_branch
      %257 = sbr.rel (%p254) target = $region44
    $region43: #{network_block_forward.4} parent=5 // pred_region
      %s258 = ssub.s32 %s12, 1
      %s259 = smul.u32 4, %s21
      %p260 = scmp.lt.s32.totalorder %s259, 7
      %s261 = scalar_select %p260, %s259, 7
      %s262 = smul.addr %s261, 18
      %s263 = smul.addr %s262, 8
      %s264 = scalar_lea.vmem %s0, %s263
      %p265 = pneg %p50
      %p266 = pneg %p47
      %p267 = scmp.lt.s32.totalorder %s22, 0
      %s268 = scalar_select %p267, %s22, 0
      %s269 = smul.addr %s268, 4
      %s270 = scalar_lea.vmem %s1, %s269
      %p271 = pneg %p76
      %p272 = pneg %p73
      %p273 = pneg %p97
      %p274 = pneg %p94
      %p275 = pneg %p118
      %p276 = pneg %p115
      %p277 = scmp.lt.s32.totalorder %s22, 0
      %s278 = scalar_select %p277, %s22, 0
      %s279 = scalar_lea.vmem %s4, %s278
      %p280 = pneg %p144
      %p281 = pneg %p141
      %p282 = scmp.lt.s32.totalorder %s22, 0
      %s283 = scalar_select %p282, %s22, 0
      %s284 = scalar_lea.vmem %s5, %s283
      %p285 = pneg %p170
      %p286 = pneg %p167
      %p287 = pneg %p198
      %p288 = pneg %p195
      %p289 = scmp.lt.s32.totalorder %s21, 1
      %s290 = scalar_select %p289, %s21, 1
      %p291 = scmp.lt.s32.totalorder %s22, 0
      %s292 = scalar_select %p291, %s22, 0
      %s293 = smul.addr %s290, 20
      %s294 = sadd.s32 %s292, %s293
      %s295 = smul.addr %s294, 4
      %s296 = scalar_lea.vmem %s6, %s295
      %s297 = smul.u32 4, %s21
      %p298 = scmp.lt.s32.totalorder %s297, 7
      %s299 = scalar_select %p298, %s297, 7
      %s300 = smul.addr %s299, 18
      %s301 = smul.addr %s300, 8
      %s302 = scalar_lea.vmem %s0, %s301
      %s303 = smul.u32 4, %s21
      %p304 = scmp.lt.s32.totalorder %s22, 0
      %s305 = scalar_select %p304, %s22, 0
      %s306 = smul.addr %s305, 4
      %s307 = scalar_lea.vmem %s1, %s306
      %p308 = scmp.lt.s32.totalorder %s22, 0
      %s309 = scalar_select %p308, %s22, 0
      %s310 = scalar_lea.vmem %s4, %s309
      %p311 = scmp.lt.s32.totalorder %s22, 0
      %s312 = scalar_select %p311, %s22, 0
      %s313 = scalar_lea.vmem %s5, %s312
      %p314 = scmp.lt.s32.totalorder %s21, 1
      %s315 = scalar_select %p314, %s21, 1
      %p316 = scmp.lt.s32.totalorder %s22, 0
      %s317 = scalar_select %p316, %s22, 0
      %s318 = smul.addr %s315, 20
      %s319 = sadd.s32 %s317, %s318
      %s320 = smul.addr %s319, 4
      %s321 = scalar_lea.vmem %s6, %s320
      %v323 = vld [vmem:[%s302] sm:$0xff]
      %v324 = vld [vmem:[%s302 + $0x8] sm:$0x1]
      %v325 = vld [vmem:[%s302 + $0x10] sm:$0xff]
      %v326 = vld [vmem:[%s302 + $0x18] sm:$0x1]
      %v327 = vld [vmem:[%s302 + $0x20] sm:$0xff]
      %v328 = vld [vmem:[%s302 + $0x28] sm:$0x1]
      %v329 = vld [vmem:[%s302 + $0x30] sm:$0xff]
      %v330 = vld [vmem:[%s302 + $0x38] sm:$0x1]
      %v331 = vld [vmem:[%s302 + $0x40] sm:$0xff]
      %v332 = vld [vmem:[%s302 + $0x48] sm:$0x1]
      %v333 = vld [vmem:[%s302 + $0x50] sm:$0xff]
      %v334 = vld [vmem:[%s302 + $0x58] sm:$0x1]
      %v335 = vld [vmem:[%s302 + $0x60] sm:$0xff]
      %v336 = vld [vmem:[%s302 + $0x68] sm:$0x1]
      %v337 = vld [vmem:[%s302 + $0x70] sm:$0xff]
      %v338 = vld [vmem:[%s302 + $0x78] sm:$0x1]
      %v339 = vld [vmem:[%s302 + $0x80] sm:$0xff]
      %v340 = vld [vmem:[%s302 + $0x88] sm:$0x1]
      %v341 = vld [vmem:[%s302 + $0x90] sm:$0xff]
      %v342 = vld [vmem:[%s302 + $0x98] sm:$0x1]
      %v343 = vld [vmem:[%s302 + $0xa0] sm:$0xff]
      %v344 = vld [vmem:[%s302 + $0xa8] sm:$0x1]
      %v345 = vld [vmem:[%s302 + $0xb0] sm:$0xff]
      %v346 = vld [vmem:[%s302 + $0xb8] sm:$0x1]
      %v347 = vld [vmem:[%s302 + $0xc0] sm:$0xff]
      %v348 = vld [vmem:[%s302 + $0xc8] sm:$0x1]
      %v349 = vld [vmem:[%s302 + $0xd0] sm:$0xff]
      %v350 = vld [vmem:[%s302 + $0xd8] sm:$0x1]
      %v351 = vld [vmem:[%s302 + $0xe0] sm:$0xff]
      %v352 = vld [vmem:[%s302 + $0xe8] sm:$0x1]
      %v353 = vld [vmem:[%s302 + $0xf0] sm:$0xff]
      %v354 = vld [vmem:[%s302 + $0xf8] sm:$0x1]
      %v355 = vld [vmem:[%s302 + $0x100] sm:$0xff]
      %v356 = vld [vmem:[%s302 + $0x108] sm:$0x1]
      %v357 = vld [vmem:[%s302 + $0x110] sm:$0xff]
      %v358 = vld [vmem:[%s302 + $0x118] sm:$0x1]
      %v359 = vld [vmem:[%s302 + $0x120] sm:$0xff]
      %v360 = vld [vmem:[%s302 + $0x128] sm:$0x1]
      %v361 = vld [vmem:[%s302 + $0x130] sm:$0xff]
      %v362 = vld [vmem:[%s302 + $0x138] sm:$0x1]
      %v363 = vld [vmem:[%s302 + $0x140] sm:$0xff]
      %v364 = vld [vmem:[%s302 + $0x148] sm:$0x1]
      %v365 = vld [vmem:[%s302 + $0x150] sm:$0xff]
      %v366 = vld [vmem:[%s302 + $0x158] sm:$0x1]
      %v367 = vld [vmem:[%s302 + $0x160] sm:$0xff]
      %v368 = vld [vmem:[%s302 + $0x168] sm:$0x1]
      %v369 = vld [vmem:[%s302 + $0x170] sm:$0xff]
      %v370 = vld [vmem:[%s302 + $0x178] sm:$0x1]
      %v371 = vld [vmem:[%s302 + $0x180] sm:$0xff]
      %v372 = vld [vmem:[%s302 + $0x188] sm:$0x1]
      %v373 = vld [vmem:[%s302 + $0x190] sm:$0xff]
      %v374 = vld [vmem:[%s302 + $0x198] sm:$0x1]
      %v375 = vld [vmem:[%s302 + $0x1b0] sm:$0xff]
      %v376 = vld [vmem:[%s302 + $0x1b8] sm:$0x1]
      %v377 = vld [vmem:[%s302 + $0x1c0] sm:$0xff]
      %v378 = vld [vmem:[%s302 + $0x1c8] sm:$0x1]
      %v379 = vld [vmem:[%s302 + $0x1d0] sm:$0xff]
      %v380 = vld [vmem:[%s302 + $0x1d8] sm:$0x1]
      %v381 = vld [vmem:[%s302 + $0x1e0] sm:$0xff]
      %v382 = vld [vmem:[%s302 + $0x1e8] sm:$0x1]
      %v383 = vld [vmem:[%s302 + $0x1f0] sm:$0xff]
      %v384 = vld [vmem:[%s302 + $0x1f8] sm:$0x1]
      %v385 = vld [vmem:[%s302 + $0x200] sm:$0xff]
      %v386 = vld [vmem:[%s302 + $0x208] sm:$0x1]
      %v387 = vld [vmem:[%s302 + $0x210] sm:$0xff]
      %v388 = vld [vmem:[%s302 + $0x218] sm:$0x1]
      %v389 = vld [vmem:[%s302 + $0x220] sm:$0xff]
      %v390 = vld [vmem:[%s302 + $0x228] sm:$0x1]
      %v391 = vld [vmem:[%s2] sm:$0x1]
      %v393 = vlaneseq
      %v394 = vshrl.u32 %v393, 7
      %v395 = vsub.s32 0, %v394
      %v396 = vrot.slane %v391, %v395
      %v398 = vmul.f32 %v323, %v396
      %v399 = vmul.f32 %v324, %v396
      %v400 = vmul.f32 %v325, %v396
      %v401 = vmul.f32 %v326, %v396
      %v402 = vmul.f32 %v327, %v396
      %v403 = vmul.f32 %v328, %v396
      %v404 = vmul.f32 %v329, %v396
      %v405 = vmul.f32 %v330, %v396
      %v406 = vmul.f32 %v331, %v396
      %v407 = vmul.f32 %v332, %v396
      %v408 = vmul.f32 %v333, %v396
      %v409 = vmul.f32 %v334, %v396
      %v410 = vmul.f32 %v335, %v396
      %v411 = vmul.f32 %v336, %v396
      %v412 = vmul.f32 %v337, %v396
      %v413 = vmul.f32 %v338, %v396
      %v414 = vmul.f32 %v339, %v396
      %v415 = vmul.f32 %v340, %v396
      %v416 = vmul.f32 %v341, %v396
      %v417 = vmul.f32 %v342, %v396
      %v418 = vmul.f32 %v343, %v396
      %v419 = vmul.f32 %v344, %v396
      %v420 = vmul.f32 %v345, %v396
      %v421 = vmul.f32 %v346, %v396
      %v422 = vmul.f32 %v347, %v396
      %v423 = vmul.f32 %v348, %v396
      %v424 = vmul.f32 %v349, %v396
      %v425 = vmul.f32 %v350, %v396
      %v426 = vmul.f32 %v351, %v396
      %v427 = vmul.f32 %v352, %v396
      %v428 = vmul.f32 %v353, %v396
      %v429 = vmul.f32 %v354, %v396
      %v430 = vmul.f32 %v355, %v396
      %v431 = vmul.f32 %v356, %v396
      %v432 = vmul.f32 %v357, %v396
      %v433 = vmul.f32 %v358, %v396
      %v434 = vmul.f32 %v359, %v396
      %v435 = vmul.f32 %v360, %v396
      %v436 = vmul.f32 %v361, %v396
      %v437 = vmul.f32 %v362, %v396
      %v438 = vmul.f32 %v363, %v396
      %v439 = vmul.f32 %v364, %v396
      %v440 = vmul.f32 %v365, %v396
      %v441 = vmul.f32 %v366, %v396
      %v442 = vmul.f32 %v367, %v396
      %v443 = vmul.f32 %v368, %v396
      %v444 = vmul.f32 %v369, %v396
      %v445 = vmul.f32 %v370, %v396
      %v446 = vmul.f32 %v371, %v396
      %v447 = vmul.f32 %v372, %v396
      %v448 = vmul.f32 %v373, %v396
      %v449 = vmul.f32 %v374, %v396
      %v450 = vmul.f32 %v375, %v396
      %v451 = vmul.f32 %v376, %v396
      %v452 = vmul.f32 %v377, %v396
      %v453 = vmul.f32 %v378, %v396
      %v454 = vmul.f32 %v379, %v396
      %v455 = vmul.f32 %v380, %v396
      %v456 = vmul.f32 %v381, %v396
      %v457 = vmul.f32 %v382, %v396
      %v458 = vmul.f32 %v383, %v396
      %v459 = vmul.f32 %v384, %v396
      %v460 = vmul.f32 %v385, %v396
      %v461 = vmul.f32 %v386, %v396
      %v462 = vmul.f32 %v387, %v396
      %v463 = vmul.f32 %v388, %v396
      %v464 = vmul.f32 %v389, %v396
      %v465 = vmul.f32 %v390, %v396
      %v466 = vld [vmem:[%s3] sm:$0x1]
      %v468 = vlaneseq
      %v469 = vshrl.u32 %v468, 7
      %v470 = vsub.s32 0, %v469
      %v471 = vrot.slane %v466, %v470
      %v473 = vadd.f32 %v398, %v471
      %v474 = vadd.f32 %v399, %v471
      %v475 = vadd.f32 %v400, %v471
      %v476 = vadd.f32 %v401, %v471
      %v477 = vadd.f32 %v402, %v471
      %v478 = vadd.f32 %v403, %v471
      %v479 = vadd.f32 %v404, %v471
      %v480 = vadd.f32 %v405, %v471
      %v481 = vadd.f32 %v406, %v471
      %v482 = vadd.f32 %v407, %v471
      %v483 = vadd.f32 %v408, %v471
      %v484 = vadd.f32 %v409, %v471
      %v485 = vadd.f32 %v410, %v471
      %v486 = vadd.f32 %v411, %v471
      %v487 = vadd.f32 %v412, %v471
      %v488 = vadd.f32 %v413, %v471
      %v489 = vadd.f32 %v414, %v471
      %v490 = vadd.f32 %v415, %v471
      %v491 = vadd.f32 %v416, %v471
      %v492 = vadd.f32 %v417, %v471
      %v493 = vadd.f32 %v418, %v471
      %v494 = vadd.f32 %v419, %v471
      %v495 = vadd.f32 %v420, %v471
      %v496 = vadd.f32 %v421, %v471
      %v497 = vadd.f32 %v422, %v471
      %v498 = vadd.f32 %v423, %v471
      %v499 = vadd.f32 %v424, %v471
      %v500 = vadd.f32 %v425, %v471
      %v501 = vadd.f32 %v426, %v471
      %v502 = vadd.f32 %v427, %v471
      %v503 = vadd.f32 %v428, %v471
      %v504 = vadd.f32 %v429, %v471
      %v505 = vadd.f32 %v430, %v471
      %v506 = vadd.f32 %v431, %v471
      %v507 = vadd.f32 %v432, %v471
      %v508 = vadd.f32 %v433, %v471
      %v509 = vadd.f32 %v434, %v471
      %v510 = vadd.f32 %v435, %v471
      %v511 = vadd.f32 %v436, %v471
      %v512 = vadd.f32 %v437, %v471
      %v513 = vadd.f32 %v438, %v471
      %v514 = vadd.f32 %v439, %v471
      %v515 = vadd.f32 %v440, %v471
      %v516 = vadd.f32 %v441, %v471
      %v517 = vadd.f32 %v442, %v471
      %v518 = vadd.f32 %v443, %v471
      %v519 = vadd.f32 %v444, %v471
      %v520 = vadd.f32 %v445, %v471
      %v521 = vadd.f32 %v446, %v471
      %v522 = vadd.f32 %v447, %v471
      %v523 = vadd.f32 %v448, %v471
      %v524 = vadd.f32 %v449, %v471
      %v525 = vadd.f32 %v450, %v471
      %v526 = vadd.f32 %v451, %v471
      %v527 = vadd.f32 %v452, %v471
      %v528 = vadd.f32 %v453, %v471
      %v529 = vadd.f32 %v454, %v471
      %v530 = vadd.f32 %v455, %v471
      %v531 = vadd.f32 %v456, %v471
      %v532 = vadd.f32 %v457, %v471
      %v533 = vadd.f32 %v458, %v471
      %v534 = vadd.f32 %v459, %v471
      %v535 = vadd.f32 %v460, %v471
      %v536 = vadd.f32 %v461, %v471
      %v537 = vadd.f32 %v462, %v471
      %v538 = vadd.f32 %v463, %v471
      %v539 = vadd.f32 %v464, %v471
      %v540 = vadd.f32 %v465, %v471
      %v541 = vmul.f32 %v473, 0.1
      %v542 = vmul.f32 %v474, 0.1
      %v543 = vmul.f32 %v475, 0.1
      %v544 = vmul.f32 %v476, 0.1
      %v545 = vmul.f32 %v477, 0.1
      %v546 = vmul.f32 %v478, 0.1
      %v547 = vmul.f32 %v479, 0.1
      %v548 = vmul.f32 %v480, 0.1
      %v549 = vmul.f32 %v481, 0.1
      %v550 = vmul.f32 %v482, 0.1
      %v551 = vmul.f32 %v483, 0.1
      %v552 = vmul.f32 %v484, 0.1
      %v553 = vmul.f32 %v485, 0.1
      %v554 = vmul.f32 %v486, 0.1
      %v555 = vmul.f32 %v487, 0.1
      %v556 = vmul.f32 %v488, 0.1
      %v557 = vmul.f32 %v489, 0.1
      %v558 = vmul.f32 %v490, 0.1
      %v559 = vmul.f32 %v491, 0.1
      %v560 = vmul.f32 %v492, 0.1
      %v561 = vmul.f32 %v493, 0.1
      %v562 = vmul.f32 %v494, 0.1
      %v563 = vmul.f32 %v495, 0.1
      %v564 = vmul.f32 %v496, 0.1
      %v565 = vmul.f32 %v497, 0.1
      %v566 = vmul.f32 %v498, 0.1
      %v567 = vmul.f32 %v499, 0.1
      %v568 = vmul.f32 %v500, 0.1
      %v569 = vmul.f32 %v501, 0.1
      %v570 = vmul.f32 %v502, 0.1
      %v571 = vmul.f32 %v503, 0.1
      %v572 = vmul.f32 %v504, 0.1
      %v573 = vmul.f32 %v505, 0.1
      %v574 = vmul.f32 %v506, 0.1
      %v575 = vmul.f32 %v507, 0.1
      %v576 = vmul.f32 %v508, 0.1
      %v577 = vmul.f32 %v509, 0.1
      %v578 = vmul.f32 %v510, 0.1
      %v579 = vmul.f32 %v511, 0.1
      %v580 = vmul.f32 %v512, 0.1
      %v581 = vmul.f32 %v513, 0.1
      %v582 = vmul.f32 %v514, 0.1
      %v583 = vmul.f32 %v515, 0.1
      %v584 = vmul.f32 %v516, 0.1
      %v585 = vmul.f32 %v517, 0.1
      %v586 = vmul.f32 %v518, 0.1
      %v587 = vmul.f32 %v519, 0.1
      %v588 = vmul.f32 %v520, 0.1
      %v589 = vmul.f32 %v521, 0.1
      %v590 = vmul.f32 %v522, 0.1
      %v591 = vmul.f32 %v523, 0.1
      %v592 = vmul.f32 %v524, 0.1
      %v593 = vmul.f32 %v525, 0.1
      %v594 = vmul.f32 %v526, 0.1
      %v595 = vmul.f32 %v527, 0.1
      %v596 = vmul.f32 %v528, 0.1
      %v597 = vmul.f32 %v529, 0.1
      %v598 = vmul.f32 %v530, 0.1
      %v599 = vmul.f32 %v531, 0.1
      %v600 = vmul.f32 %v532, 0.1
      %v601 = vmul.f32 %v533, 0.1
      %v602 = vmul.f32 %v534, 0.1
      %v603 = vmul.f32 %v535, 0.1
      %v604 = vmul.f32 %v536, 0.1
      %v605 = vmul.f32 %v537, 0.1
      %v606 = vmul.f32 %v538, 0.1
      %v607 = vmul.f32 %v539, 0.1
      %v608 = vmul.f32 %v540, 0.1
      %v609 = vmax.f32 %v473, %v541
      %v610 = vmax.f32 %v474, %v542
      %v611 = vmax.f32 %v475, %v543
      %v612 = vmax.f32 %v476, %v544
      %v613 = vmax.f32 %v477, %v545
      %v614 = vmax.f32 %v478, %v546
      %v615 = vmax.f32 %v479, %v547
      %v616 = vmax.f32 %v480, %v548
      %v617 = vmax.f32 %v481, %v549
      %v618 = vmax.f32 %v482, %v550
      %v619 = vmax.f32 %v483, %v551
      %v620 = vmax.f32 %v484, %v552
      %v621 = vmax.f32 %v485, %v553
      %v622 = vmax.f32 %v486, %v554
      %v623 = vmax.f32 %v487, %v555
      %v624 = vmax.f32 %v488, %v556
      %v625 = vmax.f32 %v489, %v557
      %v626 = vmax.f32 %v490, %v558
      %v627 = vmax.f32 %v491, %v559
      %v628 = vmax.f32 %v492, %v560
      %v629 = vmax.f32 %v493, %v561
      %v630 = vmax.f32 %v494, %v562
      %v631 = vmax.f32 %v495, %v563
      %v632 = vmax.f32 %v496, %v564
      %v633 = vmax.f32 %v497, %v565
      %v634 = vmax.f32 %v498, %v566
      %v635 = vmax.f32 %v499, %v567
      %v636 = vmax.f32 %v500, %v568
      %v637 = vmax.f32 %v501, %v569
      %v638 = vmax.f32 %v502, %v570
      %v639 = vmax.f32 %v503, %v571
      %v640 = vmax.f32 %v504, %v572
      %v641 = vmax.f32 %v505, %v573
      %v642 = vmax.f32 %v506, %v574
      %v643 = vmax.f32 %v507, %v575
      %v644 = vmax.f32 %v508, %v576
      %v645 = vmax.f32 %v509, %v577
      %v646 = vmax.f32 %v510, %v578
      %v647 = vmax.f32 %v511, %v579
      %v648 = vmax.f32 %v512, %v580
      %v649 = vmax.f32 %v513, %v581
      %v650 = vmax.f32 %v514, %v582
      %v651 = vmax.f32 %v515, %v583
      %v652 = vmax.f32 %v516, %v584
      %v653 = vmax.f32 %v517, %v585
      %v654 = vmax.f32 %v518, %v586
      %v655 = vmax.f32 %v519, %v587
      %v656 = vmax.f32 %v520, %v588
      %v657 = vmax.f32 %v521, %v589
      %v658 = vmax.f32 %v522, %v590
      %v659 = vmax.f32 %v523, %v591
      %v660 = vmax.f32 %v524, %v592
      %v661 = vmax.f32 %v525, %v593
      %v662 = vmax.f32 %v526, %v594
      %v663 = vmax.f32 %v527, %v595
      %v664 = vmax.f32 %v528, %v596
      %v665 = vmax.f32 %v529, %v597
      %v666 = vmax.f32 %v530, %v598
      %v667 = vmax.f32 %v531, %v599
      %v668 = vmax.f32 %v532, %v600
      %v669 = vmax.f32 %v533, %v601
      %v670 = vmax.f32 %v534, %v602
      %v671 = vmax.f32 %v535, %v603
      %v672 = vmax.f32 %v536, %v604
      %v673 = vmax.f32 %v537, %v605
      %v674 = vmax.f32 %v538, %v606
      %v675 = vmax.f32 %v539, %v607
      %v676 = vmax.f32 %v540, %v608
      %v677 = vpack.c.bf16 %v610, %v609
      %v678 = vpack.c.bf16 %v612, %v611
      %v679 = vpack.c.bf16 %v614, %v613
      %v680 = vpack.c.bf16 %v616, %v615
      %v681 = vpack.c.bf16 %v618, %v617
      %v682 = vpack.c.bf16 %v620, %v619
      %v683 = vpack.c.bf16 %v622, %v621
      %v684 = vpack.c.bf16 %v624, %v623
      %v685 = vpack.c.bf16 %v626, %v625
      %v686 = vpack.c.bf16 %v628, %v627
      %v687 = vpack.c.bf16 %v630, %v629
      %v688 = vpack.c.bf16 %v632, %v631
      %v689 = vpack.c.bf16 %v634, %v633
      %v690 = vpack.c.bf16 %v636, %v635
      %v691 = vpack.c.bf16 %v638, %v637
      %v692 = vpack.c.bf16 %v640, %v639
      %v693 = vpack.c.bf16 %v642, %v641
      %v694 = vpack.c.bf16 %v644, %v643
      %v695 = vpack.c.bf16 %v646, %v645
      %v696 = vpack.c.bf16 %v648, %v647
      %v697 = vpack.c.bf16 %v650, %v649
      %v698 = vpack.c.bf16 %v652, %v651
      %v699 = vpack.c.bf16 %v654, %v653
      %v700 = vpack.c.bf16 %v656, %v655
      %v701 = vpack.c.bf16 %v658, %v657
      %v702 = vpack.c.bf16 %v660, %v659
      %v703 = vpack.c.bf16 %v662, %v661
      %v704 = vpack.c.bf16 %v664, %v663
      %v705 = vpack.c.bf16 %v666, %v665
      %v706 = vpack.c.bf16 %v668, %v667
      %v707 = vpack.c.bf16 %v670, %v669
      %v708 = vpack.c.bf16 %v672, %v671
      %v709 = vpack.c.bf16 %v674, %v673
      %v710 = vpack.c.bf16 %v676, %v675
      %v711 = vld [vmem:[%s307] sm:$0xf]
      %v712 = vld [vmem:[%s307 + $0x4] sm:$0xf]
      %v713 = vld [vmem:[%s307 + $0x8] sm:$0xf]
      %v714 = vld [vmem:[%s307 + $0xc] sm:$0xf]
      %v715 = vld [vmem:[%s307 + $0x10] sm:$0x3]
      %v724 = vunpack.c.l.b16 %v677
      %v725 = vunpack.c.h.b16 %v677
      %v726 = vunpack.c.l.b16 %v678
      %v727 = vunpack.c.h.b16 %v678
      %v728 = vunpack.c.l.b16 %v679
      %v729 = vunpack.c.h.b16 %v679
      %v730 = vunpack.c.l.b16 %v680
      %v731 = vunpack.c.h.b16 %v680
      %v732 = vunpack.c.l.b16 %v681
      %v733 = vunpack.c.h.b16 %v681
      %v734 = vunpack.c.l.b16 %v682
      %v735 = vunpack.c.h.b16 %v682
      %v736 = vunpack.c.l.b16 %v683
      %v737 = vunpack.c.h.b16 %v683
      %v738 = vunpack.c.l.b16 %v684
      %v739 = vunpack.c.h.b16 %v684
      %v740 = vpack.c.b16 %v724, %v724
      %v741 = vpack.c.b16 %v725, %v725
      %v742 = vpack.c.b16 %v726, %v726
      %v743 = vpack.c.b16 %v727, %v727
      %v744 = vpack.c.b16 %v728, %v728
      %v745 = vpack.c.b16 %v729, %v729
      %v746 = vpack.c.b16 %v730, %v730
      %v747 = vpack.c.b16 %v731, %v731
      %v748 = vpack.c.b16 %v732, %v732
      %v749 = vpack.c.b16 %v733, %v733
      %v750 = vpack.c.b16 %v734, %v734
      %v751 = vpack.c.b16 %v735, %v735
      %v752 = vpack.c.b16 %v736, %v736
      %v753 = vpack.c.b16 %v737, %v737
      %v754 = vpack.c.b16 %v738, %v738
      %v755 = vpack.c.b16 %v739, %v739
      %vm756 = vsmask.f32 3328
      %vm757 = vsmask.f32 7440
      %vm758 = vmor %vm756, %vm757
      %v760 = vshrl.u32 %v740, 16
      %v762 = vrot.slane %v760, 4
      %v763 = vshll.u32 %v740, 16
      %v765 = vrot.slane %v763, 5
      %v766 = vor.u32 %v762, %v765
      %v767 = vrot.slane %v766, 4
      %v769 = vshll.u32 %v741, 16
      %v771 = vrot.slane %v769, 5
      %v772 = vsel %vm758, %v767, %v771
      %v774 = vshrl.u32 %v742, 16
      %v776 = vrot.slane %v774, 4
      %v777 = vshll.u32 %v742, 16
      %v779 = vrot.slane %v777, 5
      %v780 = vor.u32 %v776, %v779
      %v781 = vrot.slane %v780, 4
      %v783 = vshll.u32 %v743, 16
      %v785 = vrot.slane %v783, 5
      %v786 = vsel %vm758, %v781, %v785
      %v788 = vshrl.u32 %v744, 16
      %v790 = vrot.slane %v788, 4
      %v791 = vshll.u32 %v744, 16
      %v793 = vrot.slane %v791, 5
      %v794 = vor.u32 %v790, %v793
      %v795 = vrot.slane %v794, 4
      %v797 = vshll.u32 %v745, 16
      %v799 = vrot.slane %v797, 5
      %v800 = vsel %vm758, %v795, %v799
      %v802 = vshrl.u32 %v746, 16
      %v804 = vrot.slane %v802, 4
      %v805 = vshll.u32 %v746, 16
      %v807 = vrot.slane %v805, 5
      %v808 = vor.u32 %v804, %v807
      %v809 = vrot.slane %v808, 4
      %v811 = vshll.u32 %v747, 16
      %v813 = vrot.slane %v811, 5
      %v814 = vsel %vm758, %v809, %v813
      %v816 = vshrl.u32 %v748, 16
      %v818 = vrot.slane %v816, 4
      %v819 = vshll.u32 %v748, 16
      %v821 = vrot.slane %v819, 5
      %v822 = vor.u32 %v818, %v821
      %v823 = vrot.slane %v822, 4
      %v825 = vshll.u32 %v749, 16
      %v827 = vrot.slane %v825, 5
      %v828 = vsel %vm758, %v823, %v827
      %v830 = vshrl.u32 %v750, 16
      %v832 = vrot.slane %v830, 4
      %v833 = vshll.u32 %v750, 16
      %v835 = vrot.slane %v833, 5
      %v836 = vor.u32 %v832, %v835
      %v837 = vrot.slane %v836, 4
      %v839 = vshll.u32 %v751, 16
      %v841 = vrot.slane %v839, 5
      %v842 = vsel %vm758, %v837, %v841
      %v844 = vshrl.u32 %v752, 16
      %v846 = vrot.slane %v844, 4
      %v847 = vshll.u32 %v752, 16
      %v849 = vrot.slane %v847, 5
      %v850 = vor.u32 %v846, %v849
      %v851 = vrot.slane %v850, 4
      %v853 = vshll.u32 %v753, 16
      %v855 = vrot.slane %v853, 5
      %v856 = vsel %vm758, %v851, %v855
      %v858 = vshrl.u32 %v754, 16
      %v860 = vrot.slane %v858, 4
      %v861 = vshll.u32 %v754, 16
      %v863 = vrot.slane %v861, 5
      %v864 = vor.u32 %v860, %v863
      %v865 = vrot.slane %v864, 4
      %v867 = vshll.u32 %v755, 16
      %v869 = vrot.slane %v867, 5
      %v870 = vsel %vm758, %v865, %v869
      %v879 = vunpack.c.l.b16 %v695
      %v880 = vunpack.c.h.b16 %v695
      %v881 = vunpack.c.l.b16 %v696
      %v882 = vunpack.c.h.b16 %v696
      %v883 = vunpack.c.l.b16 %v697
      %v884 = vunpack.c.h.b16 %v697
      %v885 = vunpack.c.l.b16 %v698
      %v886 = vunpack.c.h.b16 %v698
      %v887 = vunpack.c.l.b16 %v699
      %v888 = vunpack.c.h.b16 %v699
      %v889 = vunpack.c.l.b16 %v700
      %v890 = vunpack.c.h.b16 %v700
      %v891 = vunpack.c.l.b16 %v701
      %v892 = vunpack.c.h.b16 %v701
      %v893 = vunpack.c.l.b16 %v702
      %v894 = vunpack.c.h.b16 %v702
      %v895 = vpack.c.b16 %v879, %v879
      %v896 = vpack.c.b16 %v880, %v880
      %v897 = vpack.c.b16 %v881, %v881
      %v898 = vpack.c.b16 %v882, %v882
      %v899 = vpack.c.b16 %v883, %v883
      %v900 = vpack.c.b16 %v884, %v884
      %v901 = vpack.c.b16 %v885, %v885
      %v902 = vpack.c.b16 %v886, %v886
      %v903 = vpack.c.b16 %v887, %v887
      %v904 = vpack.c.b16 %v888, %v888
      %v905 = vpack.c.b16 %v889, %v889
      %v906 = vpack.c.b16 %v890, %v890
      %v907 = vpack.c.b16 %v891, %v891
      %v908 = vpack.c.b16 %v892, %v892
      %v909 = vpack.c.b16 %v893, %v893
      %v910 = vpack.c.b16 %v894, %v894
      %v912 = vshrl.u32 %v895, 16
      %v914 = vrot.slane %v912, 4
      %v915 = vshll.u32 %v895, 16
      %v917 = vrot.slane %v915, 5
      %v918 = vor.u32 %v914, %v917
      %v919 = vrot.slane %v918, 4
      %v921 = vshll.u32 %v896, 16
      %v923 = vrot.slane %v921, 5
      %v924 = vsel %vm758, %v919, %v923
      %v926 = vshrl.u32 %v897, 16
      %v928 = vrot.slane %v926, 4
      %v929 = vshll.u32 %v897, 16
      %v931 = vrot.slane %v929, 5
      %v932 = vor.u32 %v928, %v931
      %v933 = vrot.slane %v932, 4
      %v935 = vshll.u32 %v898, 16
      %v937 = vrot.slane %v935, 5
      %v938 = vsel %vm758, %v933, %v937
      %v940 = vshrl.u32 %v899, 16
      %v942 = vrot.slane %v940, 4
      %v943 = vshll.u32 %v899, 16
      %v945 = vrot.slane %v943, 5
      %v946 = vor.u32 %v942, %v945
      %v947 = vrot.slane %v946, 4
      %v949 = vshll.u32 %v900, 16
      %v951 = vrot.slane %v949, 5
      %v952 = vsel %vm758, %v947, %v951
      %v954 = vshrl.u32 %v901, 16
      %v956 = vrot.slane %v954, 4
      %v957 = vshll.u32 %v901, 16
      %v959 = vrot.slane %v957, 5
      %v960 = vor.u32 %v956, %v959
      %v961 = vrot.slane %v960, 4
      %v963 = vshll.u32 %v902, 16
      %v965 = vrot.slane %v963, 5
      %v966 = vsel %vm758, %v961, %v965
      %v968 = vshrl.u32 %v903, 16
      %v970 = vrot.slane %v968, 4
      %v971 = vshll.u32 %v903, 16
      %v973 = vrot.slane %v971, 5
      %v974 = vor.u32 %v970, %v973
      %v975 = vrot.slane %v974, 4
      %v977 = vshll.u32 %v904, 16
      %v979 = vrot.slane %v977, 5
      %v980 = vsel %vm758, %v975, %v979
      %v982 = vshrl.u32 %v905, 16
      %v984 = vrot.slane %v982, 4
      %v985 = vshll.u32 %v905, 16
      %v987 = vrot.slane %v985, 5
      %v988 = vor.u32 %v984, %v987
      %v989 = vrot.slane %v988, 4
      %v991 = vshll.u32 %v906, 16
      %v993 = vrot.slane %v991, 5
      %v994 = vsel %vm758, %v989, %v993
      %v996 = vshrl.u32 %v907, 16
      %v998 = vrot.slane %v996, 4
      %v999 = vshll.u32 %v907, 16
      %v1001 = vrot.slane %v999, 5
      %v1002 = vor.u32 %v998, %v1001
      %v1003 = vrot.slane %v1002, 4
      %v1005 = vshll.u32 %v908, 16
      %v1007 = vrot.slane %v1005, 5
      %v1008 = vsel %vm758, %v1003, %v1007
      %v1010 = vshrl.u32 %v909, 16
      %v1012 = vrot.slane %v1010, 4
      %v1013 = vshll.u32 %v909, 16
      %v1015 = vrot.slane %v1013, 5
      %v1016 = vor.u32 %v1012, %v1015
      %v1017 = vrot.slane %v1016, 4
      %v1019 = vshll.u32 %v910, 16
      %v1021 = vrot.slane %v1019, 5
      %v1022 = vsel %vm758, %v1017, %v1021
      %v1024 = vunpack.c.l.b16 %v685
      %v1025 = vunpack.c.h.b16 %v685
      %v1026 = vpack.c.b16 %v1024, %v1024
      %v1027 = vpack.c.b16 %v1025, %v1025
      %v1029 = vshrl.u32 %v1026, 16
      %v1031 = vrot.slane %v1029, 4
      %v1032 = vshll.u32 %v1026, 16
      %v1034 = vrot.slane %v1032, 5
      %v1035 = vor.u32 %v1031, %v1034
      %v1036 = vrot.slane %v1035, 4
      %v1038 = vshll.u32 %v1027, 16
      %v1040 = vrot.slane %v1038, 5
      %v1041 = vsel %vm758, %v1036, %v1040
      %v1042 = vpack.c.b16 %v726, %v724
      %v1043 = vpack.c.b16 %v730, %v728
      %v1044 = vpack.c.b16 %v734, %v732
      %v1045 = vpack.c.b16 %v738, %v736
      %v1054 = vunpack.c.l.b16 %v686
      %v1055 = vunpack.c.l.b16 %v687
      %v1056 = vunpack.c.l.b16 %v688
      %v1057 = vunpack.c.l.b16 %v689
      %v1058 = vunpack.c.l.b16 %v690
      %v1059 = vunpack.c.l.b16 %v691
      %v1060 = vunpack.c.l.b16 %v692
      %v1061 = vunpack.c.l.b16 %v693
      %v1062 = vpack.c.b16 %v1055, %v1054
      %v1063 = vpack.c.b16 %v1057, %v1056
      %v1064 = vpack.c.b16 %v1059, %v1058
      %v1065 = vpack.c.b16 %v1061, %v1060
      %1066 = vrot.lane.b32.xlu0 %v1062, 4
      %v1067 = vpop.permute.xlu0 %1066
      %1068 = vrot.lane.b32.xlu0 %v1063, 4
      %v1069 = vpop.permute.xlu0 %1068
      %1070 = vrot.lane.b32.xlu0 %v1064, 4
      %v1071 = vpop.permute.xlu0 %1070
      %1072 = vrot.lane.b32.xlu0 %v1065, 4
      %v1073 = vpop.permute.xlu0 %1072
      %v1074 = vunpack.c.l.b16 %v772
      %v1075 = vunpack.c.l.b16 %v786
      %v1076 = vunpack.c.l.b16 %v800
      %v1077 = vunpack.c.l.b16 %v814
      %v1078 = vunpack.c.l.b16 %v828
      %v1079 = vunpack.c.l.b16 %v842
      %v1080 = vunpack.c.l.b16 %v856
      %v1081 = vunpack.c.l.b16 %v870
      %v1082 = vpack.c.b16 %v1075, %v1074
      %v1083 = vpack.c.b16 %v1077, %v1076
      %v1084 = vpack.c.b16 %v1079, %v1078
      %v1085 = vpack.c.b16 %v1081, %v1080
      %1086 = vrot.lane.b32.xlu0 %v1082, 8
      %v1087 = vpop.permute.xlu0 %1086
      %1088 = vrot.lane.b32.xlu0 %v1083, 8
      %v1089 = vpop.permute.xlu0 %1088
      %1090 = vrot.lane.b32.xlu0 %v1084, 8
      %v1091 = vpop.permute.xlu0 %1090
      %1092 = vrot.lane.b32.xlu0 %v1085, 8
      %v1093 = vpop.permute.xlu0 %1092
      %v1094 = vpack.c.b16 %v881, %v879
      %v1095 = vpack.c.b16 %v885, %v883
      %v1096 = vpack.c.b16 %v889, %v887
      %v1097 = vpack.c.b16 %v893, %v891
      %1098 = vrot.lane.b32.xlu0 %v1094, 12
      %v1099 = vpop.permute.xlu0 %1098
      %1100 = vrot.lane.b32.xlu0 %v1095, 12
      %v1101 = vpop.permute.xlu0 %1100
      %1102 = vrot.lane.b32.xlu0 %v1096, 12
      %v1103 = vpop.permute.xlu0 %1102
      %1104 = vrot.lane.b32.xlu0 %v1097, 12
      %v1105 = vpop.permute.xlu0 %1104
      %v1114 = vunpack.c.l.b16 %v703
      %v1115 = vunpack.c.l.b16 %v704
      %v1116 = vunpack.c.l.b16 %v705
      %v1117 = vunpack.c.l.b16 %v706
      %v1118 = vunpack.c.l.b16 %v707
      %v1119 = vunpack.c.l.b16 %v708
      %v1120 = vunpack.c.l.b16 %v709
      %v1121 = vunpack.c.l.b16 %v710
      %v1122 = vpack.c.b16 %v1115, %v1114
      %v1123 = vpack.c.b16 %v1117, %v1116
      %v1124 = vpack.c.b16 %v1119, %v1118
      %v1125 = vpack.c.b16 %v1121, %v1120
      %1126 = vrot.lane.b32.xlu0 %v1122, 16
      %v1127 = vpop.permute.xlu0 %1126
      %1128 = vrot.lane.b32.xlu0 %v1123, 16
      %v1129 = vpop.permute.xlu0 %1128
      %1130 = vrot.lane.b32.xlu0 %v1124, 16
      %v1131 = vpop.permute.xlu0 %1130
      %1132 = vrot.lane.b32.xlu0 %v1125, 16
      %v1133 = vpop.permute.xlu0 %1132
      %v1134 = vunpack.c.l.b16 %v924
      %v1135 = vunpack.c.l.b16 %v938
      %v1136 = vunpack.c.l.b16 %v952
      %v1137 = vunpack.c.l.b16 %v966
      %v1138 = vunpack.c.l.b16 %v980
      %v1139 = vunpack.c.l.b16 %v994
      %v1140 = vunpack.c.l.b16 %v1008
      %v1141 = vunpack.c.l.b16 %v1022
      %v1142 = vpack.c.b16 %v1135, %v1134
      %v1143 = vpack.c.b16 %v1137, %v1136
      %v1144 = vpack.c.b16 %v1139, %v1138
      %v1145 = vpack.c.b16 %v1141, %v1140
      %1146 = vrot.lane.b32.xlu0 %v1142, 20
      %v1147 = vpop.permute.xlu0 %1146
      %1148 = vrot.lane.b32.xlu0 %v1143, 20
      %v1149 = vpop.permute.xlu0 %1148
      %1150 = vrot.lane.b32.xlu0 %v1144, 20
      %v1151 = vpop.permute.xlu0 %1150
      %1152 = vrot.lane.b32.xlu0 %v1145, 20
      %v1153 = vpop.permute.xlu0 %1152
      %v1154 = vpack.c.b16 %v728, %v726
      %v1155 = vpack.c.b16 %v732, %v730
      %v1156 = vpack.c.b16 %v736, %v734
      %v1157 = vpack.c.b16 %v1024, %v738
      %1158 = vrot.lane.b32.xlu0 %v1154, 24
      %v1159 = vpop.permute.xlu0 %1158
      %1160 = vrot.lane.b32.xlu0 %v1155, 24
      %v1161 = vpop.permute.xlu0 %1160
      %1162 = vrot.lane.b32.xlu0 %v1156, 24
      %v1163 = vpop.permute.xlu0 %1162
      %1164 = vrot.lane.b32.xlu0 %v1157, 24
      %v1165 = vpop.permute.xlu0 %1164
      %v1167 = vunpack.c.l.b16 %v694
      %v1168 = vpack.c.b16 %v1056, %v1055
      %v1169 = vpack.c.b16 %v1058, %v1057
      %v1170 = vpack.c.b16 %v1060, %v1059
      %v1171 = vpack.c.b16 %v1167, %v1061
      %1172 = vrot.lane.b32.xlu0 %v1168, 28
      %v1173 = vpop.permute.xlu0 %1172
      %1174 = vrot.lane.b32.xlu0 %v1169, 28
      %v1175 = vpop.permute.xlu0 %1174
      %1176 = vrot.lane.b32.xlu0 %v1170, 28
      %v1177 = vpop.permute.xlu0 %1176
      %1178 = vrot.lane.b32.xlu0 %v1171, 28
      %v1179 = vpop.permute.xlu0 %1178
      %v1180 = vunpack.c.l.b16 %v1041
      %v1181 = vpack.c.b16 %v1076, %v1075
      %v1182 = vpack.c.b16 %v1078, %v1077
      %v1183 = vpack.c.b16 %v1080, %v1079
      %v1184 = vpack.c.b16 %v1180, %v1081
      %1185 = vrot.lane.b32.xlu0 %v1181, 32
      %v1186 = vpop.permute.xlu0 %1185
      %1187 = vrot.lane.b32.xlu0 %v1182, 32
      %v1188 = vpop.permute.xlu0 %1187
      %1189 = vrot.lane.b32.xlu0 %v1183, 32
      %v1190 = vpop.permute.xlu0 %1189
      %1191 = vrot.lane.b32.xlu0 %v1184, 32
      %v1192 = vpop.permute.xlu0 %1191
      %vm1193 = vcmask 31744
      %v1196 = vsel %vm1193, %v1042, %v1067
      %v1199 = vsel %vm1193, %v1043, %v1069
      %v1202 = vsel %vm1193, %v1044, %v1071
      %v1205 = vsel %vm1193, %v1045, %v1073
      %vm1206 = vcmask 64512
      %v1208 = vsel %vm1206, %v1196, %v1087
      %v1210 = vsel %vm1206, %v1199, %v1089
      %v1212 = vsel %vm1206, %v1202, %v1091
      %v1214 = vsel %vm1206, %v1205, %v1093
      %vm1215 = vcmask 97280
      %v1217 = vsel %vm1215, %v1208, %v1099
      %v1219 = vsel %vm1215, %v1210, %v1101
      %v1221 = vsel %vm1215, %v1212, %v1103
      %v1223 = vsel %vm1215, %v1214, %v1105
      %vm1224 = vcmask 130048
      %v1226 = vsel %vm1224, %v1217, %v1127
      %v1228 = vsel %vm1224, %v1219, %v1129
      %v1230 = vsel %vm1224, %v1221, %v1131
      %v1232 = vsel %vm1224, %v1223, %v1133
      %vm1233 = vcmask 162816
      %v1235 = vsel %vm1233, %v1226, %v1147
      %v1237 = vsel %vm1233, %v1228, %v1149
      %v1239 = vsel %vm1233, %v1230, %v1151
      %v1241 = vsel %vm1233, %v1232, %v1153
      %vm1242 = vcmask 195584
      %v1244 = vsel %vm1242, %v1235, %v1159
      %v1246 = vsel %vm1242, %v1237, %v1161
      %v1248 = vsel %vm1242, %v1239, %v1163
      %v1250 = vsel %vm1242, %v1241, %v1165
      %vm1251 = vcmask 228352
      %v1253 = vsel %vm1251, %v1244, %v1173
      %v1255 = vsel %vm1251, %v1246, %v1175
      %v1257 = vsel %vm1251, %v1248, %v1177
      %v1259 = vsel %vm1251, %v1250, %v1179
      %vm1260 = vcmask 261120
      %v1262 = vsel %vm1260, %v1253, %v1186
      %v1264 = vsel %vm1260, %v1255, %v1188
      %v1266 = vsel %vm1260, %v1257, %v1190
      %v1268 = vsel %vm1260, %v1259, %v1192
      %v1274 = vunpack.c.l.b16 %v711
      %v1275 = vunpack.c.l.b16 %v712
      %v1276 = vunpack.c.l.b16 %v713
      %v1277 = vunpack.c.l.b16 %v714
      %v1278 = vunpack.c.l.b16 %v715
      %v1279 = vpack.c.b16 %v1275, %v1274
      %v1280 = vpack.c.b16 %v1277, %v1276
      %v1281 = vpack.c.b16 %v1278, %v1278
      %vm1284 = vcmask 293888
      %v1285 = vsel %vm1284, %v1262, 0
      %v1287 = vsel %vm1284, %v1264, 0
      %v1289 = vsel %vm1284, %v1266, 0
      %v1291 = vsel %vm1284, %v1268, 0
      %vm1293 = vcmask 1041408
      %v1295 = vsel %vm1293, %v1281, 0
      %1297 = vmatprep.subr.bf16.mxu0 0
      %1298 = vmatpush1.bf16.msra.mxu0 %v1279
      %1299 = vmatprep.subr.bf16.mxu0 0
      %1300 = vmatpush1.bf16.msra.mxu0 %v1280
      %1301 = vmatprep.subr.bf16.mxu0 0
      %1302 = vmatpush1.bf16.msra.mxu0 %v1295
      %1303 = vmatprep.subr.bf16.mxu0 0
      %1304 = vmatpush1.bf16.msra.mxu0 0
      %1305 = vmatprep.subr.bf16.mxu0 0
      %1306 = vmatpush1.bf16.msra.mxu0 0
      %1307 = vmatprep.subr.bf16.mxu0 0
      %1308 = vmatpush1.bf16.msra.mxu0 0
      %1309 = vmatprep.subr.bf16.mxu0 0
      %1310 = vmatpush1.bf16.msra.mxu0 0
      %1311 = vmatprep.subr.bf16.mxu0 0
      %1312 = vmatpush1.bf16.msra.mxu0 0
      %1313 = vmatprep.subr.bf16.mxu0 0
      %1314 = vmatpush1.bf16.msra.mxu0 0
      %1315 = vmatprep.subr.bf16.mxu0 0
      %1316 = vmatpush1.bf16.msra.mxu0 0
      %1317 = vmatprep.subr.bf16.mxu0 0
      %1318 = vmatpush1.bf16.msra.mxu0 0
      %1319 = vmatprep.subr.bf16.mxu0 0
      %1320 = vmatpush1.bf16.msra.mxu0 0
      %1321 = vmatprep.subr.bf16.mxu0 0
      %1322 = vmatpush1.bf16.msra.mxu0 0
      %1323 = vmatprep.subr.bf16.mxu0 0
      %1324 = vmatpush1.bf16.msra.mxu0 0
      %1325 = vmatprep.subr.bf16.mxu0 0
      %1326 = vmatpush1.bf16.msra.mxu0 0
      %1327 = vmatprep.subr.bf16.mxu0 0
      %1328 = vmatpush1.bf16.msra.mxu0 0
      %1329 = vmatprep.mubr.bf16.mxu0 0
      %1330 = vmatmul.mubr.bf16.gmra.mrb[0].mxu0 %v1285
      %v1331 = vpop.f32.mrb[0].mxu0
      %v1332 = vadd.f32 0.0, %v1331
      %v1333 = vpop.f32.mrb[0].mxu0
      %v1334 = vpop.f32.mrb[0].mxu0
      %v1335 = vadd.f32 0.0, %v1334
      %v1336 = vpop.f32.mrb[0].mxu0
      %1337 = vmatprep.mubr.bf16.mxu0 0
      %1338 = vmatmul.mubr.bf16.gmra.mrb[0].mxu0 %v1287
      %v1339 = vpop.f32.mrb[0].mxu0
      %v1340 = vadd.f32 0.0, %v1339
      %v1341 = vpop.f32.mrb[0].mxu0
      %v1342 = vpop.f32.mrb[0].mxu0
      %v1343 = vadd.f32 0.0, %v1342
      %v1344 = vpop.f32.mrb[0].mxu0
      %1345 = vmatprep.mubr.bf16.mxu0 0
      %1346 = vmatmul.mubr.bf16.gmra.mrb[0].mxu0 %v1289
      %v1347 = vpop.f32.mrb[0].mxu0
      %v1348 = vadd.f32 0.0, %v1347
      %v1349 = vpop.f32.mrb[0].mxu0
      %v1350 = vpop.f32.mrb[0].mxu0
      %v1351 = vadd.f32 0.0, %v1350
      %v1352 = vpop.f32.mrb[0].mxu0
      %1353 = vmatprep.mubr.bf16.mxu0 0
      %1354 = vmatmul.mubr.bf16.gmra.mrb[0].mxu0 %v1291
      %v1355 = vpop.f32.mrb[0].mxu0
      %v1356 = vadd.f32 0.0, %v1355
      %v1357 = vpop.f32.mrb[0].mxu0
      %v1358 = vpop.f32.mrb[0].mxu0
      %v1359 = vadd.f32 0.0, %v1358
      %v1360 = vpop.f32.mrb[0].mxu0
      %1361 = vdwg.mxu0
      %v1362 = vld [vmem:[%s310] sm:$0x1]
      %v1364 = vlaneseq
      %v1365 = vshrl.u32 %v1364, 7
      %v1366 = vsub.s32 0, %v1365
      %v1367 = vrot.slane %v1362, %v1366
      %v1369 = vmul.f32 %v1332, %v1367
      %v1370 = vmul.f32 %v1335, %v1367
      %v1371 = vmul.f32 %v1340, %v1367
      %v1372 = vmul.f32 %v1343, %v1367
      %v1373 = vmul.f32 %v1348, %v1367
      %v1374 = vmul.f32 %v1351, %v1367
      %v1375 = vmul.f32 %v1356, %v1367
      %v1376 = vmul.f32 %v1359, %v1367
      %v1377 = vld [vmem:[%s313] sm:$0x1]
      %v1379 = vlaneseq
      %v1380 = vshrl.u32 %v1379, 7
      %v1381 = vsub.s32 0, %v1380
      %v1382 = vrot.slane %v1377, %v1381
      %v1384 = vadd.f32 %v1369, %v1382
      %v1385 = vadd.f32 %v1370, %v1382
      %v1386 = vadd.f32 %v1371, %v1382
      %v1387 = vadd.f32 %v1372, %v1382
      %v1388 = vadd.f32 %v1373, %v1382
      %v1389 = vadd.f32 %v1374, %v1382
      %v1390 = vadd.f32 %v1375, %v1382
      %v1391 = vadd.f32 %v1376, %v1382
      %v1392 = vmul.f32 %v1384, 0.1
      %v1393 = vmul.f32 %v1385, 0.1
      %v1394 = vmul.f32 %v1386, 0.1
      %v1395 = vmul.f32 %v1387, 0.1
      %v1396 = vmul.f32 %v1388, 0.1
      %v1397 = vmul.f32 %v1389, 0.1
      %v1398 = vmul.f32 %v1390, 0.1
      %v1399 = vmul.f32 %v1391, 0.1
      %v1400 = vmax.f32 %v1384, %v1392
      %v1401 = vmax.f32 %v1385, %v1393
      %v1402 = vmax.f32 %v1386, %v1394
      %v1403 = vmax.f32 %v1387, %v1395
      %v1404 = vmax.f32 %v1388, %v1396
      %v1405 = vmax.f32 %v1389, %v1397
      %v1406 = vmax.f32 %v1390, %v1398
      %v1407 = vmax.f32 %v1391, %v1399
      %v1416 = vrot.slane %v1400, 7
      %v1417 = vrot.slane %v1401, 7
      %v1418 = vrot.slane %v1402, 7
      %v1419 = vrot.slane %v1403, 7
      %v1420 = vrot.slane %v1404, 7
      %v1421 = vrot.slane %v1405, 7
      %v1422 = vrot.slane %v1406, 7
      %v1423 = vrot.slane %v1407, 7
      %vm1432 = vcmask 1040384
      %v1433 = vsel %vm1432, 0.0, %v1416
      %v1434 = vsel %vm1432, 0.0, %v1417
      %v1435 = vsel %vm1432, 0.0, %v1418
      %v1436 = vsel %vm1432, 0.0, %v1419
      %v1437 = vsel %vm1432, 0.0, %v1420
      %v1438 = vsel %vm1432, 0.0, %v1421
      %v1439 = vsel %vm1432, 0.0, %v1422
      %v1440 = vsel %vm1432, 0.0, %v1423
      %v1441 = vsel %vm1432, %v1416, 0.0
      %v1442 = vsel %vm1432, %v1417, 0.0
      %v1443 = vsel %vm1432, %v1418, 0.0
      %v1444 = vsel %vm1432, %v1419, 0.0
      %v1445 = vsel %vm1432, %v1420, 0.0
      %v1446 = vsel %vm1432, %v1421, 0.0
      %v1447 = vsel %vm1432, %v1422, 0.0
      %v1448 = vsel %vm1432, %v1423, 0.0
      %v1449 = vpack.c.bf16 0.0, 0.0
      %v1450 = vpack.c.bf16 %v1441, %v1433
      %v1451 = vpack.c.bf16 %v1442, %v1434
      %v1452 = vpack.c.bf16 %v1443, %v1435
      %v1453 = vpack.c.bf16 %v1444, %v1436
      %v1454 = vpack.c.bf16 %v1445, %v1437
      %v1455 = vpack.c.bf16 %v1446, %v1438
      %v1456 = vpack.c.bf16 %v1447, %v1439
      %v1457 = vpack.c.bf16 %v1448, %v1440
      %v1467 = vunpack.c.l.b16 %v1449
      %v1468 = vunpack.c.h.b16 %v1449
      %v1469 = vunpack.c.l.b16 %v1450
      %v1470 = vunpack.c.h.b16 %v1450
      %v1471 = vunpack.c.l.b16 %v1451
      %v1472 = vunpack.c.h.b16 %v1451
      %v1473 = vunpack.c.l.b16 %v1452
      %v1474 = vunpack.c.h.b16 %v1452
      %v1475 = vunpack.c.l.b16 %v1453
      %v1476 = vunpack.c.h.b16 %v1453
      %v1477 = vunpack.c.l.b16 %v1454
      %v1478 = vunpack.c.h.b16 %v1454
      %v1479 = vunpack.c.l.b16 %v1455
      %v1480 = vunpack.c.h.b16 %v1455
      %v1481 = vunpack.c.l.b16 %v1456
      %v1482 = vunpack.c.h.b16 %v1456
      %v1483 = vunpack.c.l.b16 %v1457
      %v1484 = vunpack.c.h.b16 %v1457
      %v1485 = vpack.c.b16 %v1467, %v1467
      %v1486 = vpack.c.b16 %v1468, %v1468
      %v1487 = vpack.c.b16 %v1469, %v1469
      %v1488 = vpack.c.b16 %v1470, %v1470
      %v1489 = vpack.c.b16 %v1471, %v1471
      %v1490 = vpack.c.b16 %v1472, %v1472
      %v1491 = vpack.c.b16 %v1473, %v1473
      %v1492 = vpack.c.b16 %v1474, %v1474
      %v1493 = vpack.c.b16 %v1475, %v1475
      %v1494 = vpack.c.b16 %v1476, %v1476
      %v1495 = vpack.c.b16 %v1477, %v1477
      %v1496 = vpack.c.b16 %v1478, %v1478
      %v1497 = vpack.c.b16 %v1479, %v1479
      %v1498 = vpack.c.b16 %v1480, %v1480
      %v1499 = vpack.c.b16 %v1481, %v1481
      %v1500 = vpack.c.b16 %v1482, %v1482
      %v1501 = vpack.c.b16 %v1483, %v1483
      %v1502 = vpack.c.b16 %v1484, %v1484
      %vm1521 = vcmask 60416
      %1522 = vst.msk [vmem:[%s321] sm:$0xf] %vm1521, %v1485
      %vm1523 = vcmask 57344
      %1524 = vst.msk [vmem:[%s321 + $0x4] sm:$0x1] %vm1523, %v1486
      %1525 = vst.msk [vmem:[%s321 + $0x8] sm:$0xf] %vm1521, %v1487
      %1526 = vst.msk [vmem:[%s321 + $0xc] sm:$0x1] %vm1523, %v1488
      %1527 = vst.msk [vmem:[%s321 + $0x10] sm:$0xf] %vm1521, %v1489
      %1528 = vst.msk [vmem:[%s321 + $0x14] sm:$0x1] %vm1523, %v1490
      %1529 = vst.msk [vmem:[%s321 + $0x18] sm:$0xf] %vm1521, %v1491
      %1530 = vst.msk [vmem:[%s321 + $0x1c] sm:$0x1] %vm1523, %v1492
      %1531 = vst.msk [vmem:[%s321 + $0x20] sm:$0xf] %vm1521, %v1493
      %1532 = vst.msk [vmem:[%s321 + $0x24] sm:$0x1] %vm1523, %v1494
      %1533 = vst.msk [vmem:[%s321 + $0x28] sm:$0xf] %vm1521, %v1495
      %1534 = vst.msk [vmem:[%s321 + $0x2c] sm:$0x1] %vm1523, %v1496
      %1535 = vst.msk [vmem:[%s321 + $0x30] sm:$0xf] %vm1521, %v1497
      %1536 = vst.msk [vmem:[%s321 + $0x34] sm:$0x1] %vm1523, %v1498
      %1537 = vst.msk [vmem:[%s321 + $0x38] sm:$0xf] %vm1521, %v1499
      %1538 = vst.msk [vmem:[%s321 + $0x3c] sm:$0x1] %vm1523, %v1500
      %1539 = vst.msk [vmem:[%s321 + $0x40] sm:$0xf] %vm1521, %v1501
      %1540 = vst.msk [vmem:[%s321 + $0x44] sm:$0x1] %vm1523, %v1502
      %1541 = vst.msk [vmem:[%s321 + $0x48] sm:$0xf] %vm1521, %v1485
      %1542 = vst.msk [vmem:[%s321 + $0x4c] sm:$0x1] %vm1523, %v1486
      %p1543 = scmp.lt.s32.totalorder %s21, 1
      %s1544 = scalar_select %p1543, %s21, 1
      %p1545 = scmp.lt.s32.totalorder %s22, 0
      %s1546 = scalar_select %p1545, %s22, 0
      %s1547 = smul.addr %s1544, 20
      %s1548 = sadd.s32 %s1546, %s1547
      %s1549 = smul.addr %s1548, 4
      %s1550 = scalar_lea.vmem %s6, %s1549
      // Predicated region
      $region45: #{network_block_forward.4} parent=43 // pred_check
        %p1551 = pneg %p195
      $region46: #{network_block_forward.4} parent=43 // pred_check_branch
        %1553 = sbr.rel (%p1551) target = $region48
      $region47: #{network_block_forward.4} parent=43 // pred_region
        _
      $region48: #{network_block_forward.4} parent=43 // pred_fallthru
        _
    $region44: #{network_block_forward.4} parent=5 // pred_fallthru
      _
    %p1554 = scmp.le.s32.totalorder 2, %s12
    // Predicated region
    $region49: #{network_block_forward.4} parent=5 // pred_check
      %p1555 = pneg %p1554
    $region50: #{network_block_forward.4} parent=5 // pred_check_branch
      %1557 = sbr.rel (%p1555) target = $region52
    $region51: #{network_block_forward.4} parent=5 // pred_region
      %s1558 = ssub.s32 %s12, 2
      // Predicated region
      $region53: #{network_block_forward.4} parent=51 // pred_check
        %p1559 = pneg %p201
      $region54: #{network_block_forward.4} parent=51 // pred_check_branch
        %1561 = sbr.rel (%p1559) target = $region56
      $region55: #{network_block_forward.4} parent=51 // pred_region
        %p1562 = scmp.lt.s32.totalorder %s23, 1
        %s1563 = scalar_select %p1562, %s23, 1
        %p1564 = scmp.lt.s32.totalorder %s24, 0
        %s1565 = scalar_select %p1564, %s24, 0
        %s1566 = smul.addr %s1563, 20
        %s1567 = sadd.s32 %s1565, %s1566
        %s1568 = smul.addr %s1567, 4
        %s1569 = scalar_lea.vmem %s6, %s1568
      $region56: #{network_block_forward.4} parent=51 // pred_fallthru
        _
    $region52: #{network_block_forward.4} parent=5 // pred_fallthru
      _
  $region6: #{network_block_forward.4} parent=0 // loop_footer
    %s16 = sadd.s32 1, %s12
  $region7: #{network_block_forward.4} parent=0 // loop_footer_branch
    %11 = sbr.rel target = $region3
  $region8: #{network_block_forward.4} parent=0 // loop_exit
    _

</llo_original>
